<compile_context>
chip_gen: v5e
topology: v5e:2x2
jax: 0.10.0
libtpu: 0.0.40
codegen_flags: <defaults>
</compile_context>

<pallas_src>
import functools

import jax
import jax.numpy as jnp
from jax import lax
from jax.experimental import pallas as pl
from jax.experimental.pallas import tpu as pltpu


def _one_cnn_kernel(pT_ref, wc_ref, bc_ref, w1_ref, b1_ref, w2_ref, b2_ref,
                    o_ref, ps_ref, *, bt):
    # pT_ref : (4, 256, bt*128) bf16  im2col patches for this batch tile
    # wc_ref : (16, 256)  bf16        conv weight (O, cin*kh*kw)
    # bc_ref : (16, 1)    f32         conv bias (broadcast over lanes)
    # w1_ref : (16, 128, 256) bf16    fc1 weight as (channel, padded pooled pos, out)
    # b1_ref : (1, 256)   f32
    # w2_ref : (256, OUTP) f32        fc2 weight, out dim padded to a multiple of 128
    # b2_ref : (1, OUTP)  f32
    # o_ref  : (bt, OUTP) f32
    # ps_ref : (16, bt, 128) f32      scratch: pooled activations with batch moved to sublanes
    wc = wc_ref[...]

    # Conv2d(4,16,8,stride=4) as matmuls over im2col patches.  The four dots (one per 2x2
    # pool-window position) share the resident (16,256) weight and each has full N = bt*128
    # lanes, so MXU weight loads and push/drain are amortized.  The running max fuses
    # ReLU + MaxPool2d(2); the conv bias is added once after the max (max_q(v)+b == max_q(v+b)).
    c0 = jnp.dot(wc, pT_ref[0], preferred_element_type=jnp.float32)
    c1 = jnp.dot(wc, pT_ref[1], preferred_element_type=jnp.float32)
    c2 = jnp.dot(wc, pT_ref[2], preferred_element_type=jnp.float32)
    c3 = jnp.dot(wc, pT_ref[3], preferred_element_type=jnp.float32)
    pooled = jnp.maximum(jnp.maximum(c0, c1), jnp.maximum(c2, c3))      # (16, bt*128)
    pooled = jnp.maximum(pooled + bc_ref[...], 0.0)                     # bias + ReLU (f32)

    # Bridge relayout (the Flatten): move the batch dim from lanes to sublanes so the FC
    # layers run with batch as the matmul M dim.  Done per channel through a VMEM scratch
    # using the canonical 1D -> (bt, 128) reshape.
    for c in range(16):
        ps_ref[c] = pooled[c].reshape(bt, 128)
    pb = ps_ref[...].astype(jnp.bfloat16)                               # (16, bt, 128)

    # Linear(1600, 256) as a single channel-batched contraction (no per-channel matmul loop):
    #   tmp[c, b, n] = sum_p pb[c, b, p] * w1[c, p, n];   h1 = relu(sum_c tmp + b1)
    tmp = lax.dot_general(pb, w1_ref[...],
                          dimension_numbers=(((2,), (1,)), ((0,), (0,))),
                          preferred_element_type=jnp.float32)           # (16, bt, 256)
    parts = [tmp[c] for c in range(16)]
    while len(parts) > 1:                                               # tree add over channels
        parts = [parts[i] + parts[i + 1] for i in range(0, len(parts), 2)]
    h1 = jnp.maximum(parts[0] + b1_ref[...], 0.0)                       # (bt, 256)

    # Linear(256, out) with a lane-dense (padded-to-128) output store.
    out = jnp.dot(h1, w2_ref[...], preferred_element_type=jnp.float32) + b2_ref[...]
    o_ref[...] = out.astype(o_ref.dtype)


def one_cnn_forward(x, params, bt_max=32):
    W_conv, b_conv, W_fc1, b_fc1, W_fc2, b_fc2 = params
    B = x.shape[0]
    OUT = W_fc2.shape[0]
    assert x.shape[1:] == (4, 84, 84), "Linear(1600,256) implies 4x84x84 inputs"

    # Batch tiling: BT batch elements per grid step (BT is the M dim of the FC matmuls).
    BT = min(bt_max, ((B + 7) // 8) * 8)
    G = -(-B // BT)
    B_pad = G * BT
    if B_pad != B:
        x = jnp.pad(x, ((0, B_pad - B), (0, 0), (0, 0), (0, 0)))
    xb = x.astype(jnp.bfloat16)

    # ---- glue: im2col via an identity-filter convolution (MXU-backed in XLA).
    # "CNHW" output puts the 256-wide feature dim first so no host transpose of the patch
    # array is needed; only cheap strided slices / stack / pad / reshape remain.
    # TODO(synk): patch extraction still runs as XLA glue; doing it in-kernel via manual DMA
    # from the raw NCHW image would cut HBM traffic further.
    eye = jnp.eye(256, dtype=jnp.bfloat16).reshape(256, 4, 8, 8)        # feat = c*64 + kh*8 + kw
    pat = lax.conv_general_dilated(
        xb, eye, window_strides=(4, 4), padding="VALID",
        dimension_numbers=("NCHW", "OIHW", "CNHW"))                     # (256, B_pad, 20, 20)
    qs = [pat[:, :, i::2, j::2] for i in (0, 1) for j in (0, 1)]        # 4 x (256, B_pad, 10, 10)
    pq = jnp.stack(qs, axis=0).reshape(4, 256, B_pad, 100)
    pq = jnp.pad(pq, ((0, 0), (0, 0), (0, 0), (0, 28)))                 # pad pooled pos 100 -> 128
    pT = pq.reshape(4, 256, B_pad * 128)                                # lanes = b*128 + p

    # ---- glue: weight relayout (bf16 for the MXU-streamed operands, f32 accumulation in-kernel)
    wc = W_conv.reshape(16, 256).astype(jnp.bfloat16)                   # (O, cin*kh*kw)
    bc = b_conv.reshape(16, 1).astype(jnp.float32)
    # PyTorch flatten index k = c*100 + p  ->  w1[c, p, n] = W_fc1[n, c*100 + p], p padded with 0s
    w1 = W_fc1.reshape(256, 16, 100).transpose(1, 2, 0)                 # (16, 100, 256)
    w1 = jnp.pad(w1, ((0, 0), (0, 28), (0, 0))).astype(jnp.bfloat16)    # (16, 128, 256)
    b1 = b_fc1.reshape(1, 256).astype(jnp.float32)
    OUTP = ((OUT + 127) // 128) * 128                                   # lane-dense output
    w2 = jnp.pad(W_fc2.T.astype(jnp.float32), ((0, 0), (0, OUTP - OUT)))
    b2 = jnp.pad(b_fc2.astype(jnp.float32), (0, OUTP - OUT)).reshape(1, OUTP)

    S = BT * 128
    kernel = functools.partial(_one_cnn_kernel, bt=BT)
    out_pad = pl.pallas_call(
        kernel,
        out_shape=jax.ShapeDtypeStruct((B_pad, OUTP), jnp.float32),
        grid_spec=pltpu.PrefetchScalarGridSpec(
            num_scalar_prefetch=0,
            grid=(G,),
            in_specs=[
                pl.BlockSpec((4, 256, S), lambda g: (0, 0, g)),
                pl.BlockSpec((16, 256), lambda g: (0, 0)),
                pl.BlockSpec((16, 1), lambda g: (0, 0)),
                pl.BlockSpec((16, 128, 256), lambda g: (0, 0, 0)),
                pl.BlockSpec((1, 256), lambda g: (0, 0)),
                pl.BlockSpec((256, OUTP), lambda g: (0, 0)),
                pl.BlockSpec((1, OUTP), lambda g: (0, 0)),
            ],
            out_specs=pl.BlockSpec((BT, OUTP), lambda g: (g, 0)),
            scratch_shapes=[pltpu.VMEM((16, BT, 128), jnp.float32)],
        ),
        compiler_params=pltpu.CompilerParams(
            dimension_semantics=("parallel",),
            vmem_limit_bytes=32 * 1024 * 1024,
        ),
    )(pT, wc, bc, w1, b1, w2, b2)
    return out_pad[:B, :OUT]


if __name__ == "__main__":
    B, OUT = 2, 8
    key = jax.random.PRNGKey(0)
    ks = jax.random.split(key, 7)
    # Input spatial size is forced to 84x84 by Linear(1600, 256) in the module.
    x = jax.random.normal(ks[0], (B, 4, 84, 84), jnp.float32)
    W_conv = jax.random.normal(ks[1], (16, 4, 8, 8), jnp.float32) * 0.05
    b_conv = jax.random.normal(ks[2], (16,), jnp.float32) * 0.05
    W_fc1 = jax.random.normal(ks[3], (256, 1600), jnp.float32) * 0.02
    b_fc1 = jax.random.normal(ks[4], (256,), jnp.float32) * 0.02
    W_fc2 = jax.random.normal(ks[5], (OUT, 256), jnp.float32) * 0.05
    b_fc2 = jax.random.normal(ks[6], (OUT,), jnp.float32) * 0.05
    params = (W_conv, b_conv, W_fc1, b_fc1, W_fc2, b_fc2)

    out = jax.block_until_ready(jax.jit(one_cnn_forward)(x, params))

    # Pure-JAX f32 reference (matches PyTorch forward semantics).
    conv = lax.conv_general_dilated(
        x, W_conv, window_strides=(4, 4), padding="VALID",
        dimension_numbers=("NCHW", "OIHW", "NCHW"))
    conv = jnp.maximum(conv + b_conv[None, :, None, None], 0.0)
    pool = lax.reduce_window(conv, -jnp.inf, lax.max,
                             (1, 1, 2, 2), (1, 1, 2, 2), "VALID")
    flat = pool.reshape(B, 1600)
    h1 = jnp.maximum(flat @ W_fc1.T + b_fc1, 0.0)
    ref = h1 @ W_fc2.T + b_fc2

    assert out.shape == (B, OUT)
    err = float(jnp.max(jnp.abs(out - ref)))
    assert jnp.allclose(out, ref, rtol=2e-2, atol=2e-2), err  # bf16 patch/weight streams
    print("KERNEL_OK")
</pallas_src>

<mosaic_0001>
module attributes {stable_mosaic.version = 11 : i64} {
  func.func @_one_cnn_kernel(%arg0: i32, %arg1: memref<4x256x1024xbf16, #tpu.memory_space<vmem>>, %arg2: memref<16x256xbf16, #tpu.memory_space<vmem>>, %arg3: memref<16x1xf32, #tpu.memory_space<vmem>>, %arg4: memref<16x128x256xbf16, #tpu.memory_space<vmem>>, %arg5: memref<1x256xf32, #tpu.memory_space<vmem>>, %arg6: memref<256x128xf32, #tpu.memory_space<vmem>>, %arg7: memref<1x128xf32, #tpu.memory_space<vmem>>, %arg8: memref<8x128xf32, #tpu.memory_space<vmem>>, %arg9: memref<16x8x128xf32, #tpu.memory_space<vmem>>) attributes {dimension_semantics = [#tpu.dimension_semantics<parallel>], iteration_bounds = array<i64: 1>, scalar_prefetch = 0 : i64, scratch_operands = 1 : i64, tpu.core_type = #tpu.core_type<tc>, window_params = [{transform_indices = @transform_0, window_bounds = array<i64: 4, 256, 1024>}, {pipeline_mode = #tpu.pipeline_mode<synchronous>, transform_indices = @transform_1, window_bounds = array<i64: 16, 256>}, {pipeline_mode = #tpu.pipeline_mode<synchronous>, transform_indices = @transform_2, window_bounds = array<i64: 16, 1>}, {pipeline_mode = #tpu.pipeline_mode<synchronous>, transform_indices = @transform_3, window_bounds = array<i64: 16, 128, 256>}, {pipeline_mode = #tpu.pipeline_mode<synchronous>, transform_indices = @transform_4, window_bounds = array<i64: 1, 256>}, {pipeline_mode = #tpu.pipeline_mode<synchronous>, transform_indices = @transform_5, window_bounds = array<i64: 256, 128>}, {pipeline_mode = #tpu.pipeline_mode<synchronous>, transform_indices = @transform_6, window_bounds = array<i64: 1, 128>}, {transform_indices = @transform_7, window_bounds = array<i64: 8, 128>}]} {
    %c0 = arith.constant 0 : index
    %c0_0 = arith.constant 0 : index
    %0 = vector.load %arg2[%c0, %c0_0] : memref<16x256xbf16, #tpu.memory_space<vmem>>, vector<16x256xbf16>
    %c0_1 = arith.constant 0 : index
    %c0_2 = arith.constant 0 : index
    %c0_3 = arith.constant 0 : index
    %1 = vector.load %arg1[%c0_1, %c0_2, %c0_3] : memref<4x256x1024xbf16, #tpu.memory_space<vmem>>, vector<1x256x1024xbf16>
    %2 = vector.shape_cast %1 : vector<1x256x1024xbf16> to vector<256x1024xbf16>
    %cst = arith.constant dense<0.000000e+00> : vector<16x1024xf32>
    %3 = tpu.matmul %0, %2, %cst {dimension_numbers = #tpu.dot_dimension_numbers<[1], [0], [0], [1], [0, 0, 1, 1], [], []>} : vector<16x256xbf16>, vector<256x1024xbf16>, vector<16x1024xf32> -> vector<16x1024xf32>
    %c1 = arith.constant 1 : index
    %c0_4 = arith.constant 0 : index
    %c0_5 = arith.constant 0 : index
    %4 = vector.load %arg1[%c1, %c0_4, %c0_5] : memref<4x256x1024xbf16, #tpu.memory_space<vmem>>, vector<1x256x1024xbf16>
    %5 = vector.shape_cast %4 : vector<1x256x1024xbf16> to vector<256x1024xbf16>
    %cst_6 = arith.constant dense<0.000000e+00> : vector<16x1024xf32>
    %6 = tpu.matmul %0, %5, %cst_6 {dimension_numbers = #tpu.dot_dimension_numbers<[1], [0], [0], [1], [0, 0, 1, 1], [], []>} : vector<16x256xbf16>, vector<256x1024xbf16>, vector<16x1024xf32> -> vector<16x1024xf32>
    %c2 = arith.constant 2 : index
    %c0_7 = arith.constant 0 : index
    %c0_8 = arith.constant 0 : index
    %7 = vector.load %arg1[%c2, %c0_7, %c0_8] : memref<4x256x1024xbf16, #tpu.memory_space<vmem>>, vector<1x256x1024xbf16>
    %8 = vector.shape_cast %7 : vector<1x256x1024xbf16> to vector<256x1024xbf16>
    %cst_9 = arith.constant dense<0.000000e+00> : vector<16x1024xf32>
    %9 = tpu.matmul %0, %8, %cst_9 {dimension_numbers = #tpu.dot_dimension_numbers<[1], [0], [0], [1], [0, 0, 1, 1], [], []>} : vector<16x256xbf16>, vector<256x1024xbf16>, vector<16x1024xf32> -> vector<16x1024xf32>
    %c3 = arith.constant 3 : index
    %c0_10 = arith.constant 0 : index
    %c0_11 = arith.constant 0 : index
    %10 = vector.load %arg1[%c3, %c0_10, %c0_11] : memref<4x256x1024xbf16, #tpu.memory_space<vmem>>, vector<1x256x1024xbf16>
    %11 = vector.shape_cast %10 : vector<1x256x1024xbf16> to vector<256x1024xbf16>
    %cst_12 = arith.constant dense<0.000000e+00> : vector<16x1024xf32>
    %12 = tpu.matmul %0, %11, %cst_12 {dimension_numbers = #tpu.dot_dimension_numbers<[1], [0], [0], [1], [0, 0, 1, 1], [], []>} : vector<16x256xbf16>, vector<256x1024xbf16>, vector<16x1024xf32> -> vector<16x1024xf32>
    %13 = arith.maximumf %3, %6 : vector<16x1024xf32>
    %14 = arith.maximumf %9, %12 : vector<16x1024xf32>
    %15 = arith.maximumf %13, %14 : vector<16x1024xf32>
    %c0_13 = arith.constant 0 : index
    %c0_14 = arith.constant 0 : index
    %16 = vector.load %arg3[%c0_13, %c0_14] : memref<16x1xf32, #tpu.memory_space<vmem>>, vector<16x1xf32>
    %17 = vector.broadcast %16 : vector<16x1xf32> to vector<16x1024xf32>
    %18 = arith.addf %15, %17 : vector<16x1024xf32>
    %cst_15 = arith.constant 0.000000e+00 : f32
    %19 = vector.broadcast %cst_15 : f32 to vector<16x1024xf32>
    %20 = arith.maximumf %18, %19 : vector<16x1024xf32>
    %21 = vector.extract_strided_slice %20 {offsets = [0, 0], sizes = [1, 1024], strides = [1, 1]} : vector<16x1024xf32> to vector<1x1024xf32>
    %22 = vector.shape_cast %21 : vector<1x1024xf32> to vector<1024xf32>
    %23 = vector.shape_cast %22 : vector<1024xf32> to vector<8x128xf32>
    %c0_16 = arith.constant 0 : index
    %c0_17 = arith.constant 0 : index
    %c0_18 = arith.constant 0 : index
    %24 = vector.load %arg9[%c0_16, %c0_17, %c0_18] : memref<16x8x128xf32, #tpu.memory_space<vmem>>, vector<1x8x128xf32>
    %25 = vector.shape_cast %24 : vector<1x8x128xf32> to vector<8x128xf32>
    %26 = vector.shape_cast %23 : vector<8x128xf32> to vector<1x8x128xf32>
    tpu.vector_store %arg9[%c0_16, %c0_17, %c0_18], %26 {strides = array<i32>} : memref<16x8x128xf32, #tpu.memory_space<vmem>>, vector<1x8x128xf32>,
    %27 = vector.extract_strided_slice %20 {offsets = [1, 0], sizes = [1, 1024], strides = [1, 1]} : vector<16x1024xf32> to vector<1x1024xf32>
    %28 = vector.shape_cast %27 : vector<1x1024xf32> to vector<1024xf32>
    %29 = vector.shape_cast %28 : vector<1024xf32> to vector<8x128xf32>
    %c1_19 = arith.constant 1 : index
    %c0_20 = arith.constant 0 : index
    %c0_21 = arith.constant 0 : index
    %30 = vector.load %arg9[%c1_19, %c0_20, %c0_21] : memref<16x8x128xf32, #tpu.memory_space<vmem>>, vector<1x8x128xf32>
    %31 = vector.shape_cast %30 : vector<1x8x128xf32> to vector<8x128xf32>
    %32 = vector.shape_cast %29 : vector<8x128xf32> to vector<1x8x128xf32>
    tpu.vector_store %arg9[%c1_19, %c0_20, %c0_21], %32 {strides = array<i32>} : memref<16x8x128xf32, #tpu.memory_space<vmem>>, vector<1x8x128xf32>,
    %33 = vector.extract_strided_slice %20 {offsets = [2, 0], sizes = [1, 1024], strides = [1, 1]} : vector<16x1024xf32> to vector<1x1024xf32>
    %34 = vector.shape_cast %33 : vector<1x1024xf32> to vector<1024xf32>
    %35 = vector.shape_cast %34 : vector<1024xf32> to vector<8x128xf32>
    %c2_22 = arith.constant 2 : index
    %c0_23 = arith.constant 0 : index
    %c0_24 = arith.constant 0 : index
    %36 = vector.load %arg9[%c2_22, %c0_23, %c0_24] : memref<16x8x128xf32, #tpu.memory_space<vmem>>, vector<1x8x128xf32>
    %37 = vector.shape_cast %36 : vector<1x8x128xf32> to vector<8x128xf32>
    %38 = vector.shape_cast %35 : vector<8x128xf32> to vector<1x8x128xf32>
    tpu.vector_store %arg9[%c2_22, %c0_23, %c0_24], %38 {strides = array<i32>} : memref<16x8x128xf32, #tpu.memory_space<vmem>>, vector<1x8x128xf32>,
    %39 = vector.extract_strided_slice %20 {offsets = [3, 0], sizes = [1, 1024], strides = [1, 1]} : vector<16x1024xf32> to vector<1x1024xf32>
    %40 = vector.shape_cast %39 : vector<1x1024xf32> to vector<1024xf32>
    %41 = vector.shape_cast %40 : vector<1024xf32> to vector<8x128xf32>
    %c3_25 = arith.constant 3 : index
    %c0_26 = arith.constant 0 : index
    %c0_27 = arith.constant 0 : index
    %42 = vector.load %arg9[%c3_25, %c0_26, %c0_27] : memref<16x8x128xf32, #tpu.memory_space<vmem>>, vector<1x8x128xf32>
    %43 = vector.shape_cast %42 : vector<1x8x128xf32> to vector<8x128xf32>
    %44 = vector.shape_cast %41 : vector<8x128xf32> to vector<1x8x128xf32>
    tpu.vector_store %arg9[%c3_25, %c0_26, %c0_27], %44 {strides = array<i32>} : memref<16x8x128xf32, #tpu.memory_space<vmem>>, vector<1x8x128xf32>,
    %45 = vector.extract_strided_slice %20 {offsets = [4, 0], sizes = [1, 1024], strides = [1, 1]} : vector<16x1024xf32> to vector<1x1024xf32>
    %46 = vector.shape_cast %45 : vector<1x1024xf32> to vector<1024xf32>
    %47 = vector.shape_cast %46 : vector<1024xf32> to vector<8x128xf32>
    %c4 = arith.constant 4 : index
    %c0_28 = arith.constant 0 : index
    %c0_29 = arith.constant 0 : index
    %48 = vector.load %arg9[%c4, %c0_28, %c0_29] : memref<16x8x128xf32, #tpu.memory_space<vmem>>, vector<1x8x128xf32>
    %49 = vector.shape_cast %48 : vector<1x8x128xf32> to vector<8x128xf32>
    %50 = vector.shape_cast %47 : vector<8x128xf32> to vector<1x8x128xf32>
    tpu.vector_store %arg9[%c4, %c0_28, %c0_29], %50 {strides = array<i32>} : memref<16x8x128xf32, #tpu.memory_space<vmem>>, vector<1x8x128xf32>,
    %51 = vector.extract_strided_slice %20 {offsets = [5, 0], sizes = [1, 1024], strides = [1, 1]} : vector<16x1024xf32> to vector<1x1024xf32>
    %52 = vector.shape_cast %51 : vector<1x1024xf32> to vector<1024xf32>
    %53 = vector.shape_cast %52 : vector<1024xf32> to vector<8x128xf32>
    %c5 = arith.constant 5 : index
    %c0_30 = arith.constant 0 : index
    %c0_31 = arith.constant 0 : index
    %54 = vector.load %arg9[%c5, %c0_30, %c0_31] : memref<16x8x128xf32, #tpu.memory_space<vmem>>, vector<1x8x128xf32>
    %55 = vector.shape_cast %54 : vector<1x8x128xf32> to vector<8x128xf32>
    %56 = vector.shape_cast %53 : vector<8x128xf32> to vector<1x8x128xf32>
    tpu.vector_store %arg9[%c5, %c0_30, %c0_31], %56 {strides = array<i32>} : memref<16x8x128xf32, #tpu.memory_space<vmem>>, vector<1x8x128xf32>,
    %57 = vector.extract_strided_slice %20 {offsets = [6, 0], sizes = [1, 1024], strides = [1, 1]} : vector<16x1024xf32> to vector<1x1024xf32>
    %58 = vector.shape_cast %57 : vector<1x1024xf32> to vector<1024xf32>
    %59 = vector.shape_cast %58 : vector<1024xf32> to vector<8x128xf32>
    %c6 = arith.constant 6 : index
    %c0_32 = arith.constant 0 : index
    %c0_33 = arith.constant 0 : index
    %60 = vector.load %arg9[%c6, %c0_32, %c0_33] : memref<16x8x128xf32, #tpu.memory_space<vmem>>, vector<1x8x128xf32>
    %61 = vector.shape_cast %60 : vector<1x8x128xf32> to vector<8x128xf32>
    %62 = vector.shape_cast %59 : vector<8x128xf32> to vector<1x8x128xf32>
    tpu.vector_store %arg9[%c6, %c0_32, %c0_33], %62 {strides = array<i32>} : memref<16x8x128xf32, #tpu.memory_space<vmem>>, vector<1x8x128xf32>,
    %63 = vector.extract_strided_slice %20 {offsets = [7, 0], sizes = [1, 1024], strides = [1, 1]} : vector<16x1024xf32> to vector<1x1024xf32>
    %64 = vector.shape_cast %63 : vector<1x1024xf32> to vector<1024xf32>
    %65 = vector.shape_cast %64 : vector<1024xf32> to vector<8x128xf32>
    %c7 = arith.constant 7 : index
    %c0_34 = arith.constant 0 : index
    %c0_35 = arith.constant 0 : index
    %66 = vector.load %arg9[%c7, %c0_34, %c0_35] : memref<16x8x128xf32, #tpu.memory_space<vmem>>, vector<1x8x128xf32>
    %67 = vector.shape_cast %66 : vector<1x8x128xf32> to vector<8x128xf32>
    %68 = vector.shape_cast %65 : vector<8x128xf32> to vector<1x8x128xf32>
    tpu.vector_store %arg9[%c7, %c0_34, %c0_35], %68 {strides = array<i32>} : memref<16x8x128xf32, #tpu.memory_space<vmem>>, vector<1x8x128xf32>,
    %69 = vector.extract_strided_slice %20 {offsets = [8, 0], sizes = [1, 1024], strides = [1, 1]} : vector<16x1024xf32> to vector<1x1024xf32>
    %70 = vector.shape_cast %69 : vector<1x1024xf32> to vector<1024xf32>
    %71 = vector.shape_cast %70 : vector<1024xf32> to vector<8x128xf32>
    %c8 = arith.constant 8 : index
    %c0_36 = arith.constant 0 : index
    %c0_37 = arith.constant 0 : index
    %72 = vector.load %arg9[%c8, %c0_36, %c0_37] : memref<16x8x128xf32, #tpu.memory_space<vmem>>, vector<1x8x128xf32>
    %73 = vector.shape_cast %72 : vector<1x8x128xf32> to vector<8x128xf32>
    %74 = vector.shape_cast %71 : vector<8x128xf32> to vector<1x8x128xf32>
    tpu.vector_store %arg9[%c8, %c0_36, %c0_37], %74 {strides = array<i32>} : memref<16x8x128xf32, #tpu.memory_space<vmem>>, vector<1x8x128xf32>,
    %75 = vector.extract_strided_slice %20 {offsets = [9, 0], sizes = [1, 1024], strides = [1, 1]} : vector<16x1024xf32> to vector<1x1024xf32>
    %76 = vector.shape_cast %75 : vector<1x1024xf32> to vector<1024xf32>
    %77 = vector.shape_cast %76 : vector<1024xf32> to vector<8x128xf32>
    %c9 = arith.constant 9 : index
    %c0_38 = arith.constant 0 : index
    %c0_39 = arith.constant 0 : index
    %78 = vector.load %arg9[%c9, %c0_38, %c0_39] : memref<16x8x128xf32, #tpu.memory_space<vmem>>, vector<1x8x128xf32>
    %79 = vector.shape_cast %78 : vector<1x8x128xf32> to vector<8x128xf32>
    %80 = vector.shape_cast %77 : vector<8x128xf32> to vector<1x8x128xf32>
    tpu.vector_store %arg9[%c9, %c0_38, %c0_39], %80 {strides = array<i32>} : memref<16x8x128xf32, #tpu.memory_space<vmem>>, vector<1x8x128xf32>,
    %81 = vector.extract_strided_slice %20 {offsets = [10, 0], sizes = [1, 1024], strides = [1, 1]} : vector<16x1024xf32> to vector<1x1024xf32>
    %82 = vector.shape_cast %81 : vector<1x1024xf32> to vector<1024xf32>
    %83 = vector.shape_cast %82 : vector<1024xf32> to vector<8x128xf32>
    %c10 = arith.constant 10 : index
    %c0_40 = arith.constant 0 : index
    %c0_41 = arith.constant 0 : index
    %84 = vector.load %arg9[%c10, %c0_40, %c0_41] : memref<16x8x128xf32, #tpu.memory_space<vmem>>, vector<1x8x128xf32>
    %85 = vector.shape_cast %84 : vector<1x8x128xf32> to vector<8x128xf32>
    %86 = vector.shape_cast %83 : vector<8x128xf32> to vector<1x8x128xf32>
    tpu.vector_store %arg9[%c10, %c0_40, %c0_41], %86 {strides = array<i32>} : memref<16x8x128xf32, #tpu.memory_space<vmem>>, vector<1x8x128xf32>,
    %87 = vector.extract_strided_slice %20 {offsets = [11, 0], sizes = [1, 1024], strides = [1, 1]} : vector<16x1024xf32> to vector<1x1024xf32>
    %88 = vector.shape_cast %87 : vector<1x1024xf32> to vector<1024xf32>
    %89 = vector.shape_cast %88 : vector<1024xf32> to vector<8x128xf32>
    %c11 = arith.constant 11 : index
    %c0_42 = arith.constant 0 : index
    %c0_43 = arith.constant 0 : index
    %90 = vector.load %arg9[%c11, %c0_42, %c0_43] : memref<16x8x128xf32, #tpu.memory_space<vmem>>, vector<1x8x128xf32>
    %91 = vector.shape_cast %90 : vector<1x8x128xf32> to vector<8x128xf32>
    %92 = vector.shape_cast %89 : vector<8x128xf32> to vector<1x8x128xf32>
    tpu.vector_store %arg9[%c11, %c0_42, %c0_43], %92 {strides = array<i32>} : memref<16x8x128xf32, #tpu.memory_space<vmem>>, vector<1x8x128xf32>,
    %93 = vector.extract_strided_slice %20 {offsets = [12, 0], sizes = [1, 1024], strides = [1, 1]} : vector<16x1024xf32> to vector<1x1024xf32>
    %94 = vector.shape_cast %93 : vector<1x1024xf32> to vector<1024xf32>
    %95 = vector.shape_cast %94 : vector<1024xf32> to vector<8x128xf32>
    %c12 = arith.constant 12 : index
    %c0_44 = arith.constant 0 : index
    %c0_45 = arith.constant 0 : index
    %96 = vector.load %arg9[%c12, %c0_44, %c0_45] : memref<16x8x128xf32, #tpu.memory_space<vmem>>, vector<1x8x128xf32>
    %97 = vector.shape_cast %96 : vector<1x8x128xf32> to vector<8x128xf32>
    %98 = vector.shape_cast %95 : vector<8x128xf32> to vector<1x8x128xf32>
    tpu.vector_store %arg9[%c12, %c0_44, %c0_45], %98 {strides = array<i32>} : memref<16x8x128xf32, #tpu.memory_space<vmem>>, vector<1x8x128xf32>,
    %99 = vector.extract_strided_slice %20 {offsets = [13, 0], sizes = [1, 1024], strides = [1, 1]} : vector<16x1024xf32> to vector<1x1024xf32>
    %100 = vector.shape_cast %99 : vector<1x1024xf32> to vector<1024xf32>
    %101 = vector.shape_cast %100 : vector<1024xf32> to vector<8x128xf32>
    %c13 = arith.constant 13 : index
    %c0_46 = arith.constant 0 : index
    %c0_47 = arith.constant 0 : index
    %102 = vector.load %arg9[%c13, %c0_46, %c0_47] : memref<16x8x128xf32, #tpu.memory_space<vmem>>, vector<1x8x128xf32>
    %103 = vector.shape_cast %102 : vector<1x8x128xf32> to vector<8x128xf32>
    %104 = vector.shape_cast %101 : vector<8x128xf32> to vector<1x8x128xf32>
    tpu.vector_store %arg9[%c13, %c0_46, %c0_47], %104 {strides = array<i32>} : memref<16x8x128xf32, #tpu.memory_space<vmem>>, vector<1x8x128xf32>,
    %105 = vector.extract_strided_slice %20 {offsets = [14, 0], sizes = [1, 1024], strides = [1, 1]} : vector<16x1024xf32> to vector<1x1024xf32>
    %106 = vector.shape_cast %105 : vector<1x1024xf32> to vector<1024xf32>
    %107 = vector.shape_cast %106 : vector<1024xf32> to vector<8x128xf32>
    %c14 = arith.constant 14 : index
    %c0_48 = arith.constant 0 : index
    %c0_49 = arith.constant 0 : index
    %108 = vector.load %arg9[%c14, %c0_48, %c0_49] : memref<16x8x128xf32, #tpu.memory_space<vmem>>, vector<1x8x128xf32>
    %109 = vector.shape_cast %108 : vector<1x8x128xf32> to vector<8x128xf32>
    %110 = vector.shape_cast %107 : vector<8x128xf32> to vector<1x8x128xf32>
    tpu.vector_store %arg9[%c14, %c0_48, %c0_49], %110 {strides = array<i32>} : memref<16x8x128xf32, #tpu.memory_space<vmem>>, vector<1x8x128xf32>,
    %111 = vector.extract_strided_slice %20 {offsets = [15, 0], sizes = [1, 1024], strides = [1, 1]} : vector<16x1024xf32> to vector<1x1024xf32>
    %112 = vector.shape_cast %111 : vector<1x1024xf32> to vector<1024xf32>
    %113 = vector.shape_cast %112 : vector<1024xf32> to vector<8x128xf32>
    %c15 = arith.constant 15 : index
    %c0_50 = arith.constant 0 : index
    %c0_51 = arith.constant 0 : index
    %114 = vector.load %arg9[%c15, %c0_50, %c0_51] : memref<16x8x128xf32, #tpu.memory_space<vmem>>, vector<1x8x128xf32>
    %115 = vector.shape_cast %114 : vector<1x8x128xf32> to vector<8x128xf32>
    %116 = vector.shape_cast %113 : vector<8x128xf32> to vector<1x8x128xf32>
    tpu.vector_store %arg9[%c15, %c0_50, %c0_51], %116 {strides = array<i32>} : memref<16x8x128xf32, #tpu.memory_space<vmem>>, vector<1x8x128xf32>,
    %c0_52 = arith.constant 0 : index
    %c0_53 = arith.constant 0 : index
    %c0_54 = arith.constant 0 : index
    %117 = vector.load %arg9[%c0_52, %c0_53, %c0_54] : memref<16x8x128xf32, #tpu.memory_space<vmem>>, vector<16x8x128xf32>
    %118 = arith.truncf %117 : vector<16x8x128xf32> to vector<16x8x128xbf16>
    %c0_55 = arith.constant 0 : index
    %c0_56 = arith.constant 0 : index
    %c0_57 = arith.constant 0 : index
    %119 = vector.load %arg4[%c0_55, %c0_56, %c0_57] : memref<16x128x256xbf16, #tpu.memory_space<vmem>>, vector<16x128x256xbf16>
    %cst_58 = arith.constant dense<0.000000e+00> : vector<16x8x256xf32>
    %120 = tpu.matmul %118, %119, %cst_58 {dimension_numbers = #tpu.dot_dimension_numbers<[2], [1], [1], [2], [0, 0, 0, 1, 1, 2], [0], [0]>} : vector<16x8x128xbf16>, vector<16x128x256xbf16>, vector<16x8x256xf32> -> vector<16x8x256xf32>
    %121 = vector.extract_strided_slice %120 {offsets = [0, 0, 0], sizes = [1, 8, 256], strides = [1, 1, 1]} : vector<16x8x256xf32> to vector<1x8x256xf32>
    %122 = vector.shape_cast %121 : vector<1x8x256xf32> to vector<8x256xf32>
    %123 = vector.extract_strided_slice %120 {offsets = [1, 0, 0], sizes = [1, 8, 256], strides = [1, 1, 1]} : vector<16x8x256xf32> to vector<1x8x256xf32>
    %124 = vector.shape_cast %123 : vector<1x8x256xf32> to vector<8x256xf32>
    %125 = vector.extract_strided_slice %120 {offsets = [2, 0, 0], sizes = [1, 8, 256], strides = [1, 1, 1]} : vector<16x8x256xf32> to vector<1x8x256xf32>
    %126 = vector.shape_cast %125 : vector<1x8x256xf32> to vector<8x256xf32>
    %127 = vector.extract_strided_slice %120 {offsets = [3, 0, 0], sizes = [1, 8, 256], strides = [1, 1, 1]} : vector<16x8x256xf32> to vector<1x8x256xf32>
    %128 = vector.shape_cast %127 : vector<1x8x256xf32> to vector<8x256xf32>
    %129 = vector.extract_strided_slice %120 {offsets = [4, 0, 0], sizes = [1, 8, 256], strides = [1, 1, 1]} : vector<16x8x256xf32> to vector<1x8x256xf32>
    %130 = vector.shape_cast %129 : vector<1x8x256xf32> to vector<8x256xf32>
    %131 = vector.extract_strided_slice %120 {offsets = [5, 0, 0], sizes = [1, 8, 256], strides = [1, 1, 1]} : vector<16x8x256xf32> to vector<1x8x256xf32>
    %132 = vector.shape_cast %131 : vector<1x8x256xf32> to vector<8x256xf32>
    %133 = vector.extract_strided_slice %120 {offsets = [6, 0, 0], sizes = [1, 8, 256], strides = [1, 1, 1]} : vector<16x8x256xf32> to vector<1x8x256xf32>
    %134 = vector.shape_cast %133 : vector<1x8x256xf32> to vector<8x256xf32>
    %135 = vector.extract_strided_slice %120 {offsets = [7, 0, 0], sizes = [1, 8, 256], strides = [1, 1, 1]} : vector<16x8x256xf32> to vector<1x8x256xf32>
    %136 = vector.shape_cast %135 : vector<1x8x256xf32> to vector<8x256xf32>
    %137 = vector.extract_strided_slice %120 {offsets = [8, 0, 0], sizes = [1, 8, 256], strides = [1, 1, 1]} : vector<16x8x256xf32> to vector<1x8x256xf32>
    %138 = vector.shape_cast %137 : vector<1x8x256xf32> to vector<8x256xf32>
    %139 = vector.extract_strided_slice %120 {offsets = [9, 0, 0], sizes = [1, 8, 256], strides = [1, 1, 1]} : vector<16x8x256xf32> to vector<1x8x256xf32>
    %140 = vector.shape_cast %139 : vector<1x8x256xf32> to vector<8x256xf32>
    %141 = vector.extract_strided_slice %120 {offsets = [10, 0, 0], sizes = [1, 8, 256], strides = [1, 1, 1]} : vector<16x8x256xf32> to vector<1x8x256xf32>
    %142 = vector.shape_cast %141 : vector<1x8x256xf32> to vector<8x256xf32>
    %143 = vector.extract_strided_slice %120 {offsets = [11, 0, 0], sizes = [1, 8, 256], strides = [1, 1, 1]} : vector<16x8x256xf32> to vector<1x8x256xf32>
    %144 = vector.shape_cast %143 : vector<1x8x256xf32> to vector<8x256xf32>
    %145 = vector.extract_strided_slice %120 {offsets = [12, 0, 0], sizes = [1, 8, 256], strides = [1, 1, 1]} : vector<16x8x256xf32> to vector<1x8x256xf32>
    %146 = vector.shape_cast %145 : vector<1x8x256xf32> to vector<8x256xf32>
    %147 = vector.extract_strided_slice %120 {offsets = [13, 0, 0], sizes = [1, 8, 256], strides = [1, 1, 1]} : vector<16x8x256xf32> to vector<1x8x256xf32>
    %148 = vector.shape_cast %147 : vector<1x8x256xf32> to vector<8x256xf32>
    %149 = vector.extract_strided_slice %120 {offsets = [14, 0, 0], sizes = [1, 8, 256], strides = [1, 1, 1]} : vector<16x8x256xf32> to vector<1x8x256xf32>
    %150 = vector.shape_cast %149 : vector<1x8x256xf32> to vector<8x256xf32>
    %151 = vector.extract_strided_slice %120 {offsets = [15, 0, 0], sizes = [1, 8, 256], strides = [1, 1, 1]} : vector<16x8x256xf32> to vector<1x8x256xf32>
    %152 = vector.shape_cast %151 : vector<1x8x256xf32> to vector<8x256xf32>
    %153 = arith.addf %122, %124 : vector<8x256xf32>
    %154 = arith.addf %126, %128 : vector<8x256xf32>
    %155 = arith.addf %130, %132 : vector<8x256xf32>
    %156 = arith.addf %134, %136 : vector<8x256xf32>
    %157 = arith.addf %138, %140 : vector<8x256xf32>
    %158 = arith.addf %142, %144 : vector<8x256xf32>
    %159 = arith.addf %146, %148 : vector<8x256xf32>
    %160 = arith.addf %150, %152 : vector<8x256xf32>
    %161 = arith.addf %153, %154 : vector<8x256xf32>
    %162 = arith.addf %155, %156 : vector<8x256xf32>
    %163 = arith.addf %157, %158 : vector<8x256xf32>
    %164 = arith.addf %159, %160 : vector<8x256xf32>
    %165 = arith.addf %161, %162 : vector<8x256xf32>
    %166 = arith.addf %163, %164 : vector<8x256xf32>
    %167 = arith.addf %165, %166 : vector<8x256xf32>
    %c0_59 = arith.constant 0 : index
    %c0_60 = arith.constant 0 : index
    %168 = vector.load %arg5[%c0_59, %c0_60] : memref<1x256xf32, #tpu.memory_space<vmem>>, vector<1x256xf32>
    %169 = vector.broadcast %168 : vector<1x256xf32> to vector<8x256xf32>
    %170 = arith.addf %167, %169 : vector<8x256xf32>
    %cst_61 = arith.constant 0.000000e+00 : f32
    %171 = vector.broadcast %cst_61 : f32 to vector<8x256xf32>
    %172 = arith.maximumf %170, %171 : vector<8x256xf32>
    %c0_62 = arith.constant 0 : index
    %c0_63 = arith.constant 0 : index
    %173 = vector.load %arg6[%c0_62, %c0_63] : memref<256x128xf32, #tpu.memory_space<vmem>>, vector<256x128xf32>
    %cst_64 = arith.constant dense<0.000000e+00> : vector<8x128xf32>
    %174 = tpu.matmul %172, %173, %cst_64 {dimension_numbers = #tpu.dot_dimension_numbers<[1], [0], [0], [1], [0, 0, 1, 1], [], []>} : vector<8x256xf32>, vector<256x128xf32>, vector<8x128xf32> -> vector<8x128xf32>
    %c0_65 = arith.constant 0 : index
    %c0_66 = arith.constant 0 : index
    %175 = vector.load %arg7[%c0_65, %c0_66] : memref<1x128xf32, #tpu.memory_space<vmem>>, vector<1x128xf32>
    %176 = vector.broadcast %175 : vector<1x128xf32> to vector<8x128xf32>
    %177 = arith.addf %174, %176 : vector<8x128xf32>
    %c0_67 = arith.constant 0 : index
    %c0_68 = arith.constant 0 : index
    %178 = vector.load %arg8[%c0_67, %c0_68] : memref<8x128xf32, #tpu.memory_space<vmem>>, vector<8x128xf32>
    tpu.vector_store %arg8[%c0_67, %c0_68], %177 {strides = array<i32>} : memref<8x128xf32, #tpu.memory_space<vmem>>, vector<8x128xf32>,
    return
  }
  func.func @transform_0(%arg0: i32) -> (i32, i32, i32) {
    %c0_i32 = arith.constant 0 : i32
    %c0_i32_0 = arith.constant 0 : i32
    %c0_i32_1 = arith.constant 0 : i32
    return %c0_i32, %c0_i32_0, %arg0 : i32, i32, i32
  }
  func.func @transform_1(%arg0: i32) -> (i32, i32) {
    %c0_i32 = arith.constant 0 : i32
    %c0_i32_0 = arith.constant 0 : i32
    %c0_i32_1 = arith.constant 0 : i32
    return %c0_i32, %c0_i32_0 : i32, i32
  }
  func.func @transform_2(%arg0: i32) -> (i32, i32) {
    %c0_i32 = arith.constant 0 : i32
    %c0_i32_0 = arith.constant 0 : i32
    %c0_i32_1 = arith.constant 0 : i32
    return %c0_i32, %c0_i32_0 : i32, i32
  }
  func.func @transform_3(%arg0: i32) -> (i32, i32, i32) {
    %c0_i32 = arith.constant 0 : i32
    %c0_i32_0 = arith.constant 0 : i32
    %c0_i32_1 = arith.constant 0 : i32
    %c0_i32_2 = arith.constant 0 : i32
    return %c0_i32, %c0_i32_0, %c0_i32_1 : i32, i32, i32
  }
  func.func @transform_4(%arg0: i32) -> (i32, i32) {
    %c0_i32 = arith.constant 0 : i32
    %c0_i32_0 = arith.constant 0 : i32
    %c0_i32_1 = arith.constant 0 : i32
    return %c0_i32, %c0_i32_0 : i32, i32
  }
  func.func @transform_5(%arg0: i32) -> (i32, i32) {
    %c0_i32 = arith.constant 0 : i32
    %c0_i32_0 = arith.constant 0 : i32
    %c0_i32_1 = arith.constant 0 : i32
    return %c0_i32, %c0_i32_0 : i32, i32
  }
  func.func @transform_6(%arg0: i32) -> (i32, i32) {
    %c0_i32 = arith.constant 0 : i32
    %c0_i32_0 = arith.constant 0 : i32
    %c0_i32_1 = arith.constant 0 : i32
    return %c0_i32, %c0_i32_0 : i32, i32
  }
  func.func @transform_7(%arg0: i32) -> (i32, i32) {
    %c0_i32 = arith.constant 0 : i32
    %c0_i32_0 = arith.constant 0 : i32
    return %arg0, %c0_i32 : i32, i32
  }
}

</mosaic_0001>

<llo_original>
// kernel: one_cnn_forward.1
$region0: #{one_cnn_forward.1}
  #allocation0 [shape = 'u32[]', space=smem, size = 0x4, offset = 0x4, fixed_abs, tag = 'smem constant byte address 0x4 - core index']
  #allocation1 [shape = 'u32[72,128]{1,0:T(1,128)}', space=vmem, size = 0x9000, scoped, tag = 'internal scratch']
  #allocation2 [shape = 'f32[16,8,128]{2,1,0:T(8,128)}', space=vmem, size = 0x10000, scoped, tag = 'scratch operand']
  %s0 = inlined_call_operand.vmem [shape: bf16[4,256,1024], index: 0, kind: input, shape index: {}]
  %s1 = inlined_call_operand.vmem [shape: bf16[16,256], index: 1, kind: input, shape index: {}]
  %s2 = inlined_call_operand.vmem [shape: f32[16,1], index: 2, kind: input, shape index: {}]
  %s3 = inlined_call_operand.vmem [shape: bf16[16,128,256], index: 3, kind: input, shape index: {}]
  %s4 = inlined_call_operand.vmem [shape: f32[1,256], index: 4, kind: input, shape index: {}]
  %s5 = inlined_call_operand.vmem [shape: f32[256,128], index: 5, kind: input, shape index: {}]
  %s6 = inlined_call_operand.vmem [shape: f32[1,128], index: 6, kind: input, shape index: {}]
  %s7 = inlined_call_operand.vmem [shape: f32[8,128], index: 7, kind: output, shape index: {}]
  %s8 = sld [smem:[#allocation0]]
  $region38: #{one_cnn_forward.1} parent=0
    _
  %s10 = ssub.s32 1, %s8
  %s11 = scalar_select 0, %s10, %s8
  // Predicated region
  $region2: #{one_cnn_forward.1} parent=0 // pred_check
    _
  $region3: #{one_cnn_forward.1} parent=0 // pred_check_branch
    %13 = sbr.rel (0) target = $region5
  $region4: #{one_cnn_forward.1} parent=0 // pred_region
    _
  $region5: #{one_cnn_forward.1} parent=0 // pred_fallthru
    _
  // Predicated region
  $region6: #{one_cnn_forward.1} parent=0 // pred_check
    _
  $region7: #{one_cnn_forward.1} parent=0 // pred_check_branch
    %15 = sbr.rel (0) target = $region9
  $region8: #{one_cnn_forward.1} parent=0 // pred_region
    _
  $region9: #{one_cnn_forward.1} parent=0 // pred_fallthru
    _
  // Predicated region
  $region10: #{one_cnn_forward.1} parent=0 // pred_check
    _
  $region11: #{one_cnn_forward.1} parent=0 // pred_check_branch
    %17 = sbr.rel (0) target = $region13
  $region12: #{one_cnn_forward.1} parent=0 // pred_region
    _
  $region13: #{one_cnn_forward.1} parent=0 // pred_fallthru
    _
  // Predicated region
  $region14: #{one_cnn_forward.1} parent=0 // pred_check
    _
  $region15: #{one_cnn_forward.1} parent=0 // pred_check_branch
    %19 = sbr.rel (0) target = $region17
  $region16: #{one_cnn_forward.1} parent=0 // pred_region
    _
  $region17: #{one_cnn_forward.1} parent=0 // pred_fallthru
    _
  // Predicated region
  $region18: #{one_cnn_forward.1} parent=0 // pred_check
    _
  $region19: #{one_cnn_forward.1} parent=0 // pred_check_branch
    %21 = sbr.rel (0) target = $region21
  $region20: #{one_cnn_forward.1} parent=0 // pred_region
    _
  $region21: #{one_cnn_forward.1} parent=0 // pred_fallthru
    _
  // Predicated region
  $region22: #{one_cnn_forward.1} parent=0 // pred_check
    _
  $region23: #{one_cnn_forward.1} parent=0 // pred_check_branch
    %23 = sbr.rel (0) target = $region25
  $region24: #{one_cnn_forward.1} parent=0 // pred_region
    _
  $region25: #{one_cnn_forward.1} parent=0 // pred_fallthru
    _
  // Predicated region
  $region26: #{one_cnn_forward.1} parent=0 // pred_check
    _
  $region27: #{one_cnn_forward.1} parent=0 // pred_check_branch
    %25 = sbr.rel (0) target = $region29
  $region28: #{one_cnn_forward.1} parent=0 // pred_region
    _
  $region29: #{one_cnn_forward.1} parent=0 // pred_fallthru
    _
  %v26 = vld [vmem:[%s1] sm:$0xff]
  %v27 = vld [vmem:[%s1 + $0x8] sm:$0xff]
  %v28 = vld [vmem:[%s0] sm:$0xff]
  %v29 = vld [vmem:[%s0 + $0x8] sm:$0xff]
  %v30 = vld [vmem:[%s0 + $0x10] sm:$0xff]
  %v31 = vld [vmem:[%s0 + $0x18] sm:$0xff]
  %v32 = vld [vmem:[%s0 + $0x20] sm:$0xff]
  %v33 = vld [vmem:[%s0 + $0x28] sm:$0xff]
  %v34 = vld [vmem:[%s0 + $0x30] sm:$0xff]
  %v35 = vld [vmem:[%s0 + $0x38] sm:$0xff]
  %v36 = vld [vmem:[%s0 + $0x40] sm:$0xff]
  %v37 = vld [vmem:[%s0 + $0x48] sm:$0xff]
  %v38 = vld [vmem:[%s0 + $0x50] sm:$0xff]
  %v39 = vld [vmem:[%s0 + $0x58] sm:$0xff]
  %v40 = vld [vmem:[%s0 + $0x60] sm:$0xff]
  %v41 = vld [vmem:[%s0 + $0x68] sm:$0xff]
  %v42 = vld [vmem:[%s0 + $0x70] sm:$0xff]
  %v43 = vld [vmem:[%s0 + $0x78] sm:$0xff]
  %v44 = vld [vmem:[%s0 + $0x80] sm:$0xff]
  %v45 = vld [vmem:[%s0 + $0x88] sm:$0xff]
  %v46 = vld [vmem:[%s0 + $0x90] sm:$0xff]
  %v47 = vld [vmem:[%s0 + $0x98] sm:$0xff]
  %v48 = vld [vmem:[%s0 + $0xa0] sm:$0xff]
  %v49 = vld [vmem:[%s0 + $0xa8] sm:$0xff]
  %v50 = vld [vmem:[%s0 + $0xb0] sm:$0xff]
  %v51 = vld [vmem:[%s0 + $0xb8] sm:$0xff]
  %v52 = vld [vmem:[%s0 + $0xc0] sm:$0xff]
  %v53 = vld [vmem:[%s0 + $0xc8] sm:$0xff]
  %v54 = vld [vmem:[%s0 + $0xd0] sm:$0xff]
  %v55 = vld [vmem:[%s0 + $0xd8] sm:$0xff]
  %v56 = vld [vmem:[%s0 + $0xe0] sm:$0xff]
  %v57 = vld [vmem:[%s0 + $0xe8] sm:$0xff]
  %v58 = vld [vmem:[%s0 + $0xf0] sm:$0xff]
  %v59 = vld [vmem:[%s0 + $0xf8] sm:$0xff]
  %v60 = vld [vmem:[%s0 + $0x100] sm:$0xff]
  %v61 = vld [vmem:[%s0 + $0x108] sm:$0xff]
  %v62 = vld [vmem:[%s0 + $0x110] sm:$0xff]
  %v63 = vld [vmem:[%s0 + $0x118] sm:$0xff]
  %v64 = vld [vmem:[%s0 + $0x120] sm:$0xff]
  %v65 = vld [vmem:[%s0 + $0x128] sm:$0xff]
  %v66 = vld [vmem:[%s0 + $0x130] sm:$0xff]
  %v67 = vld [vmem:[%s0 + $0x138] sm:$0xff]
  %v68 = vld [vmem:[%s0 + $0x140] sm:$0xff]
  %v69 = vld [vmem:[%s0 + $0x148] sm:$0xff]
  %v70 = vld [vmem:[%s0 + $0x150] sm:$0xff]
  %v71 = vld [vmem:[%s0 + $0x158] sm:$0xff]
  %v72 = vld [vmem:[%s0 + $0x160] sm:$0xff]
  %v73 = vld [vmem:[%s0 + $0x168] sm:$0xff]
  %v74 = vld [vmem:[%s0 + $0x170] sm:$0xff]
  %v75 = vld [vmem:[%s0 + $0x178] sm:$0xff]
  %v76 = vld [vmem:[%s0 + $0x180] sm:$0xff]
  %v77 = vld [vmem:[%s0 + $0x188] sm:$0xff]
  %v78 = vld [vmem:[%s0 + $0x190] sm:$0xff]
  %v79 = vld [vmem:[%s0 + $0x198] sm:$0xff]
  %v80 = vld [vmem:[%s0 + $0x1a0] sm:$0xff]
  %v81 = vld [vmem:[%s0 + $0x1a8] sm:$0xff]
  %v82 = vld [vmem:[%s0 + $0x1b0] sm:$0xff]
  %v83 = vld [vmem:[%s0 + $0x1b8] sm:$0xff]
  %v84 = vld [vmem:[%s0 + $0x1c0] sm:$0xff]
  %v85 = vld [vmem:[%s0 + $0x1c8] sm:$0xff]
  %v86 = vld [vmem:[%s0 + $0x1d0] sm:$0xff]
  %v87 = vld [vmem:[%s0 + $0x1d8] sm:$0xff]
  %v88 = vld [vmem:[%s0 + $0x1e0] sm:$0xff]
  %v89 = vld [vmem:[%s0 + $0x1e8] sm:$0xff]
  %v90 = vld [vmem:[%s0 + $0x1f0] sm:$0xff]
  %v91 = vld [vmem:[%s0 + $0x1f8] sm:$0xff]
  %v92 = vld [vmem:[%s0 + $0x200] sm:$0xff]
  %v93 = vld [vmem:[%s0 + $0x208] sm:$0xff]
  %v94 = vld [vmem:[%s0 + $0x210] sm:$0xff]
  %v95 = vld [vmem:[%s0 + $0x218] sm:$0xff]
  %v96 = vld [vmem:[%s0 + $0x220] sm:$0xff]
  %v97 = vld [vmem:[%s0 + $0x228] sm:$0xff]
  %v98 = vld [vmem:[%s0 + $0x230] sm:$0xff]
  %v99 = vld [vmem:[%s0 + $0x238] sm:$0xff]
  %v100 = vld [vmem:[%s0 + $0x240] sm:$0xff]
  %v101 = vld [vmem:[%s0 + $0x248] sm:$0xff]
  %v102 = vld [vmem:[%s0 + $0x250] sm:$0xff]
  %v103 = vld [vmem:[%s0 + $0x258] sm:$0xff]
  %v104 = vld [vmem:[%s0 + $0x260] sm:$0xff]
  %v105 = vld [vmem:[%s0 + $0x268] sm:$0xff]
  %v106 = vld [vmem:[%s0 + $0x270] sm:$0xff]
  %v107 = vld [vmem:[%s0 + $0x278] sm:$0xff]
  %v108 = vld [vmem:[%s0 + $0x280] sm:$0xff]
  %v109 = vld [vmem:[%s0 + $0x288] sm:$0xff]
  %v110 = vld [vmem:[%s0 + $0x290] sm:$0xff]
  %v111 = vld [vmem:[%s0 + $0x298] sm:$0xff]
  %v112 = vld [vmem:[%s0 + $0x2a0] sm:$0xff]
  %v113 = vld [vmem:[%s0 + $0x2a8] sm:$0xff]
  %v114 = vld [vmem:[%s0 + $0x2b0] sm:$0xff]
  %v115 = vld [vmem:[%s0 + $0x2b8] sm:$0xff]
  %v116 = vld [vmem:[%s0 + $0x2c0] sm:$0xff]
  %v117 = vld [vmem:[%s0 + $0x2c8] sm:$0xff]
  %v118 = vld [vmem:[%s0 + $0x2d0] sm:$0xff]
  %v119 = vld [vmem:[%s0 + $0x2d8] sm:$0xff]
  %v120 = vld [vmem:[%s0 + $0x2e0] sm:$0xff]
  %v121 = vld [vmem:[%s0 + $0x2e8] sm:$0xff]
  %v122 = vld [vmem:[%s0 + $0x2f0] sm:$0xff]
  %v123 = vld [vmem:[%s0 + $0x2f8] sm:$0xff]
  %v124 = vld [vmem:[%s0 + $0x300] sm:$0xff]
  %v125 = vld [vmem:[%s0 + $0x308] sm:$0xff]
  %v126 = vld [vmem:[%s0 + $0x310] sm:$0xff]
  %v127 = vld [vmem:[%s0 + $0x318] sm:$0xff]
  %v128 = vld [vmem:[%s0 + $0x320] sm:$0xff]
  %v129 = vld [vmem:[%s0 + $0x328] sm:$0xff]
  %v130 = vld [vmem:[%s0 + $0x330] sm:$0xff]
  %v131 = vld [vmem:[%s0 + $0x338] sm:$0xff]
  %v132 = vld [vmem:[%s0 + $0x340] sm:$0xff]
  %v133 = vld [vmem:[%s0 + $0x348] sm:$0xff]
  %v134 = vld [vmem:[%s0 + $0x350] sm:$0xff]
  %v135 = vld [vmem:[%s0 + $0x358] sm:$0xff]
  %v136 = vld [vmem:[%s0 + $0x360] sm:$0xff]
  %v137 = vld [vmem:[%s0 + $0x368] sm:$0xff]
  %v138 = vld [vmem:[%s0 + $0x370] sm:$0xff]
  %v139 = vld [vmem:[%s0 + $0x378] sm:$0xff]
  %v140 = vld [vmem:[%s0 + $0x380] sm:$0xff]
  %v141 = vld [vmem:[%s0 + $0x388] sm:$0xff]
  %v142 = vld [vmem:[%s0 + $0x390] sm:$0xff]
  %v143 = vld [vmem:[%s0 + $0x398] sm:$0xff]
  %v144 = vld [vmem:[%s0 + $0x3a0] sm:$0xff]
  %v145 = vld [vmem:[%s0 + $0x3a8] sm:$0xff]
  %v146 = vld [vmem:[%s0 + $0x3b0] sm:$0xff]
  %v147 = vld [vmem:[%s0 + $0x3b8] sm:$0xff]
  %v148 = vld [vmem:[%s0 + $0x3c0] sm:$0xff]
  %v149 = vld [vmem:[%s0 + $0x3c8] sm:$0xff]
  %v150 = vld [vmem:[%s0 + $0x3d0] sm:$0xff]
  %v151 = vld [vmem:[%s0 + $0x3d8] sm:$0xff]
  %v152 = vld [vmem:[%s0 + $0x3e0] sm:$0xff]
  %v153 = vld [vmem:[%s0 + $0x3e8] sm:$0xff]
  %v154 = vld [vmem:[%s0 + $0x3f0] sm:$0xff]
  %v155 = vld [vmem:[%s0 + $0x3f8] sm:$0xff]
  %v158 = vunpack.c.l.b16 %v26
  %v159 = vunpack.c.h.b16 %v26
  %v160 = vunpack.c.l.b16 %v27
  %v161 = vunpack.c.h.b16 %v27
  %v162 = vpack.c.b16 %v160, %v158
  %v163 = vpack.c.b16 %v161, %v159
  %v294 = vunpack.c.l.b16 %v28
  %v295 = vunpack.c.h.b16 %v28
  %v296 = vunpack.c.l.b16 %v29
  %v297 = vunpack.c.h.b16 %v29
  %v298 = vunpack.c.l.b16 %v30
  %v299 = vunpack.c.h.b16 %v30
  %v300 = vunpack.c.l.b16 %v31
  %v301 = vunpack.c.h.b16 %v31
  %v302 = vunpack.c.l.b16 %v32
  %v303 = vunpack.c.h.b16 %v32
  %v304 = vunpack.c.l.b16 %v33
  %v305 = vunpack.c.h.b16 %v33
  %v306 = vunpack.c.l.b16 %v34
  %v307 = vunpack.c.h.b16 %v34
  %v308 = vunpack.c.l.b16 %v35
  %v309 = vunpack.c.h.b16 %v35
  %v310 = vunpack.c.l.b16 %v36
  %v311 = vunpack.c.h.b16 %v36
  %v312 = vunpack.c.l.b16 %v37
  %v313 = vunpack.c.h.b16 %v37
  %v314 = vunpack.c.l.b16 %v38
  %v315 = vunpack.c.h.b16 %v38
  %v316 = vunpack.c.l.b16 %v39
  %v317 = vunpack.c.h.b16 %v39
  %v318 = vunpack.c.l.b16 %v40
  %v319 = vunpack.c.h.b16 %v40
  %v320 = vunpack.c.l.b16 %v41
  %v321 = vunpack.c.h.b16 %v41
  %v322 = vunpack.c.l.b16 %v42
  %v323 = vunpack.c.h.b16 %v42
  %v324 = vunpack.c.l.b16 %v43
  %v325 = vunpack.c.h.b16 %v43
  %v326 = vunpack.c.l.b16 %v44
  %v327 = vunpack.c.h.b16 %v44
  %v328 = vunpack.c.l.b16 %v45
  %v329 = vunpack.c.h.b16 %v45
  %v330 = vunpack.c.l.b16 %v46
  %v331 = vunpack.c.h.b16 %v46
  %v332 = vunpack.c.l.b16 %v47
  %v333 = vunpack.c.h.b16 %v47
  %v334 = vunpack.c.l.b16 %v48
  %v335 = vunpack.c.h.b16 %v48
  %v336 = vunpack.c.l.b16 %v49
  %v337 = vunpack.c.h.b16 %v49
  %v338 = vunpack.c.l.b16 %v50
  %v339 = vunpack.c.h.b16 %v50
  %v340 = vunpack.c.l.b16 %v51
  %v341 = vunpack.c.h.b16 %v51
  %v342 = vunpack.c.l.b16 %v52
  %v343 = vunpack.c.h.b16 %v52
  %v344 = vunpack.c.l.b16 %v53
  %v345 = vunpack.c.h.b16 %v53
  %v346 = vunpack.c.l.b16 %v54
  %v347 = vunpack.c.h.b16 %v54
  %v348 = vunpack.c.l.b16 %v55
  %v349 = vunpack.c.h.b16 %v55
  %v350 = vunpack.c.l.b16 %v56
  %v351 = vunpack.c.h.b16 %v56
  %v352 = vunpack.c.l.b16 %v57
  %v353 = vunpack.c.h.b16 %v57
  %v354 = vunpack.c.l.b16 %v58
  %v355 = vunpack.c.h.b16 %v58
  %v356 = vunpack.c.l.b16 %v59
  %v357 = vunpack.c.h.b16 %v59
  %v358 = vunpack.c.l.b16 %v60
  %v359 = vunpack.c.h.b16 %v60
  %v360 = vunpack.c.l.b16 %v61
  %v361 = vunpack.c.h.b16 %v61
  %v362 = vunpack.c.l.b16 %v62
  %v363 = vunpack.c.h.b16 %v62
  %v364 = vunpack.c.l.b16 %v63
  %v365 = vunpack.c.h.b16 %v63
  %v366 = vunpack.c.l.b16 %v64
  %v367 = vunpack.c.h.b16 %v64
  %v368 = vunpack.c.l.b16 %v65
  %v369 = vunpack.c.h.b16 %v65
  %v370 = vunpack.c.l.b16 %v66
  %v371 = vunpack.c.h.b16 %v66
  %v372 = vunpack.c.l.b16 %v67
  %v373 = vunpack.c.h.b16 %v67
  %v374 = vunpack.c.l.b16 %v68
  %v375 = vunpack.c.h.b16 %v68
  %v376 = vunpack.c.l.b16 %v69
  %v377 = vunpack.c.h.b16 %v69
  %v378 = vunpack.c.l.b16 %v70
  %v379 = vunpack.c.h.b16 %v70
  %v380 = vunpack.c.l.b16 %v71
  %v381 = vunpack.c.h.b16 %v71
  %v382 = vunpack.c.l.b16 %v72
  %v383 = vunpack.c.h.b16 %v72
  %v384 = vunpack.c.l.b16 %v73
  %v385 = vunpack.c.h.b16 %v73
  %v386 = vunpack.c.l.b16 %v74
  %v387 = vunpack.c.h.b16 %v74
  %v388 = vunpack.c.l.b16 %v75
  %v389 = vunpack.c.h.b16 %v75
  %v390 = vunpack.c.l.b16 %v76
  %v391 = vunpack.c.h.b16 %v76
  %v392 = vunpack.c.l.b16 %v77
  %v393 = vunpack.c.h.b16 %v77
  %v394 = vunpack.c.l.b16 %v78
  %v395 = vunpack.c.h.b16 %v78
  %v396 = vunpack.c.l.b16 %v79
  %v397 = vunpack.c.h.b16 %v79
  %v398 = vunpack.c.l.b16 %v80
  %v399 = vunpack.c.h.b16 %v80
  %v400 = vunpack.c.l.b16 %v81
  %v401 = vunpack.c.h.b16 %v81
  %v402 = vunpack.c.l.b16 %v82
  %v403 = vunpack.c.h.b16 %v82
  %v404 = vunpack.c.l.b16 %v83
  %v405 = vunpack.c.h.b16 %v83
  %v406 = vunpack.c.l.b16 %v84
  %v407 = vunpack.c.h.b16 %v84
  %v408 = vunpack.c.l.b16 %v85
  %v409 = vunpack.c.h.b16 %v85
  %v410 = vunpack.c.l.b16 %v86
  %v411 = vunpack.c.h.b16 %v86
  %v412 = vunpack.c.l.b16 %v87
  %v413 = vunpack.c.h.b16 %v87
  %v414 = vunpack.c.l.b16 %v88
  %v415 = vunpack.c.h.b16 %v88
  %v416 = vunpack.c.l.b16 %v89
  %v417 = vunpack.c.h.b16 %v89
  %v418 = vunpack.c.l.b16 %v90
  %v419 = vunpack.c.h.b16 %v90
  %v420 = vunpack.c.l.b16 %v91
  %v421 = vunpack.c.h.b16 %v91
  %v422 = vunpack.c.l.b16 %v92
  %v423 = vunpack.c.h.b16 %v92
  %v424 = vunpack.c.l.b16 %v93
  %v425 = vunpack.c.h.b16 %v93
  %v426 = vunpack.c.l.b16 %v94
  %v427 = vunpack.c.h.b16 %v94
  %v428 = vunpack.c.l.b16 %v95
  %v429 = vunpack.c.h.b16 %v95
  %v430 = vunpack.c.l.b16 %v96
  %v431 = vunpack.c.h.b16 %v96
  %v432 = vunpack.c.l.b16 %v97
  %v433 = vunpack.c.h.b16 %v97
  %v434 = vunpack.c.l.b16 %v98
  %v435 = vunpack.c.h.b16 %v98
  %v436 = vunpack.c.l.b16 %v99
  %v437 = vunpack.c.h.b16 %v99
  %v438 = vunpack.c.l.b16 %v100
  %v439 = vunpack.c.h.b16 %v100
  %v440 = vunpack.c.l.b16 %v101
  %v441 = vunpack.c.h.b16 %v101
  %v442 = vunpack.c.l.b16 %v102
  %v443 = vunpack.c.h.b16 %v102
  %v444 = vunpack.c.l.b16 %v103
  %v445 = vunpack.c.h.b16 %v103
  %v446 = vunpack.c.l.b16 %v104
  %v447 = vunpack.c.h.b16 %v104
  %v448 = vunpack.c.l.b16 %v105
  %v449 = vunpack.c.h.b16 %v105
  %v450 = vunpack.c.l.b16 %v106
  %v451 = vunpack.c.h.b16 %v106
  %v452 = vunpack.c.l.b16 %v107
  %v453 = vunpack.c.h.b16 %v107
  %v454 = vunpack.c.l.b16 %v108
  %v455 = vunpack.c.h.b16 %v108
  %v456 = vunpack.c.l.b16 %v109
  %v457 = vunpack.c.h.b16 %v109
  %v458 = vunpack.c.l.b16 %v110
  %v459 = vunpack.c.h.b16 %v110
  %v460 = vunpack.c.l.b16 %v111
  %v461 = vunpack.c.h.b16 %v111
  %v462 = vunpack.c.l.b16 %v112
  %v463 = vunpack.c.h.b16 %v112
  %v464 = vunpack.c.l.b16 %v113
  %v465 = vunpack.c.h.b16 %v113
  %v466 = vunpack.c.l.b16 %v114
  %v467 = vunpack.c.h.b16 %v114
  %v468 = vunpack.c.l.b16 %v115
  %v469 = vunpack.c.h.b16 %v115
  %v470 = vunpack.c.l.b16 %v116
  %v471 = vunpack.c.h.b16 %v116
  %v472 = vunpack.c.l.b16 %v117
  %v473 = vunpack.c.h.b16 %v117
  %v474 = vunpack.c.l.b16 %v118
  %v475 = vunpack.c.h.b16 %v118
  %v476 = vunpack.c.l.b16 %v119
  %v477 = vunpack.c.h.b16 %v119
  %v478 = vunpack.c.l.b16 %v120
  %v479 = vunpack.c.h.b16 %v120
  %v480 = vunpack.c.l.b16 %v121
  %v481 = vunpack.c.h.b16 %v121
  %v482 = vunpack.c.l.b16 %v122
  %v483 = vunpack.c.h.b16 %v122
  %v484 = vunpack.c.l.b16 %v123
  %v485 = vunpack.c.h.b16 %v123
  %v486 = vunpack.c.l.b16 %v124
  %v487 = vunpack.c.h.b16 %v124
  %v488 = vunpack.c.l.b16 %v125
  %v489 = vunpack.c.h.b16 %v125
  %v490 = vunpack.c.l.b16 %v126
  %v491 = vunpack.c.h.b16 %v126
  %v492 = vunpack.c.l.b16 %v127
  %v493 = vunpack.c.h.b16 %v127
  %v494 = vunpack.c.l.b16 %v128
  %v495 = vunpack.c.h.b16 %v128
  %v496 = vunpack.c.l.b16 %v129
  %v497 = vunpack.c.h.b16 %v129
  %v498 = vunpack.c.l.b16 %v130
  %v499 = vunpack.c.h.b16 %v130
  %v500 = vunpack.c.l.b16 %v131
  %v501 = vunpack.c.h.b16 %v131
  %v502 = vunpack.c.l.b16 %v132
  %v503 = vunpack.c.h.b16 %v132
  %v504 = vunpack.c.l.b16 %v133
  %v505 = vunpack.c.h.b16 %v133
  %v506 = vunpack.c.l.b16 %v134
  %v507 = vunpack.c.h.b16 %v134
  %v508 = vunpack.c.l.b16 %v135
  %v509 = vunpack.c.h.b16 %v135
  %v510 = vunpack.c.l.b16 %v136
  %v511 = vunpack.c.h.b16 %v136
  %v512 = vunpack.c.l.b16 %v137
  %v513 = vunpack.c.h.b16 %v137
  %v514 = vunpack.c.l.b16 %v138
  %v515 = vunpack.c.h.b16 %v138
  %v516 = vunpack.c.l.b16 %v139
  %v517 = vunpack.c.h.b16 %v139
  %v518 = vunpack.c.l.b16 %v140
  %v519 = vunpack.c.h.b16 %v140
  %v520 = vunpack.c.l.b16 %v141
  %v521 = vunpack.c.h.b16 %v141
  %v522 = vunpack.c.l.b16 %v142
  %v523 = vunpack.c.h.b16 %v142
  %v524 = vunpack.c.l.b16 %v143
  %v525 = vunpack.c.h.b16 %v143
  %v526 = vunpack.c.l.b16 %v144
  %v527 = vunpack.c.h.b16 %v144
  %v528 = vunpack.c.l.b16 %v145
  %v529 = vunpack.c.h.b16 %v145
  %v530 = vunpack.c.l.b16 %v146
  %v531 = vunpack.c.h.b16 %v146
  %v532 = vunpack.c.l.b16 %v147
  %v533 = vunpack.c.h.b16 %v147
  %v534 = vunpack.c.l.b16 %v148
  %v535 = vunpack.c.h.b16 %v148
  %v536 = vunpack.c.l.b16 %v149
  %v537 = vunpack.c.h.b16 %v149
  %v538 = vunpack.c.l.b16 %v150
  %v539 = vunpack.c.h.b16 %v150
  %v540 = vunpack.c.l.b16 %v151
  %v541 = vunpack.c.h.b16 %v151
  %v542 = vunpack.c.l.b16 %v152
  %v543 = vunpack.c.h.b16 %v152
  %v544 = vunpack.c.l.b16 %v153
  %v545 = vunpack.c.h.b16 %v153
  %v546 = vunpack.c.l.b16 %v154
  %v547 = vunpack.c.h.b16 %v154
  %v548 = vunpack.c.l.b16 %v155
  %v549 = vunpack.c.h.b16 %v155
  %v550 = vpack.c.b16 %v302, %v294
  %v551 = vpack.c.b16 %v303, %v295
  %v552 = vpack.c.b16 %v304, %v296
  %v553 = vpack.c.b16 %v305, %v297
  %v554 = vpack.c.b16 %v306, %v298
  %v555 = vpack.c.b16 %v307, %v299
  %v556 = vpack.c.b16 %v308, %v300
  %v557 = vpack.c.b16 %v309, %v301
  %v558 = vpack.c.b16 %v318, %v310
  %v559 = vpack.c.b16 %v319, %v311
  %v560 = vpack.c.b16 %v320, %v312
  %v561 = vpack.c.b16 %v321, %v313
  %v562 = vpack.c.b16 %v322, %v314
  %v563 = vpack.c.b16 %v323, %v315
  %v564 = vpack.c.b16 %v324, %v316
  %v565 = vpack.c.b16 %v325, %v317
  %v566 = vpack.c.b16 %v334, %v326
  %v567 = vpack.c.b16 %v335, %v327
  %v568 = vpack.c.b16 %v336, %v328
  %v569 = vpack.c.b16 %v337, %v329
  %v570 = vpack.c.b16 %v338, %v330
  %v571 = vpack.c.b16 %v339, %v331
  %v572 = vpack.c.b16 %v340, %v332
  %v573 = vpack.c.b16 %v341, %v333
  %v574 = vpack.c.b16 %v350, %v342
  %v575 = vpack.c.b16 %v351, %v343
  %v576 = vpack.c.b16 %v352, %v344
  %v577 = vpack.c.b16 %v353, %v345
  %v578 = vpack.c.b16 %v354, %v346
  %v579 = vpack.c.b16 %v355, %v347
  %v580 = vpack.c.b16 %v356, %v348
  %v581 = vpack.c.b16 %v357, %v349
  %v582 = vpack.c.b16 %v366, %v358
  %v583 = vpack.c.b16 %v367, %v359
  %v584 = vpack.c.b16 %v368, %v360
  %v585 = vpack.c.b16 %v369, %v361
  %v586 = vpack.c.b16 %v370, %v362
  %v587 = vpack.c.b16 %v371, %v363
  %v588 = vpack.c.b16 %v372, %v364
  %v589 = vpack.c.b16 %v373, %v365
  %v590 = vpack.c.b16 %v382, %v374
  %v591 = vpack.c.b16 %v383, %v375
  %v592 = vpack.c.b16 %v384, %v376
  %v593 = vpack.c.b16 %v385, %v377
  %v594 = vpack.c.b16 %v386, %v378
  %v595 = vpack.c.b16 %v387, %v379
  %v596 = vpack.c.b16 %v388, %v380
  %v597 = vpack.c.b16 %v389, %v381
  %v598 = vpack.c.b16 %v398, %v390
  %v599 = vpack.c.b16 %v399, %v391
  %v600 = vpack.c.b16 %v400, %v392
  %v601 = vpack.c.b16 %v401, %v393
  %v602 = vpack.c.b16 %v402, %v394
  %v603 = vpack.c.b16 %v403, %v395
  %v604 = vpack.c.b16 %v404, %v396
  %v605 = vpack.c.b16 %v405, %v397
  %v606 = vpack.c.b16 %v414, %v406
  %v607 = vpack.c.b16 %v415, %v407
  %v608 = vpack.c.b16 %v416, %v408
  %v609 = vpack.c.b16 %v417, %v409
  %v610 = vpack.c.b16 %v418, %v410
  %v611 = vpack.c.b16 %v419, %v411
  %v612 = vpack.c.b16 %v420, %v412
  %v613 = vpack.c.b16 %v421, %v413
  %v614 = vpack.c.b16 %v430, %v422
  %v615 = vpack.c.b16 %v431, %v423
  %v616 = vpack.c.b16 %v432, %v424
  %v617 = vpack.c.b16 %v433, %v425
  %v618 = vpack.c.b16 %v434, %v426
  %v619 = vpack.c.b16 %v435, %v427
  %v620 = vpack.c.b16 %v436, %v428
  %v621 = vpack.c.b16 %v437, %v429
  %v622 = vpack.c.b16 %v446, %v438
  %v623 = vpack.c.b16 %v447, %v439
  %v624 = vpack.c.b16 %v448, %v440
  %v625 = vpack.c.b16 %v449, %v441
  %v626 = vpack.c.b16 %v450, %v442
  %v627 = vpack.c.b16 %v451, %v443
  %v628 = vpack.c.b16 %v452, %v444
  %v629 = vpack.c.b16 %v453, %v445
  %v630 = vpack.c.b16 %v462, %v454
  %v631 = vpack.c.b16 %v463, %v455
  %v632 = vpack.c.b16 %v464, %v456
  %v633 = vpack.c.b16 %v465, %v457
  %v634 = vpack.c.b16 %v466, %v458
  %v635 = vpack.c.b16 %v467, %v459
  %v636 = vpack.c.b16 %v468, %v460
  %v637 = vpack.c.b16 %v469, %v461
  %v638 = vpack.c.b16 %v478, %v470
  %v639 = vpack.c.b16 %v479, %v471
  %v640 = vpack.c.b16 %v480, %v472
  %v641 = vpack.c.b16 %v481, %v473
  %v642 = vpack.c.b16 %v482, %v474
  %v643 = vpack.c.b16 %v483, %v475
  %v644 = vpack.c.b16 %v484, %v476
  %v645 = vpack.c.b16 %v485, %v477
  %v646 = vpack.c.b16 %v494, %v486
  %v647 = vpack.c.b16 %v495, %v487
  %v648 = vpack.c.b16 %v496, %v488
  %v649 = vpack.c.b16 %v497, %v489
  %v650 = vpack.c.b16 %v498, %v490
  %v651 = vpack.c.b16 %v499, %v491
  %v652 = vpack.c.b16 %v500, %v492
  %v653 = vpack.c.b16 %v501, %v493
  %v654 = vpack.c.b16 %v510, %v502
  %v655 = vpack.c.b16 %v511, %v503
  %v656 = vpack.c.b16 %v512, %v504
  %v657 = vpack.c.b16 %v513, %v505
  %v658 = vpack.c.b16 %v514, %v506
  %v659 = vpack.c.b16 %v515, %v507
  %v660 = vpack.c.b16 %v516, %v508
  %v661 = vpack.c.b16 %v517, %v509
  %v662 = vpack.c.b16 %v526, %v518
  %v663 = vpack.c.b16 %v527, %v519
  %v664 = vpack.c.b16 %v528, %v520
  %v665 = vpack.c.b16 %v529, %v521
  %v666 = vpack.c.b16 %v530, %v522
  %v667 = vpack.c.b16 %v531, %v523
  %v668 = vpack.c.b16 %v532, %v524
  %v669 = vpack.c.b16 %v533, %v525
  %v670 = vpack.c.b16 %v542, %v534
  %v671 = vpack.c.b16 %v543, %v535
  %v672 = vpack.c.b16 %v544, %v536
  %v673 = vpack.c.b16 %v545, %v537
  %v674 = vpack.c.b16 %v546, %v538
  %v675 = vpack.c.b16 %v547, %v539
  %v676 = vpack.c.b16 %v548, %v540
  %v677 = vpack.c.b16 %v549, %v541
  %806 = vmatpush.bf16.msra.mxu0 %v606
  %807 = vmatpush.bf16.msra.mxu0 %v598
  %808 = vmatpush.bf16.msra.mxu0 %v590
  %809 = vmatpush.bf16.msra.mxu0 %v582
  %810 = vmatpush.bf16.msra.mxu0 %v574
  %811 = vmatpush.bf16.msra.mxu0 %v566
  %812 = vmatpush.bf16.msra.mxu0 %v558
  %813 = vmatpush.bf16.msra.mxu0 %v550
  %814 = vmatmul.bf16.gmra.mxu0 %v162
  %v815 = vpop.f32.mrf.mxu0
  %v816 = vadd.f32 0.0, %v815
  %v817 = vpop.f32.mrf.mxu0
  %v818 = vadd.f32 0.0, %v817
  %819 = vdwg.mxu0
  %820 = vmatpush.bf16.msra.mxu0 %v670
  %821 = vmatpush.bf16.msra.mxu0 %v662
  %822 = vmatpush.bf16.msra.mxu0 %v654
  %823 = vmatpush.bf16.msra.mxu0 %v646
  %824 = vmatpush.bf16.msra.mxu0 %v638
  %825 = vmatpush.bf16.msra.mxu0 %v630
  %826 = vmatpush.bf16.msra.mxu0 %v622
  %827 = vmatpush.bf16.msra.mxu0 %v614
  %828 = vmatmul.bf16.gmra.mxu0 %v163
  %v829 = vpop.f32.mrf.mxu0
  %v830 = vadd.f32 %v816, %v829
  %v831 = vpop.f32.mrf.mxu0
  %v832 = vadd.f32 %v818, %v831
  %833 = vdwg.mxu0
  %834 = vmatpush.bf16.msra.mxu0 %v607
  %835 = vmatpush.bf16.msra.mxu0 %v599
  %836 = vmatpush.bf16.msra.mxu0 %v591
  %837 = vmatpush.bf16.msra.mxu0 %v583
  %838 = vmatpush.bf16.msra.mxu0 %v575
  %839 = vmatpush.bf16.msra.mxu0 %v567
  %840 = vmatpush.bf16.msra.mxu0 %v559
  %841 = vmatpush.bf16.msra.mxu0 %v551
  %842 = vmatmul.bf16.gmra.mxu0 %v162
  %v843 = vpop.f32.mrf.mxu0
  %v844 = vadd.f32 0.0, %v843
  %v845 = vpop.f32.mrf.mxu0
  %v846 = vadd.f32 0.0, %v845
  %847 = vdwg.mxu0
  %848 = vmatpush.bf16.msra.mxu0 %v671
  %849 = vmatpush.bf16.msra.mxu0 %v663
  %850 = vmatpush.bf16.msra.mxu0 %v655
  %851 = vmatpush.bf16.msra.mxu0 %v647
  %852 = vmatpush.bf16.msra.mxu0 %v639
  %853 = vmatpush.bf16.msra.mxu0 %v631
  %854 = vmatpush.bf16.msra.mxu0 %v623
  %855 = vmatpush.bf16.msra.mxu0 %v615
  %856 = vmatmul.bf16.gmra.mxu0 %v163
  %v857 = vpop.f32.mrf.mxu0
  %v858 = vadd.f32 %v844, %v857
  %v859 = vpop.f32.mrf.mxu0
  %v860 = vadd.f32 %v846, %v859
  %861 = vdwg.mxu0
  %862 = vmatpush.bf16.msra.mxu0 %v608
  %863 = vmatpush.bf16.msra.mxu0 %v600
  %864 = vmatpush.bf16.msra.mxu0 %v592
  %865 = vmatpush.bf16.msra.mxu0 %v584
  %866 = vmatpush.bf16.msra.mxu0 %v576
  %867 = vmatpush.bf16.msra.mxu0 %v568
  %868 = vmatpush.bf16.msra.mxu0 %v560
  %869 = vmatpush.bf16.msra.mxu0 %v552
  %870 = vmatmul.bf16.gmra.mxu0 %v162
  %v871 = vpop.f32.mrf.mxu0
  %v872 = vadd.f32 0.0, %v871
  %v873 = vpop.f32.mrf.mxu0
  %v874 = vadd.f32 0.0, %v873
  %875 = vdwg.mxu0
  %876 = vmatpush.bf16.msra.mxu0 %v672
  %877 = vmatpush.bf16.msra.mxu0 %v664
  %878 = vmatpush.bf16.msra.mxu0 %v656
  %879 = vmatpush.bf16.msra.mxu0 %v648
  %880 = vmatpush.bf16.msra.mxu0 %v640
  %881 = vmatpush.bf16.msra.mxu0 %v632
  %882 = vmatpush.bf16.msra.mxu0 %v624
  %883 = vmatpush.bf16.msra.mxu0 %v616
  %884 = vmatmul.bf16.gmra.mxu0 %v163
  %v885 = vpop.f32.mrf.mxu0
  %v886 = vadd.f32 %v872, %v885
  %v887 = vpop.f32.mrf.mxu0
  %v888 = vadd.f32 %v874, %v887
  %889 = vdwg.mxu0
  %890 = vmatpush.bf16.msra.mxu0 %v609
  %891 = vmatpush.bf16.msra.mxu0 %v601
  %892 = vmatpush.bf16.msra.mxu0 %v593
  %893 = vmatpush.bf16.msra.mxu0 %v585
  %894 = vmatpush.bf16.msra.mxu0 %v577
  %895 = vmatpush.bf16.msra.mxu0 %v569
  %896 = vmatpush.bf16.msra.mxu0 %v561
  %897 = vmatpush.bf16.msra.mxu0 %v553
  %898 = vmatmul.bf16.gmra.mxu0 %v162
  %v899 = vpop.f32.mrf.mxu0
  %v900 = vadd.f32 0.0, %v899
  %v901 = vpop.f32.mrf.mxu0
  %v902 = vadd.f32 0.0, %v901
  %903 = vdwg.mxu0
  %904 = vmatpush.bf16.msra.mxu0 %v673
  %905 = vmatpush.bf16.msra.mxu0 %v665
  %906 = vmatpush.bf16.msra.mxu0 %v657
  %907 = vmatpush.bf16.msra.mxu0 %v649
  %908 = vmatpush.bf16.msra.mxu0 %v641
  %909 = vmatpush.bf16.msra.mxu0 %v633
  %910 = vmatpush.bf16.msra.mxu0 %v625
  %911 = vmatpush.bf16.msra.mxu0 %v617
  %912 = vmatmul.bf16.gmra.mxu0 %v163
  %v913 = vpop.f32.mrf.mxu0
  %v914 = vadd.f32 %v900, %v913
  %v915 = vpop.f32.mrf.mxu0
  %v916 = vadd.f32 %v902, %v915
  %917 = vdwg.mxu0
  %918 = vmatpush.bf16.msra.mxu0 %v610
  %919 = vmatpush.bf16.msra.mxu0 %v602
  %920 = vmatpush.bf16.msra.mxu0 %v594
  %921 = vmatpush.bf16.msra.mxu0 %v586
  %922 = vmatpush.bf16.msra.mxu0 %v578
  %923 = vmatpush.bf16.msra.mxu0 %v570
  %924 = vmatpush.bf16.msra.mxu0 %v562
  %925 = vmatpush.bf16.msra.mxu0 %v554
  %926 = vmatmul.bf16.gmra.mxu0 %v162
  %v927 = vpop.f32.mrf.mxu0
  %v928 = vadd.f32 0.0, %v927
  %v929 = vpop.f32.mrf.mxu0
  %v930 = vadd.f32 0.0, %v929
  %931 = vdwg.mxu0
  %932 = vmatpush.bf16.msra.mxu0 %v674
  %933 = vmatpush.bf16.msra.mxu0 %v666
  %934 = vmatpush.bf16.msra.mxu0 %v658
  %935 = vmatpush.bf16.msra.mxu0 %v650
  %936 = vmatpush.bf16.msra.mxu0 %v642
  %937 = vmatpush.bf16.msra.mxu0 %v634
  %938 = vmatpush.bf16.msra.mxu0 %v626
  %939 = vmatpush.bf16.msra.mxu0 %v618
  %940 = vmatmul.bf16.gmra.mxu0 %v163
  %v941 = vpop.f32.mrf.mxu0
  %v942 = vadd.f32 %v928, %v941
  %v943 = vpop.f32.mrf.mxu0
  %v944 = vadd.f32 %v930, %v943
  %945 = vdwg.mxu0
  %946 = vmatpush.bf16.msra.mxu0 %v611
  %947 = vmatpush.bf16.msra.mxu0 %v603
  %948 = vmatpush.bf16.msra.mxu0 %v595
  %949 = vmatpush.bf16.msra.mxu0 %v587
  %950 = vmatpush.bf16.msra.mxu0 %v579
  %951 = vmatpush.bf16.msra.mxu0 %v571
  %952 = vmatpush.bf16.msra.mxu0 %v563
  %953 = vmatpush.bf16.msra.mxu0 %v555
  %954 = vmatmul.bf16.gmra.mxu0 %v162
  %v955 = vpop.f32.mrf.mxu0
  %v956 = vadd.f32 0.0, %v955
  %v957 = vpop.f32.mrf.mxu0
  %v958 = vadd.f32 0.0, %v957
  %959 = vdwg.mxu0
  %960 = vmatpush.bf16.msra.mxu0 %v675
  %961 = vmatpush.bf16.msra.mxu0 %v667
  %962 = vmatpush.bf16.msra.mxu0 %v659
  %963 = vmatpush.bf16.msra.mxu0 %v651
  %964 = vmatpush.bf16.msra.mxu0 %v643
  %965 = vmatpush.bf16.msra.mxu0 %v635
  %966 = vmatpush.bf16.msra.mxu0 %v627
  %967 = vmatpush.bf16.msra.mxu0 %v619
  %968 = vmatmul.bf16.gmra.mxu0 %v163
  %v969 = vpop.f32.mrf.mxu0
  %v970 = vadd.f32 %v956, %v969
  %v971 = vpop.f32.mrf.mxu0
  %v972 = vadd.f32 %v958, %v971
  %973 = vdwg.mxu0
  %974 = vmatpush.bf16.msra.mxu0 %v612
  %975 = vmatpush.bf16.msra.mxu0 %v604
  %976 = vmatpush.bf16.msra.mxu0 %v596
  %977 = vmatpush.bf16.msra.mxu0 %v588
  %978 = vmatpush.bf16.msra.mxu0 %v580
  %979 = vmatpush.bf16.msra.mxu0 %v572
  %980 = vmatpush.bf16.msra.mxu0 %v564
  %981 = vmatpush.bf16.msra.mxu0 %v556
  %982 = vmatmul.bf16.gmra.mxu0 %v162
  %v983 = vpop.f32.mrf.mxu0
  %v984 = vadd.f32 0.0, %v983
  %v985 = vpop.f32.mrf.mxu0
  %v986 = vadd.f32 0.0, %v985
  %987 = vdwg.mxu0
  %988 = vmatpush.bf16.msra.mxu0 %v676
  %989 = vmatpush.bf16.msra.mxu0 %v668
  %990 = vmatpush.bf16.msra.mxu0 %v660
  %991 = vmatpush.bf16.msra.mxu0 %v652
  %992 = vmatpush.bf16.msra.mxu0 %v644
  %993 = vmatpush.bf16.msra.mxu0 %v636
  %994 = vmatpush.bf16.msra.mxu0 %v628
  %995 = vmatpush.bf16.msra.mxu0 %v620
  %996 = vmatmul.bf16.gmra.mxu0 %v163
  %v997 = vpop.f32.mrf.mxu0
  %v998 = vadd.f32 %v984, %v997
  %v999 = vpop.f32.mrf.mxu0
  %v1000 = vadd.f32 %v986, %v999
  %1001 = vdwg.mxu0
  %1002 = vmatpush.bf16.msra.mxu0 %v613
  %1003 = vmatpush.bf16.msra.mxu0 %v605
  %1004 = vmatpush.bf16.msra.mxu0 %v597
  %1005 = vmatpush.bf16.msra.mxu0 %v589
  %1006 = vmatpush.bf16.msra.mxu0 %v581
  %1007 = vmatpush.bf16.msra.mxu0 %v573
  %1008 = vmatpush.bf16.msra.mxu0 %v565
  %1009 = vmatpush.bf16.msra.mxu0 %v557
  %1010 = vmatmul.bf16.gmra.mxu0 %v162
  %v1011 = vpop.f32.mrf.mxu0
  %v1012 = vadd.f32 0.0, %v1011
  %v1013 = vpop.f32.mrf.mxu0
  %v1014 = vadd.f32 0.0, %v1013
  %1015 = vdwg.mxu0
  %1016 = vmatpush.bf16.msra.mxu0 %v677
  %1017 = vmatpush.bf16.msra.mxu0 %v669
  %1018 = vmatpush.bf16.msra.mxu0 %v661
  %1019 = vmatpush.bf16.msra.mxu0 %v653
  %1020 = vmatpush.bf16.msra.mxu0 %v645
  %1021 = vmatpush.bf16.msra.mxu0 %v637
  %1022 = vmatpush.bf16.msra.mxu0 %v629
  %1023 = vmatpush.bf16.msra.mxu0 %v621
  %1024 = vmatmul.bf16.gmra.mxu0 %v163
  %v1025 = vpop.f32.mrf.mxu0
  %v1026 = vadd.f32 %v1012, %v1025
  %v1027 = vpop.f32.mrf.mxu0
  %v1028 = vadd.f32 %v1014, %v1027
  %1029 = vdwg.mxu0
  %s1030 = scalar_lea.vmem %s0, 1024
  %v1031 = vld [vmem:[%s1030] sm:$0xff]
  %v1032 = vld [vmem:[%s1030 + $0x8] sm:$0xff]
  %v1033 = vld [vmem:[%s1030 + $0x10] sm:$0xff]
  %v1034 = vld [vmem:[%s1030 + $0x18] sm:$0xff]
  %v1035 = vld [vmem:[%s1030 + $0x20] sm:$0xff]
  %v1036 = vld [vmem:[%s1030 + $0x28] sm:$0xff]
  %v1037 = vld [vmem:[%s1030 + $0x30] sm:$0xff]
  %v1038 = vld [vmem:[%s1030 + $0x38] sm:$0xff]
  %v1039 = vld [vmem:[%s1030 + $0x40] sm:$0xff]
  %v1040 = vld [vmem:[%s1030 + $0x48] sm:$0xff]
  %v1041 = vld [vmem:[%s1030 + $0x50] sm:$0xff]
  %v1042 = vld [vmem:[%s1030 + $0x58] sm:$0xff]
  %v1043 = vld [vmem:[%s1030 + $0x60] sm:$0xff]
  %v1044 = vld [vmem:[%s1030 + $0x68] sm:$0xff]
  %v1045 = vld [vmem:[%s1030 + $0x70] sm:$0xff]
  %v1046 = vld [vmem:[%s1030 + $0x78] sm:$0xff]
  %v1047 = vld [vmem:[%s1030 + $0x80] sm:$0xff]
  %v1048 = vld [vmem:[%s1030 + $0x88] sm:$0xff]
  %v1049 = vld [vmem:[%s1030 + $0x90] sm:$0xff]
  %v1050 = vld [vmem:[%s1030 + $0x98] sm:$0xff]
  %v1051 = vld [vmem:[%s1030 + $0xa0] sm:$0xff]
  %v1052 = vld [vmem:[%s1030 + $0xa8] sm:$0xff]
  %v1053 = vld [vmem:[%s1030 + $0xb0] sm:$0xff]
  %v1054 = vld [vmem:[%s1030 + $0xb8] sm:$0xff]
  %v1055 = vld [vmem:[%s1030 + $0xc0] sm:$0xff]
  %v1056 = vld [vmem:[%s1030 + $0xc8] sm:$0xff]
  %v1057 = vld [vmem:[%s1030 + $0xd0] sm:$0xff]
  %v1058 = vld [vmem:[%s1030 + $0xd8] sm:$0xff]
  %v1059 = vld [vmem:[%s1030 + $0xe0] sm:$0xff]
  %v1060 = vld [vmem:[%s1030 + $0xe8] sm:$0xff]
  %v1061 = vld [vmem:[%s1030 + $0xf0] sm:$0xff]
  %v1062 = vld [vmem:[%s1030 + $0xf8] sm:$0xff]
  %v1063 = vld [vmem:[%s1030 + $0x100] sm:$0xff]
  %v1064 = vld [vmem:[%s1030 + $0x108] sm:$0xff]
  %v1065 = vld [vmem:[%s1030 + $0x110] sm:$0xff]
  %v1066 = vld [vmem:[%s1030 + $0x118] sm:$0xff]
  %v1067 = vld [vmem:[%s1030 + $0x120] sm:$0xff]
  %v1068 = vld [vmem:[%s1030 + $0x128] sm:$0xff]
  %v1069 = vld [vmem:[%s1030 + $0x130] sm:$0xff]
  %v1070 = vld [vmem:[%s1030 + $0x138] sm:$0xff]
  %v1071 = vld [vmem:[%s1030 + $0x140] sm:$0xff]
  %v1072 = vld [vmem:[%s1030 + $0x148] sm:$0xff]
  %v1073 = vld [vmem:[%s1030 + $0x150] sm:$0xff]
  %v1074 = vld [vmem:[%s1030 + $0x158] sm:$0xff]
  %v1075 = vld [vmem:[%s1030 + $0x160] sm:$0xff]
  %v1076 = vld [vmem:[%s1030 + $0x168] sm:$0xff]
  %v1077 = vld [vmem:[%s1030 + $0x170] sm:$0xff]
  %v1078 = vld [vmem:[%s1030 + $0x178] sm:$0xff]
  %v1079 = vld [vmem:[%s1030 + $0x180] sm:$0xff]
  %v1080 = vld [vmem:[%s1030 + $0x188] sm:$0xff]
  %v1081 = vld [vmem:[%s1030 + $0x190] sm:$0xff]
  %v1082 = vld [vmem:[%s1030 + $0x198] sm:$0xff]
  %v1083 = vld [vmem:[%s1030 + $0x1a0] sm:$0xff]
  %v1084 = vld [vmem:[%s1030 + $0x1a8] sm:$0xff]
  %v1085 = vld [vmem:[%s1030 + $0x1b0] sm:$0xff]
  %v1086 = vld [vmem:[%s1030 + $0x1b8] sm:$0xff]
  %v1087 = vld [vmem:[%s1030 + $0x1c0] sm:$0xff]
  %v1088 = vld [vmem:[%s1030 + $0x1c8] sm:$0xff]
  %v1089 = vld [vmem:[%s1030 + $0x1d0] sm:$0xff]
  %v1090 = vld [vmem:[%s1030 + $0x1d8] sm:$0xff]
  %v1091 = vld [vmem:[%s1030 + $0x1e0] sm:$0xff]
  %v1092 = vld [vmem:[%s1030 + $0x1e8] sm:$0xff]
  %v1093 = vld [vmem:[%s1030 + $0x1f0] sm:$0xff]
  %v1094 = vld [vmem:[%s1030 + $0x1f8] sm:$0xff]
  %v1095 = vld [vmem:[%s1030 + $0x200] sm:$0xff]
  %v1096 = vld [vmem:[%s1030 + $0x208] sm:$0xff]
  %v1097 = vld [vmem:[%s1030 + $0x210] sm:$0xff]
  %v1098 = vld [vmem:[%s1030 + $0x218] sm:$0xff]
  %v1099 = vld [vmem:[%s1030 + $0x220] sm:$0xff]
  %v1100 = vld [vmem:[%s1030 + $0x228] sm:$0xff]
  %v1101 = vld [vmem:[%s1030 + $0x230] sm:$0xff]
  %v1102 = vld [vmem:[%s1030 + $0x238] sm:$0xff]
  %v1103 = vld [vmem:[%s1030 + $0x240] sm:$0xff]
  %v1104 = vld [vmem:[%s1030 + $0x248] sm:$0xff]
  %v1105 = vld [vmem:[%s1030 + $0x250] sm:$0xff]
  %v1106 = vld [vmem:[%s1030 + $0x258] sm:$0xff]
  %v1107 = vld [vmem:[%s1030 + $0x260] sm:$0xff]
  %v1108 = vld [vmem:[%s1030 + $0x268] sm:$0xff]
  %v1109 = vld [vmem:[%s1030 + $0x270] sm:$0xff]
  %v1110 = vld [vmem:[%s1030 + $0x278] sm:$0xff]
  %v1111 = vld [vmem:[%s1030 + $0x280] sm:$0xff]
  %v1112 = vld [vmem:[%s1030 + $0x288] sm:$0xff]
  %v1113 = vld [vmem:[%s1030 + $0x290] sm:$0xff]
  %v1114 = vld [vmem:[%s1030 + $0x298] sm:$0xff]
  %v1115 = vld [vmem:[%s1030 + $0x2a0] sm:$0xff]
  %v1116 = vld [vmem:[%s1030 + $0x2a8] sm:$0xff]
  %v1117 = vld [vmem:[%s1030 + $0x2b0] sm:$0xff]
  %v1118 = vld [vmem:[%s1030 + $0x2b8] sm:$0xff]
  %v1119 = vld [vmem:[%s1030 + $0x2c0] sm:$0xff]
  %v1120 = vld [vmem:[%s1030 + $0x2c8] sm:$0xff]
  %v1121 = vld [vmem:[%s1030 + $0x2d0] sm:$0xff]
  %v1122 = vld [vmem:[%s1030 + $0x2d8] sm:$0xff]
  %v1123 = vld [vmem:[%s1030 + $0x2e0] sm:$0xff]
  %v1124 = vld [vmem:[%s1030 + $0x2e8] sm:$0xff]
  %v1125 = vld [vmem:[%s1030 + $0x2f0] sm:$0xff]
  %v1126 = vld [vmem:[%s1030 + $0x2f8] sm:$0xff]
  %v1127 = vld [vmem:[%s1030 + $0x300] sm:$0xff]
  %v1128 = vld [vmem:[%s1030 + $0x308] sm:$0xff]
  %v1129 = vld [vmem:[%s1030 + $0x310] sm:$0xff]
  %v1130 = vld [vmem:[%s1030 + $0x318] sm:$0xff]
  %v1131 = vld [vmem:[%s1030 + $0x320] sm:$0xff]
  %v1132 = vld [vmem:[%s1030 + $0x328] sm:$0xff]
  %v1133 = vld [vmem:[%s1030 + $0x330] sm:$0xff]
  %v1134 = vld [vmem:[%s1030 + $0x338] sm:$0xff]
  %v1135 = vld [vmem:[%s1030 + $0x340] sm:$0xff]
  %v1136 = vld [vmem:[%s1030 + $0x348] sm:$0xff]
  %v1137 = vld [vmem:[%s1030 + $0x350] sm:$0xff]
  %v1138 = vld [vmem:[%s1030 + $0x358] sm:$0xff]
  %v1139 = vld [vmem:[%s1030 + $0x360] sm:$0xff]
  %v1140 = vld [vmem:[%s1030 + $0x368] sm:$0xff]
  %v1141 = vld [vmem:[%s1030 + $0x370] sm:$0xff]
  %v1142 = vld [vmem:[%s1030 + $0x378] sm:$0xff]
  %v1143 = vld [vmem:[%s1030 + $0x380] sm:$0xff]
  %v1144 = vld [vmem:[%s1030 + $0x388] sm:$0xff]
  %v1145 = vld [vmem:[%s1030 + $0x390] sm:$0xff]
  %v1146 = vld [vmem:[%s1030 + $0x398] sm:$0xff]
  %v1147 = vld [vmem:[%s1030 + $0x3a0] sm:$0xff]
  %v1148 = vld [vmem:[%s1030 + $0x3a8] sm:$0xff]
  %v1149 = vld [vmem:[%s1030 + $0x3b0] sm:$0xff]
  %v1150 = vld [vmem:[%s1030 + $0x3b8] sm:$0xff]
  %v1151 = vld [vmem:[%s1030 + $0x3c0] sm:$0xff]
  %v1152 = vld [vmem:[%s1030 + $0x3c8] sm:$0xff]
  %v1153 = vld [vmem:[%s1030 + $0x3d0] sm:$0xff]
  %v1154 = vld [vmem:[%s1030 + $0x3d8] sm:$0xff]
  %v1155 = vld [vmem:[%s1030 + $0x3e0] sm:$0xff]
  %v1156 = vld [vmem:[%s1030 + $0x3e8] sm:$0xff]
  %v1157 = vld [vmem:[%s1030 + $0x3f0] sm:$0xff]
  %v1158 = vld [vmem:[%s1030 + $0x3f8] sm:$0xff]
  %v1287 = vunpack.c.l.b16 %v1031
  %v1288 = vunpack.c.h.b16 %v1031
  %v1289 = vunpack.c.l.b16 %v1032
  %v1290 = vunpack.c.h.b16 %v1032
  %v1291 = vunpack.c.l.b16 %v1033
  %v1292 = vunpack.c.h.b16 %v1033
  %v1293 = vunpack.c.l.b16 %v1034
  %v1294 = vunpack.c.h.b16 %v1034
  %v1295 = vunpack.c.l.b16 %v1035
  %v1296 = vunpack.c.h.b16 %v1035
  %v1297 = vunpack.c.l.b16 %v1036
  %v1298 = vunpack.c.h.b16 %v1036
  %v1299 = vunpack.c.l.b16 %v1037
  %v1300 = vunpack.c.h.b16 %v1037
  %v1301 = vunpack.c.l.b16 %v1038
  %v1302 = vunpack.c.h.b16 %v1038
  %v1303 = vunpack.c.l.b16 %v1039
  %v1304 = vunpack.c.h.b16 %v1039
  %v1305 = vunpack.c.l.b16 %v1040
  %v1306 = vunpack.c.h.b16 %v1040
  %v1307 = vunpack.c.l.b16 %v1041
  %v1308 = vunpack.c.h.b16 %v1041
  %v1309 = vunpack.c.l.b16 %v1042
  %v1310 = vunpack.c.h.b16 %v1042
  %v1311 = vunpack.c.l.b16 %v1043
  %v1312 = vunpack.c.h.b16 %v1043
  %v1313 = vunpack.c.l.b16 %v1044
  %v1314 = vunpack.c.h.b16 %v1044
  %v1315 = vunpack.c.l.b16 %v1045
  %v1316 = vunpack.c.h.b16 %v1045
  %v1317 = vunpack.c.l.b16 %v1046
  %v1318 = vunpack.c.h.b16 %v1046
  %v1319 = vunpack.c.l.b16 %v1047
  %v1320 = vunpack.c.h.b16 %v1047
  %v1321 = vunpack.c.l.b16 %v1048
  %v1322 = vunpack.c.h.b16 %v1048
  %v1323 = vunpack.c.l.b16 %v1049
  %v1324 = vunpack.c.h.b16 %v1049
  %v1325 = vunpack.c.l.b16 %v1050
  %v1326 = vunpack.c.h.b16 %v1050
  %v1327 = vunpack.c.l.b16 %v1051
  %v1328 = vunpack.c.h.b16 %v1051
  %v1329 = vunpack.c.l.b16 %v1052
  %v1330 = vunpack.c.h.b16 %v1052
  %v1331 = vunpack.c.l.b16 %v1053
  %v1332 = vunpack.c.h.b16 %v1053
  %v1333 = vunpack.c.l.b16 %v1054
  %v1334 = vunpack.c.h.b16 %v1054
  %v1335 = vunpack.c.l.b16 %v1055
  %v1336 = vunpack.c.h.b16 %v1055
  %v1337 = vunpack.c.l.b16 %v1056
  %v1338 = vunpack.c.h.b16 %v1056
  %v1339 = vunpack.c.l.b16 %v1057
  %v1340 = vunpack.c.h.b16 %v1057
  %v1341 = vunpack.c.l.b16 %v1058
  %v1342 = vunpack.c.h.b16 %v1058
  %v1343 = vunpack.c.l.b16 %v1059
  %v1344 = vunpack.c.h.b16 %v1059
  %v1345 = vunpack.c.l.b16 %v1060
  %v1346 = vunpack.c.h.b16 %v1060
  %v1347 = vunpack.c.l.b16 %v1061
  %v1348 = vunpack.c.h.b16 %v1061
  %v1349 = vunpack.c.l.b16 %v1062
  %v1350 = vunpack.c.h.b16 %v1062
  %v1351 = vunpack.c.l.b16 %v1063
  %v1352 = vunpack.c.h.b16 %v1063
  %v1353 = vunpack.c.l.b16 %v1064
  %v1354 = vunpack.c.h.b16 %v1064
  %v1355 = vunpack.c.l.b16 %v1065
  %v1356 = vunpack.c.h.b16 %v1065
  %v1357 = vunpack.c.l.b16 %v1066
  %v1358 = vunpack.c.h.b16 %v1066
  %v1359 = vunpack.c.l.b16 %v1067
  %v1360 = vunpack.c.h.b16 %v1067
  %v1361 = vunpack.c.l.b16 %v1068
  %v1362 = vunpack.c.h.b16 %v1068
  %v1363 = vunpack.c.l.b16 %v1069
  %v1364 = vunpack.c.h.b16 %v1069
  %v1365 = vunpack.c.l.b16 %v1070
  %v1366 = vunpack.c.h.b16 %v1070
  %v1367 = vunpack.c.l.b16 %v1071
  %v1368 = vunpack.c.h.b16 %v1071
  %v1369 = vunpack.c.l.b16 %v1072
  %v1370 = vunpack.c.h.b16 %v1072
  %v1371 = vunpack.c.l.b16 %v1073
  %v1372 = vunpack.c.h.b16 %v1073
  %v1373 = vunpack.c.l.b16 %v1074
  %v1374 = vunpack.c.h.b16 %v1074
  %v1375 = vunpack.c.l.b16 %v1075
  %v1376 = vunpack.c.h.b16 %v1075
  %v1377 = vunpack.c.l.b16 %v1076
  %v1378 = vunpack.c.h.b16 %v1076
  %v1379 = vunpack.c.l.b16 %v1077
  %v1380 = vunpack.c.h.b16 %v1077
  %v1381 = vunpack.c.l.b16 %v1078
  %v1382 = vunpack.c.h.b16 %v1078
  %v1383 = vunpack.c.l.b16 %v1079
  %v1384 = vunpack.c.h.b16 %v1079
  %v1385 = vunpack.c.l.b16 %v1080
  %v1386 = vunpack.c.h.b16 %v1080
  %v1387 = vunpack.c.l.b16 %v1081
  %v1388 = vunpack.c.h.b16 %v1081
  %v1389 = vunpack.c.l.b16 %v1082
  %v1390 = vunpack.c.h.b16 %v1082
  %v1391 = vunpack.c.l.b16 %v1083
  %v1392 = vunpack.c.h.b16 %v1083
  %v1393 = vunpack.c.l.b16 %v1084
  %v1394 = vunpack.c.h.b16 %v1084
  %v1395 = vunpack.c.l.b16 %v1085
  %v1396 = vunpack.c.h.b16 %v1085
  %v1397 = vunpack.c.l.b16 %v1086
  %v1398 = vunpack.c.h.b16 %v1086
  %v1399 = vunpack.c.l.b16 %v1087
  %v1400 = vunpack.c.h.b16 %v1087
  %v1401 = vunpack.c.l.b16 %v1088
  %v1402 = vunpack.c.h.b16 %v1088
  %v1403 = vunpack.c.l.b16 %v1089
  %v1404 = vunpack.c.h.b16 %v1089
  %v1405 = vunpack.c.l.b16 %v1090
  %v1406 = vunpack.c.h.b16 %v1090
  %v1407 = vunpack.c.l.b16 %v1091
  %v1408 = vunpack.c.h.b16 %v1091
  %v1409 = vunpack.c.l.b16 %v1092
  %v1410 = vunpack.c.h.b16 %v1092
  %v1411 = vunpack.c.l.b16 %v1093
  %v1412 = vunpack.c.h.b16 %v1093
  %v1413 = vunpack.c.l.b16 %v1094
  %v1414 = vunpack.c.h.b16 %v1094
  %v1415 = vunpack.c.l.b16 %v1095
  %v1416 = vunpack.c.h.b16 %v1095
  %v1417 = vunpack.c.l.b16 %v1096
  %v1418 = vunpack.c.h.b16 %v1096
  %v1419 = vunpack.c.l.b16 %v1097
  %v1420 = vunpack.c.h.b16 %v1097
  %v1421 = vunpack.c.l.b16 %v1098
  %v1422 = vunpack.c.h.b16 %v1098
  %v1423 = vunpack.c.l.b16 %v1099
  %v1424 = vunpack.c.h.b16 %v1099
  %v1425 = vunpack.c.l.b16 %v1100
  %v1426 = vunpack.c.h.b16 %v1100
  %v1427 = vunpack.c.l.b16 %v1101
  %v1428 = vunpack.c.h.b16 %v1101
  %v1429 = vunpack.c.l.b16 %v1102
  %v1430 = vunpack.c.h.b16 %v1102
  %v1431 = vunpack.c.l.b16 %v1103
  %v1432 = vunpack.c.h.b16 %v1103
  %v1433 = vunpack.c.l.b16 %v1104
  %v1434 = vunpack.c.h.b16 %v1104
  %v1435 = vunpack.c.l.b16 %v1105
  %v1436 = vunpack.c.h.b16 %v1105
  %v1437 = vunpack.c.l.b16 %v1106
  %v1438 = vunpack.c.h.b16 %v1106
  %v1439 = vunpack.c.l.b16 %v1107
  %v1440 = vunpack.c.h.b16 %v1107
  %v1441 = vunpack.c.l.b16 %v1108
  %v1442 = vunpack.c.h.b16 %v1108
  %v1443 = vunpack.c.l.b16 %v1109
  %v1444 = vunpack.c.h.b16 %v1109
  %v1445 = vunpack.c.l.b16 %v1110
  %v1446 = vunpack.c.h.b16 %v1110
  %v1447 = vunpack.c.l.b16 %v1111
  %v1448 = vunpack.c.h.b16 %v1111
  %v1449 = vunpack.c.l.b16 %v1112
  %v1450 = vunpack.c.h.b16 %v1112
  %v1451 = vunpack.c.l.b16 %v1113
  %v1452 = vunpack.c.h.b16 %v1113
  %v1453 = vunpack.c.l.b16 %v1114
  %v1454 = vunpack.c.h.b16 %v1114
  %v1455 = vunpack.c.l.b16 %v1115
  %v1456 = vunpack.c.h.b16 %v1115
  %v1457 = vunpack.c.l.b16 %v1116
  %v1458 = vunpack.c.h.b16 %v1116
  %v1459 = vunpack.c.l.b16 %v1117
  %v1460 = vunpack.c.h.b16 %v1117
  %v1461 = vunpack.c.l.b16 %v1118
  %v1462 = vunpack.c.h.b16 %v1118
  %v1463 = vunpack.c.l.b16 %v1119
  %v1464 = vunpack.c.h.b16 %v1119
  %v1465 = vunpack.c.l.b16 %v1120
  %v1466 = vunpack.c.h.b16 %v1120
  %v1467 = vunpack.c.l.b16 %v1121
  %v1468 = vunpack.c.h.b16 %v1121
  %v1469 = vunpack.c.l.b16 %v1122
  %v1470 = vunpack.c.h.b16 %v1122
  %v1471 = vunpack.c.l.b16 %v1123
  %v1472 = vunpack.c.h.b16 %v1123
  %v1473 = vunpack.c.l.b16 %v1124
  %v1474 = vunpack.c.h.b16 %v1124
  %v1475 = vunpack.c.l.b16 %v1125
  %v1476 = vunpack.c.h.b16 %v1125
  %v1477 = vunpack.c.l.b16 %v1126
  %v1478 = vunpack.c.h.b16 %v1126
  %v1479 = vunpack.c.l.b16 %v1127
  %v1480 = vunpack.c.h.b16 %v1127
  %v1481 = vunpack.c.l.b16 %v1128
  %v1482 = vunpack.c.h.b16 %v1128
  %v1483 = vunpack.c.l.b16 %v1129
  %v1484 = vunpack.c.h.b16 %v1129
  %v1485 = vunpack.c.l.b16 %v1130
  %v1486 = vunpack.c.h.b16 %v1130
  %v1487 = vunpack.c.l.b16 %v1131
  %v1488 = vunpack.c.h.b16 %v1131
  %v1489 = vunpack.c.l.b16 %v1132
  %v1490 = vunpack.c.h.b16 %v1132
  %v1491 = vunpack.c.l.b16 %v1133
  %v1492 = vunpack.c.h.b16 %v1133
  %v1493 = vunpack.c.l.b16 %v1134
  %v1494 = vunpack.c.h.b16 %v1134
  %v1495 = vunpack.c.l.b16 %v1135
  %v1496 = vunpack.c.h.b16 %v1135
  %v1497 = vunpack.c.l.b16 %v1136
  %v1498 = vunpack.c.h.b16 %v1136
  %v1499 = vunpack.c.l.b16 %v1137
  %v1500 = vunpack.c.h.b16 %v1137
  %v1501 = vunpack.c.l.b16 %v1138
  %v1502 = vunpack.c.h.b16 %v1138
  %v1503 = vunpack.c.l.b16 %v1139
  %v1504 = vunpack.c.h.b16 %v1139
  %v1505 = vunpack.c.l.b16 %v1140
  %v1506 = vunpack.c.h.b16 %v1140
  %v1507 = vunpack.c.l.b16 %v1141
  %v1508 = vunpack.c.h.b16 %v1141
  %v1509 = vunpack.c.l.b16 %v1142
  %v1510 = vunpack.c.h.b16 %v1142
  %v1511 = vunpack.c.l.b16 %v1143
  %v1512 = vunpack.c.h.b16 %v1143
  %v1513 = vunpack.c.l.b16 %v1144
  %v1514 = vunpack.c.h.b16 %v1144
  %v1515 = vunpack.c.l.b16 %v1145
  %v1516 = vunpack.c.h.b16 %v1145
  %v1517 = vunpack.c.l.b16 %v1146
  %v1518 = vunpack.c.h.b16 %v1146
  %v1519 = vunpack.c.l.b16 %v1147
  %v1520 = vunpack.c.h.b16 %v1147
  %v1521 = vunpack.c.l.b16 %v1148
  %v1522 = vunpack.c.h.b16 %v1148
  %v1523 = vunpack.c.l.b16 %v1149
  %v1524 = vunpack.c.h.b16 %v1149
  %v1525 = vunpack.c.l.b16 %v1150
  %v1526 = vunpack.c.h.b16 %v1150
  %v1527 = vunpack.c.l.b16 %v1151
  %v1528 = vunpack.c.h.b16 %v1151
  %v1529 = vunpack.c.l.b16 %v1152
  %v1530 = vunpack.c.h.b16 %v1152
  %v1531 = vunpack.c.l.b16 %v1153
  %v1532 = vunpack.c.h.b16 %v1153
  %v1533 = vunpack.c.l.b16 %v1154
  %v1534 = vunpack.c.h.b16 %v1154
  %v1535 = vunpack.c.l.b16 %v1155
  %v1536 = vunpack.c.h.b16 %v1155
  %v1537 = vunpack.c.l.b16 %v1156
  %v1538 = vunpack.c.h.b16 %v1156
  %v1539 = vunpack.c.l.b16 %v1157
  %v1540 = vunpack.c.h.b16 %v1157
  %v1541 = vunpack.c.l.b16 %v1158
  %v1542 = vunpack.c.h.b16 %v1158
  %v1543 = vpack.c.b16 %v1295, %v1287
  %v1544 = vpack.c.b16 %v1296, %v1288
  %v1545 = vpack.c.b16 %v1297, %v1289
  %v1546 = vpack.c.b16 %v1298, %v1290
  %v1547 = vpack.c.b16 %v1299, %v1291
  %v1548 = vpack.c.b16 %v1300, %v1292
  %v1549 = vpack.c.b16 %v1301, %v1293
  %v1550 = vpack.c.b16 %v1302, %v1294
  %v1551 = vpack.c.b16 %v1311, %v1303
  %v1552 = vpack.c.b16 %v1312, %v1304
  %v1553 = vpack.c.b16 %v1313, %v1305
  %v1554 = vpack.c.b16 %v1314, %v1306
  %v1555 = vpack.c.b16 %v1315, %v1307
  %v1556 = vpack.c.b16 %v1316, %v1308
  %v1557 = vpack.c.b16 %v1317, %v1309
  %v1558 = vpack.c.b16 %v1318, %v1310
  %v1559 = vpack.c.b16 %v1327, %v1319
  %v1560 = vpack.c.b16 %v1328, %v1320
  %v1561 = vpack.c.b16 %v1329, %v1321
  %v1562 = vpack.c.b16 %v1330, %v1322
  %v1563 = vpack.c.b16 %v1331, %v1323
  %v1564 = vpack.c.b16 %v1332, %v1324
  %v1565 = vpack.c.b16 %v1333, %v1325
  %v1566 = vpack.c.b16 %v1334, %v1326
  %v1567 = vpack.c.b16 %v1343, %v1335
  %v1568 = vpack.c.b16 %v1344, %v1336
  %v1569 = vpack.c.b16 %v1345, %v1337
  %v1570 = vpack.c.b16 %v1346, %v1338
  %v1571 = vpack.c.b16 %v1347, %v1339
  %v1572 = vpack.c.b16 %v1348, %v1340
  %v1573 = vpack.c.b16 %v1349, %v1341
  %v1574 = vpack.c.b16 %v1350, %v1342
  %v1575 = vpack.c.b16 %v1359, %v1351
  %v1576 = vpack.c.b16 %v1360, %v1352
  %v1577 = vpack.c.b16 %v1361, %v1353
  %v1578 = vpack.c.b16 %v1362, %v1354
  %v1579 = vpack.c.b16 %v1363, %v1355
  %v1580 = vpack.c.b16 %v1364, %v1356
  %v1581 = vpack.c.b16 %v1365, %v1357
  %v1582 = vpack.c.b16 %v1366, %v1358
  %v1583 = vpack.c.b16 %v1375, %v1367
  %v1584 = vpack.c.b16 %v1376, %v1368
  %v1585 = vpack.c.b16 %v1377, %v1369
  %v1586 = vpack.c.b16 %v1378, %v1370
  %v1587 = vpack.c.b16 %v1379, %v1371
  %v1588 = vpack.c.b16 %v1380, %v1372
  %v1589 = vpack.c.b16 %v1381, %v1373
  %v1590 = vpack.c.b16 %v1382, %v1374
  %v1591 = vpack.c.b16 %v1391, %v1383
  %v1592 = vpack.c.b16 %v1392, %v1384
  %v1593 = vpack.c.b16 %v1393, %v1385
  %v1594 = vpack.c.b16 %v1394, %v1386
  %v1595 = vpack.c.b16 %v1395, %v1387
  %v1596 = vpack.c.b16 %v1396, %v1388
  %v1597 = vpack.c.b16 %v1397, %v1389
  %v1598 = vpack.c.b16 %v1398, %v1390
  %v1599 = vpack.c.b16 %v1407, %v1399
  %v1600 = vpack.c.b16 %v1408, %v1400
  %v1601 = vpack.c.b16 %v1409, %v1401
  %v1602 = vpack.c.b16 %v1410, %v1402
  %v1603 = vpack.c.b16 %v1411, %v1403
  %v1604 = vpack.c.b16 %v1412, %v1404
  %v1605 = vpack.c.b16 %v1413, %v1405
  %v1606 = vpack.c.b16 %v1414, %v1406
  %v1607 = vpack.c.b16 %v1423, %v1415
  %v1608 = vpack.c.b16 %v1424, %v1416
  %v1609 = vpack.c.b16 %v1425, %v1417
  %v1610 = vpack.c.b16 %v1426, %v1418
  %v1611 = vpack.c.b16 %v1427, %v1419
  %v1612 = vpack.c.b16 %v1428, %v1420
  %v1613 = vpack.c.b16 %v1429, %v1421
  %v1614 = vpack.c.b16 %v1430, %v1422
  %v1615 = vpack.c.b16 %v1439, %v1431
  %v1616 = vpack.c.b16 %v1440, %v1432
  %v1617 = vpack.c.b16 %v1441, %v1433
  %v1618 = vpack.c.b16 %v1442, %v1434
  %v1619 = vpack.c.b16 %v1443, %v1435
  %v1620 = vpack.c.b16 %v1444, %v1436
  %v1621 = vpack.c.b16 %v1445, %v1437
  %v1622 = vpack.c.b16 %v1446, %v1438
  %v1623 = vpack.c.b16 %v1455, %v1447
  %v1624 = vpack.c.b16 %v1456, %v1448
  %v1625 = vpack.c.b16 %v1457, %v1449
  %v1626 = vpack.c.b16 %v1458, %v1450
  %v1627 = vpack.c.b16 %v1459, %v1451
  %v1628 = vpack.c.b16 %v1460, %v1452
  %v1629 = vpack.c.b16 %v1461, %v1453
  %v1630 = vpack.c.b16 %v1462, %v1454
  %v1631 = vpack.c.b16 %v1471, %v1463
  %v1632 = vpack.c.b16 %v1472, %v1464
  %v1633 = vpack.c.b16 %v1473, %v1465
  %v1634 = vpack.c.b16 %v1474, %v1466
  %v1635 = vpack.c.b16 %v1475, %v1467
  %v1636 = vpack.c.b16 %v1476, %v1468
  %v1637 = vpack.c.b16 %v1477, %v1469
  %v1638 = vpack.c.b16 %v1478, %v1470
  %v1639 = vpack.c.b16 %v1487, %v1479
  %v1640 = vpack.c.b16 %v1488, %v1480
  %v1641 = vpack.c.b16 %v1489, %v1481
  %v1642 = vpack.c.b16 %v1490, %v1482
  %v1643 = vpack.c.b16 %v1491, %v1483
  %v1644 = vpack.c.b16 %v1492, %v1484
  %v1645 = vpack.c.b16 %v1493, %v1485
  %v1646 = vpack.c.b16 %v1494, %v1486
  %v1647 = vpack.c.b16 %v1503, %v1495
  %v1648 = vpack.c.b16 %v1504, %v1496
  %v1649 = vpack.c.b16 %v1505, %v1497
  %v1650 = vpack.c.b16 %v1506, %v1498
  %v1651 = vpack.c.b16 %v1507, %v1499
  %v1652 = vpack.c.b16 %v1508, %v1500
  %v1653 = vpack.c.b16 %v1509, %v1501
  %v1654 = vpack.c.b16 %v1510, %v1502
  %v1655 = vpack.c.b16 %v1519, %v1511
  %v1656 = vpack.c.b16 %v1520, %v1512
  %v1657 = vpack.c.b16 %v1521, %v1513
  %v1658 = vpack.c.b16 %v1522, %v1514
  %v1659 = vpack.c.b16 %v1523, %v1515
  %v1660 = vpack.c.b16 %v1524, %v1516
  %v1661 = vpack.c.b16 %v1525, %v1517
  %v1662 = vpack.c.b16 %v1526, %v1518
  %v1663 = vpack.c.b16 %v1535, %v1527
  %v1664 = vpack.c.b16 %v1536, %v1528
  %v1665 = vpack.c.b16 %v1537, %v1529
  %v1666 = vpack.c.b16 %v1538, %v1530
  %v1667 = vpack.c.b16 %v1539, %v1531
  %v1668 = vpack.c.b16 %v1540, %v1532
  %v1669 = vpack.c.b16 %v1541, %v1533
  %v1670 = vpack.c.b16 %v1542, %v1534
  %1799 = vmatpush.bf16.msra.mxu0 %v1599
  %1800 = vmatpush.bf16.msra.mxu0 %v1591
  %1801 = vmatpush.bf16.msra.mxu0 %v1583
  %1802 = vmatpush.bf16.msra.mxu0 %v1575
  %1803 = vmatpush.bf16.msra.mxu0 %v1567
  %1804 = vmatpush.bf16.msra.mxu0 %v1559
  %1805 = vmatpush.bf16.msra.mxu0 %v1551
  %1806 = vmatpush.bf16.msra.mxu0 %v1543
  %1807 = vmatmul.bf16.gmra.mxu0 %v162
  %v1808 = vpop.f32.mrf.mxu0
  %v1809 = vadd.f32 0.0, %v1808
  %v1810 = vpop.f32.mrf.mxu0
  %v1811 = vadd.f32 0.0, %v1810
  %1812 = vdwg.mxu0
  %1813 = vmatpush.bf16.msra.mxu0 %v1663
  %1814 = vmatpush.bf16.msra.mxu0 %v1655
  %1815 = vmatpush.bf16.msra.mxu0 %v1647
  %1816 = vmatpush.bf16.msra.mxu0 %v1639
  %1817 = vmatpush.bf16.msra.mxu0 %v1631
  %1818 = vmatpush.bf16.msra.mxu0 %v1623
  %1819 = vmatpush.bf16.msra.mxu0 %v1615
  %1820 = vmatpush.bf16.msra.mxu0 %v1607
  %1821 = vmatmul.bf16.gmra.mxu0 %v163
  %v1822 = vpop.f32.mrf.mxu0
  %v1823 = vadd.f32 %v1809, %v1822
  %v1824 = vpop.f32.mrf.mxu0
  %v1825 = vadd.f32 %v1811, %v1824
  %1826 = vdwg.mxu0
  %1827 = vmatpush.bf16.msra.mxu0 %v1600
  %1828 = vmatpush.bf16.msra.mxu0 %v1592
  %1829 = vmatpush.bf16.msra.mxu0 %v1584
  %1830 = vmatpush.bf16.msra.mxu0 %v1576
  %1831 = vmatpush.bf16.msra.mxu0 %v1568
  %1832 = vmatpush.bf16.msra.mxu0 %v1560
  %1833 = vmatpush.bf16.msra.mxu0 %v1552
  %1834 = vmatpush.bf16.msra.mxu0 %v1544
  %1835 = vmatmul.bf16.gmra.mxu0 %v162
  %v1836 = vpop.f32.mrf.mxu0
  %v1837 = vadd.f32 0.0, %v1836
  %v1838 = vpop.f32.mrf.mxu0
  %v1839 = vadd.f32 0.0, %v1838
  %1840 = vdwg.mxu0
  %1841 = vmatpush.bf16.msra.mxu0 %v1664
  %1842 = vmatpush.bf16.msra.mxu0 %v1656
  %1843 = vmatpush.bf16.msra.mxu0 %v1648
  %1844 = vmatpush.bf16.msra.mxu0 %v1640
  %1845 = vmatpush.bf16.msra.mxu0 %v1632
  %1846 = vmatpush.bf16.msra.mxu0 %v1624
  %1847 = vmatpush.bf16.msra.mxu0 %v1616
  %1848 = vmatpush.bf16.msra.mxu0 %v1608
  %1849 = vmatmul.bf16.gmra.mxu0 %v163
  %v1850 = vpop.f32.mrf.mxu0
  %v1851 = vadd.f32 %v1837, %v1850
  %v1852 = vpop.f32.mrf.mxu0
  %v1853 = vadd.f32 %v1839, %v1852
  %1854 = vdwg.mxu0
  %1855 = vmatpush.bf16.msra.mxu0 %v1601
  %1856 = vmatpush.bf16.msra.mxu0 %v1593
  %1857 = vmatpush.bf16.msra.mxu0 %v1585
  %1858 = vmatpush.bf16.msra.mxu0 %v1577
  %1859 = vmatpush.bf16.msra.mxu0 %v1569
  %1860 = vmatpush.bf16.msra.mxu0 %v1561
  %1861 = vmatpush.bf16.msra.mxu0 %v1553
  %1862 = vmatpush.bf16.msra.mxu0 %v1545
  %1863 = vmatmul.bf16.gmra.mxu0 %v162
  %v1864 = vpop.f32.mrf.mxu0
  %v1865 = vadd.f32 0.0, %v1864
  %v1866 = vpop.f32.mrf.mxu0
  %v1867 = vadd.f32 0.0, %v1866
  %1868 = vdwg.mxu0
  %1869 = vmatpush.bf16.msra.mxu0 %v1665
  %1870 = vmatpush.bf16.msra.mxu0 %v1657
  %1871 = vmatpush.bf16.msra.mxu0 %v1649
  %1872 = vmatpush.bf16.msra.mxu0 %v1641
  %1873 = vmatpush.bf16.msra.mxu0 %v1633
  %1874 = vmatpush.bf16.msra.mxu0 %v1625
  %1875 = vmatpush.bf16.msra.mxu0 %v1617
  %1876 = vmatpush.bf16.msra.mxu0 %v1609
  %1877 = vmatmul.bf16.gmra.mxu0 %v163
  %v1878 = vpop.f32.mrf.mxu0
  %v1879 = vadd.f32 %v1865, %v1878
  %v1880 = vpop.f32.mrf.mxu0
  %v1881 = vadd.f32 %v1867, %v1880
  %1882 = vdwg.mxu0
  %1883 = vmatpush.bf16.msra.mxu0 %v1602
  %1884 = vmatpush.bf16.msra.mxu0 %v1594
  %1885 = vmatpush.bf16.msra.mxu0 %v1586
  %1886 = vmatpush.bf16.msra.mxu0 %v1578
  %1887 = vmatpush.bf16.msra.mxu0 %v1570
  %1888 = vmatpush.bf16.msra.mxu0 %v1562
  %1889 = vmatpush.bf16.msra.mxu0 %v1554
  %1890 = vmatpush.bf16.msra.mxu0 %v1546
  %1891 = vmatmul.bf16.gmra.mxu0 %v162
  %v1892 = vpop.f32.mrf.mxu0
  %v1893 = vadd.f32 0.0, %v1892
  %v1894 = vpop.f32.mrf.mxu0
  %v1895 = vadd.f32 0.0, %v1894
  %1896 = vdwg.mxu0
  %1897 = vmatpush.bf16.msra.mxu0 %v1666
  %1898 = vmatpush.bf16.msra.mxu0 %v1658
  %1899 = vmatpush.bf16.msra.mxu0 %v1650
  %1900 = vmatpush.bf16.msra.mxu0 %v1642
  %1901 = vmatpush.bf16.msra.mxu0 %v1634
  %1902 = vmatpush.bf16.msra.mxu0 %v1626
  %1903 = vmatpush.bf16.msra.mxu0 %v1618
  %1904 = vmatpush.bf16.msra.mxu0 %v1610
  %1905 = vmatmul.bf16.gmra.mxu0 %v163
  %v1906 = vpop.f32.mrf.mxu0
  %v1907 = vadd.f32 %v1893, %v1906
  %v1908 = vpop.f32.mrf.mxu0
  %v1909 = vadd.f32 %v1895, %v1908
  %1910 = vdwg.mxu0
  %1911 = vmatpush.bf16.msra.mxu0 %v1603
  %1912 = vmatpush.bf16.msra.mxu0 %v1595
  %1913 = vmatpush.bf16.msra.mxu0 %v1587
  %1914 = vmatpush.bf16.msra.mxu0 %v1579
  %1915 = vmatpush.bf16.msra.mxu0 %v1571
  %1916 = vmatpush.bf16.msra.mxu0 %v1563
  %1917 = vmatpush.bf16.msra.mxu0 %v1555
  %1918 = vmatpush.bf16.msra.mxu0 %v1547
  %1919 = vmatmul.bf16.gmra.mxu0 %v162
  %v1920 = vpop.f32.mrf.mxu0
  %v1921 = vadd.f32 0.0, %v1920
  %v1922 = vpop.f32.mrf.mxu0
  %v1923 = vadd.f32 0.0, %v1922
  %1924 = vdwg.mxu0
  %1925 = vmatpush.bf16.msra.mxu0 %v1667
  %1926 = vmatpush.bf16.msra.mxu0 %v1659
  %1927 = vmatpush.bf16.msra.mxu0 %v1651
  %1928 = vmatpush.bf16.msra.mxu0 %v1643
  %1929 = vmatpush.bf16.msra.mxu0 %v1635
  %1930 = vmatpush.bf16.msra.mxu0 %v1627
  %1931 = vmatpush.bf16.msra.mxu0 %v1619
  %1932 = vmatpush.bf16.msra.mxu0 %v1611
  %1933 = vmatmul.bf16.gmra.mxu0 %v163
  %v1934 = vpop.f32.mrf.mxu0
  %v1935 = vadd.f32 %v1921, %v1934
  %v1936 = vpop.f32.mrf.mxu0
  %v1937 = vadd.f32 %v1923, %v1936
  %1938 = vdwg.mxu0
  %1939 = vmatpush.bf16.msra.mxu0 %v1604
  %1940 = vmatpush.bf16.msra.mxu0 %v1596
  %1941 = vmatpush.bf16.msra.mxu0 %v1588
  %1942 = vmatpush.bf16.msra.mxu0 %v1580
  %1943 = vmatpush.bf16.msra.mxu0 %v1572
  %1944 = vmatpush.bf16.msra.mxu0 %v1564
  %1945 = vmatpush.bf16.msra.mxu0 %v1556
  %1946 = vmatpush.bf16.msra.mxu0 %v1548
  %1947 = vmatmul.bf16.gmra.mxu0 %v162
  %v1948 = vpop.f32.mrf.mxu0
  %v1949 = vadd.f32 0.0, %v1948
  %v1950 = vpop.f32.mrf.mxu0
  %v1951 = vadd.f32 0.0, %v1950
  %1952 = vdwg.mxu0
  %1953 = vmatpush.bf16.msra.mxu0 %v1668
  %1954 = vmatpush.bf16.msra.mxu0 %v1660
  %1955 = vmatpush.bf16.msra.mxu0 %v1652
  %1956 = vmatpush.bf16.msra.mxu0 %v1644
  %1957 = vmatpush.bf16.msra.mxu0 %v1636
  %1958 = vmatpush.bf16.msra.mxu0 %v1628
  %1959 = vmatpush.bf16.msra.mxu0 %v1620
  %1960 = vmatpush.bf16.msra.mxu0 %v1612
  %1961 = vmatmul.bf16.gmra.mxu0 %v163
  %v1962 = vpop.f32.mrf.mxu0
  %v1963 = vadd.f32 %v1949, %v1962
  %v1964 = vpop.f32.mrf.mxu0
  %v1965 = vadd.f32 %v1951, %v1964
  %1966 = vdwg.mxu0
  %1967 = vmatpush.bf16.msra.mxu0 %v1605
  %1968 = vmatpush.bf16.msra.mxu0 %v1597
  %1969 = vmatpush.bf16.msra.mxu0 %v1589
  %1970 = vmatpush.bf16.msra.mxu0 %v1581
  %1971 = vmatpush.bf16.msra.mxu0 %v1573
  %1972 = vmatpush.bf16.msra.mxu0 %v1565
  %1973 = vmatpush.bf16.msra.mxu0 %v1557
  %1974 = vmatpush.bf16.msra.mxu0 %v1549
  %1975 = vmatmul.bf16.gmra.mxu0 %v162
  %v1976 = vpop.f32.mrf.mxu0
  %v1977 = vadd.f32 0.0, %v1976
  %v1978 = vpop.f32.mrf.mxu0
  %v1979 = vadd.f32 0.0, %v1978
  %1980 = vdwg.mxu0
  %1981 = vmatpush.bf16.msra.mxu0 %v1669
  %1982 = vmatpush.bf16.msra.mxu0 %v1661
  %1983 = vmatpush.bf16.msra.mxu0 %v1653
  %1984 = vmatpush.bf16.msra.mxu0 %v1645
  %1985 = vmatpush.bf16.msra.mxu0 %v1637
  %1986 = vmatpush.bf16.msra.mxu0 %v1629
  %1987 = vmatpush.bf16.msra.mxu0 %v1621
  %1988 = vmatpush.bf16.msra.mxu0 %v1613
  %1989 = vmatmul.bf16.gmra.mxu0 %v163
  %v1990 = vpop.f32.mrf.mxu0
  %v1991 = vadd.f32 %v1977, %v1990
  %v1992 = vpop.f32.mrf.mxu0
  %v1993 = vadd.f32 %v1979, %v1992
  %1994 = vdwg.mxu0
  %1995 = vmatpush.bf16.msra.mxu0 %v1606
  %1996 = vmatpush.bf16.msra.mxu0 %v1598
  %1997 = vmatpush.bf16.msra.mxu0 %v1590
  %1998 = vmatpush.bf16.msra.mxu0 %v1582
  %1999 = vmatpush.bf16.msra.mxu0 %v1574
  %2000 = vmatpush.bf16.msra.mxu0 %v1566
  %2001 = vmatpush.bf16.msra.mxu0 %v1558
  %2002 = vmatpush.bf16.msra.mxu0 %v1550
  %2003 = vmatmul.bf16.gmra.mxu0 %v162
  %v2004 = vpop.f32.mrf.mxu0
  %v2005 = vadd.f32 0.0, %v2004
  %v2006 = vpop.f32.mrf.mxu0
  %v2007 = vadd.f32 0.0, %v2006
  %2008 = vdwg.mxu0
  %2009 = vmatpush.bf16.msra.mxu0 %v1670
  %2010 = vmatpush.bf16.msra.mxu0 %v1662
  %2011 = vmatpush.bf16.msra.mxu0 %v1654
  %2012 = vmatpush.bf16.msra.mxu0 %v1646
  %2013 = vmatpush.bf16.msra.mxu0 %v1638
  %2014 = vmatpush.bf16.msra.mxu0 %v1630
  %2015 = vmatpush.bf16.msra.mxu0 %v1622
  %2016 = vmatpush.bf16.msra.mxu0 %v1614
  %2017 = vmatmul.bf16.gmra.mxu0 %v163
  %v2018 = vpop.f32.mrf.mxu0
  %v2019 = vadd.f32 %v2005, %v2018
  %v2020 = vpop.f32.mrf.mxu0
  %v2021 = vadd.f32 %v2007, %v2020
  %2022 = vdwg.mxu0
  %s2023 = scalar_lea.vmem %s0, 2048
  %v2024 = vld [vmem:[%s2023] sm:$0xff]
  %v2025 = vld [vmem:[%s2023 + $0x8] sm:$0xff]
  %v2026 = vld [vmem:[%s2023 + $0x10] sm:$0xff]
  %v2027 = vld [vmem:[%s2023 + $0x18] sm:$0xff]
  %v2028 = vld [vmem:[%s2023 + $0x20] sm:$0xff]
  %v2029 = vld [vmem:[%s2023 + $0x28] sm:$0xff]
  %v2030 = vld [vmem:[%s2023 + $0x30] sm:$0xff]
  %v2031 = vld [vmem:[%s2023 + $0x38] sm:$0xff]
  %v2032 = vld [vmem:[%s2023 + $0x40] sm:$0xff]
  %v2033 = vld [vmem:[%s2023 + $0x48] sm:$0xff]
  %v2034 = vld [vmem:[%s2023 + $0x50] sm:$0xff]
  %v2035 = vld [vmem:[%s2023 + $0x58] sm:$0xff]
  %v2036 = vld [vmem:[%s2023 + $0x60] sm:$0xff]
  %v2037 = vld [vmem:[%s2023 + $0x68] sm:$0xff]
  %v2038 = vld [vmem:[%s2023 + $0x70] sm:$0xff]
  %v2039 = vld [vmem:[%s2023 + $0x78] sm:$0xff]
  %v2040 = vld [vmem:[%s2023 + $0x80] sm:$0xff]
  %v2041 = vld [vmem:[%s2023 + $0x88] sm:$0xff]
  %v2042 = vld [vmem:[%s2023 + $0x90] sm:$0xff]
  %v2043 = vld [vmem:[%s2023 + $0x98] sm:$0xff]
  %v2044 = vld [vmem:[%s2023 + $0xa0] sm:$0xff]
  %v2045 = vld [vmem:[%s2023 + $0xa8] sm:$0xff]
  %v2046 = vld [vmem:[%s2023 + $0xb0] sm:$0xff]
  %v2047 = vld [vmem:[%s2023 + $0xb8] sm:$0xff]
  %v2048 = vld [vmem:[%s2023 + $0xc0] sm:$0xff]
  %v2049 = vld [vmem:[%s2023 + $0xc8] sm:$0xff]
  %v2050 = vld [vmem:[%s2023 + $0xd0] sm:$0xff]
  %v2051 = vld [vmem:[%s2023 + $0xd8] sm:$0xff]
  %v2052 = vld [vmem:[%s2023 + $0xe0] sm:$0xff]
  %v2053 = vld [vmem:[%s2023 + $0xe8] sm:$0xff]
  %v2054 = vld [vmem:[%s2023 + $0xf0] sm:$0xff]
  %v2055 = vld [vmem:[%s2023 + $0xf8] sm:$0xff]
  %v2056 = vld [vmem:[%s2023 + $0x100] sm:$0xff]
  %v2057 = vld [vmem:[%s2023 + $0x108] sm:$0xff]
  %v2058 = vld [vmem:[%s2023 + $0x110] sm:$0xff]
  %v2059 = vld [vmem:[%s2023 + $0x118] sm:$0xff]
  %v2060 = vld [vmem:[%s2023 + $0x120] sm:$0xff]
  %v2061 = vld [vmem:[%s2023 + $0x128] sm:$0xff]
  %v2062 = vld [vmem:[%s2023 + $0x130] sm:$0xff]
  %v2063 = vld [vmem:[%s2023 + $0x138] sm:$0xff]
  %v2064 = vld [vmem:[%s2023 + $0x140] sm:$0xff]
  %v2065 = vld [vmem:[%s2023 + $0x148] sm:$0xff]
  %v2066 = vld [vmem:[%s2023 + $0x150] sm:$0xff]
  %v2067 = vld [vmem:[%s2023 + $0x158] sm:$0xff]
  %v2068 = vld [vmem:[%s2023 + $0x160] sm:$0xff]
  %v2069 = vld [vmem:[%s2023 + $0x168] sm:$0xff]
  %v2070 = vld [vmem:[%s2023 + $0x170] sm:$0xff]
  %v2071 = vld [vmem:[%s2023 + $0x178] sm:$0xff]
  %v2072 = vld [vmem:[%s2023 + $0x180] sm:$0xff]
  %v2073 = vld [vmem:[%s2023 + $0x188] sm:$0xff]
  %v2074 = vld [vmem:[%s2023 + $0x190] sm:$0xff]
  %v2075 = vld [vmem:[%s2023 + $0x198] sm:$0xff]
  %v2076 = vld [vmem:[%s2023 + $0x1a0] sm:$0xff]
  %v2077 = vld [vmem:[%s2023 + $0x1a8] sm:$0xff]
  %v2078 = vld [vmem:[%s2023 + $0x1b0] sm:$0xff]
  %v2079 = vld [vmem:[%s2023 + $0x1b8] sm:$0xff]
  %v2080 = vld [vmem:[%s2023 + $0x1c0] sm:$0xff]
  %v2081 = vld [vmem:[%s2023 + $0x1c8] sm:$0xff]
  %v2082 = vld [vmem:[%s2023 + $0x1d0] sm:$0xff]
  %v2083 = vld [vmem:[%s2023 + $0x1d8] sm:$0xff]
  %v2084 = vld [vmem:[%s2023 + $0x1e0] sm:$0xff]
  %v2085 = vld [vmem:[%s2023 + $0x1e8] sm:$0xff]
  %v2086 = vld [vmem:[%s2023 + $0x1f0] sm:$0xff]
  %v2087 = vld [vmem:[%s2023 + $0x1f8] sm:$0xff]
  %v2088 = vld [vmem:[%s2023 + $0x200] sm:$0xff]
  %v2089 = vld [vmem:[%s2023 + $0x208] sm:$0xff]
  %v2090 = vld [vmem:[%s2023 + $0x210] sm:$0xff]
  %v2091 = vld [vmem:[%s2023 + $0x218] sm:$0xff]
  %v2092 = vld [vmem:[%s2023 + $0x220] sm:$0xff]
  %v2093 = vld [vmem:[%s2023 + $0x228] sm:$0xff]
  %v2094 = vld [vmem:[%s2023 + $0x230] sm:$0xff]
  %v2095 = vld [vmem:[%s2023 + $0x238] sm:$0xff]
  %v2096 = vld [vmem:[%s2023 + $0x240] sm:$0xff]
  %v2097 = vld [vmem:[%s2023 + $0x248] sm:$0xff]
  %v2098 = vld [vmem:[%s2023 + $0x250] sm:$0xff]
  %v2099 = vld [vmem:[%s2023 + $0x258] sm:$0xff]
  %v2100 = vld [vmem:[%s2023 + $0x260] sm:$0xff]
  %v2101 = vld [vmem:[%s2023 + $0x268] sm:$0xff]
  %v2102 = vld [vmem:[%s2023 + $0x270] sm:$0xff]
  %v2103 = vld [vmem:[%s2023 + $0x278] sm:$0xff]
  %v2104 = vld [vmem:[%s2023 + $0x280] sm:$0xff]
  %v2105 = vld [vmem:[%s2023 + $0x288] sm:$0xff]
  %v2106 = vld [vmem:[%s2023 + $0x290] sm:$0xff]
  %v2107 = vld [vmem:[%s2023 + $0x298] sm:$0xff]
  %v2108 = vld [vmem:[%s2023 + $0x2a0] sm:$0xff]
  %v2109 = vld [vmem:[%s2023 + $0x2a8] sm:$0xff]
  %v2110 = vld [vmem:[%s2023 + $0x2b0] sm:$0xff]
  %v2111 = vld [vmem:[%s2023 + $0x2b8] sm:$0xff]
  %v2112 = vld [vmem:[%s2023 + $0x2c0] sm:$0xff]
  %v2113 = vld [vmem:[%s2023 + $0x2c8] sm:$0xff]
  %v2114 = vld [vmem:[%s2023 + $0x2d0] sm:$0xff]
  %v2115 = vld [vmem:[%s2023 + $0x2d8] sm:$0xff]
  %v2116 = vld [vmem:[%s2023 + $0x2e0] sm:$0xff]
  %v2117 = vld [vmem:[%s2023 + $0x2e8] sm:$0xff]
  %v2118 = vld [vmem:[%s2023 + $0x2f0] sm:$0xff]
  %v2119 = vld [vmem:[%s2023 + $0x2f8] sm:$0xff]
  %v2120 = vld [vmem:[%s2023 + $0x300] sm:$0xff]
  %v2121 = vld [vmem:[%s2023 + $0x308] sm:$0xff]
  %v2122 = vld [vmem:[%s2023 + $0x310] sm:$0xff]
  %v2123 = vld [vmem:[%s2023 + $0x318] sm:$0xff]
  %v2124 = vld [vmem:[%s2023 + $0x320] sm:$0xff]
  %v2125 = vld [vmem:[%s2023 + $0x328] sm:$0xff]
  %v2126 = vld [vmem:[%s2023 + $0x330] sm:$0xff]
  %v2127 = vld [vmem:[%s2023 + $0x338] sm:$0xff]
  %v2128 = vld [vmem:[%s2023 + $0x340] sm:$0xff]
  %v2129 = vld [vmem:[%s2023 + $0x348] sm:$0xff]
  %v2130 = vld [vmem:[%s2023 + $0x350] sm:$0xff]
  %v2131 = vld [vmem:[%s2023 + $0x358] sm:$0xff]
  %v2132 = vld [vmem:[%s2023 + $0x360] sm:$0xff]
  %v2133 = vld [vmem:[%s2023 + $0x368] sm:$0xff]
  %v2134 = vld [vmem:[%s2023 + $0x370] sm:$0xff]
  %v2135 = vld [vmem:[%s2023 + $0x378] sm:$0xff]
  %v2136 = vld [vmem:[%s2023 + $0x380] sm:$0xff]
  %v2137 = vld [vmem:[%s2023 + $0x388] sm:$0xff]
  %v2138 = vld [vmem:[%s2023 + $0x390] sm:$0xff]
  %v2139 = vld [vmem:[%s2023 + $0x398] sm:$0xff]
  %v2140 = vld [vmem:[%s2023 + $0x3a0] sm:$0xff]
  %v2141 = vld [vmem:[%s2023 + $0x3a8] sm:$0xff]
  %v2142 = vld [vmem:[%s2023 + $0x3b0] sm:$0xff]
  %v2143 = vld [vmem:[%s2023 + $0x3b8] sm:$0xff]
  %v2144 = vld [vmem:[%s2023 + $0x3c0] sm:$0xff]
  %v2145 = vld [vmem:[%s2023 + $0x3c8] sm:$0xff]
  %v2146 = vld [vmem:[%s2023 + $0x3d0] sm:$0xff]
  %v2147 = vld [vmem:[%s2023 + $0x3d8] sm:$0xff]
  %v2148 = vld [vmem:[%s2023 + $0x3e0] sm:$0xff]
  %v2149 = vld [vmem:[%s2023 + $0x3e8] sm:$0xff]
  %v2150 = vld [vmem:[%s2023 + $0x3f0] sm:$0xff]
  %v2151 = vld [vmem:[%s2023 + $0x3f8] sm:$0xff]
  %v2280 = vunpack.c.l.b16 %v2024
  %v2281 = vunpack.c.h.b16 %v2024
  %v2282 = vunpack.c.l.b16 %v2025
  %v2283 = vunpack.c.h.b16 %v2025
  %v2284 = vunpack.c.l.b16 %v2026
  %v2285 = vunpack.c.h.b16 %v2026
  %v2286 = vunpack.c.l.b16 %v2027
  %v2287 = vunpack.c.h.b16 %v2027
  %v2288 = vunpack.c.l.b16 %v2028
  %v2289 = vunpack.c.h.b16 %v2028
  %v2290 = vunpack.c.l.b16 %v2029
  %v2291 = vunpack.c.h.b16 %v2029
  %v2292 = vunpack.c.l.b16 %v2030
  %v2293 = vunpack.c.h.b16 %v2030
  %v2294 = vunpack.c.l.b16 %v2031
  %v2295 = vunpack.c.h.b16 %v2031
  %v2296 = vunpack.c.l.b16 %v2032
  %v2297 = vunpack.c.h.b16 %v2032
  %v2298 = vunpack.c.l.b16 %v2033
  %v2299 = vunpack.c.h.b16 %v2033
  %v2300 = vunpack.c.l.b16 %v2034
  %v2301 = vunpack.c.h.b16 %v2034
  %v2302 = vunpack.c.l.b16 %v2035
  %v2303 = vunpack.c.h.b16 %v2035
  %v2304 = vunpack.c.l.b16 %v2036
  %v2305 = vunpack.c.h.b16 %v2036
  %v2306 = vunpack.c.l.b16 %v2037
  %v2307 = vunpack.c.h.b16 %v2037
  %v2308 = vunpack.c.l.b16 %v2038
  %v2309 = vunpack.c.h.b16 %v2038
  %v2310 = vunpack.c.l.b16 %v2039
  %v2311 = vunpack.c.h.b16 %v2039
  %v2312 = vunpack.c.l.b16 %v2040
  %v2313 = vunpack.c.h.b16 %v2040
  %v2314 = vunpack.c.l.b16 %v2041
  %v2315 = vunpack.c.h.b16 %v2041
  %v2316 = vunpack.c.l.b16 %v2042
  %v2317 = vunpack.c.h.b16 %v2042
  %v2318 = vunpack.c.l.b16 %v2043
  %v2319 = vunpack.c.h.b16 %v2043
  %v2320 = vunpack.c.l.b16 %v2044
  %v2321 = vunpack.c.h.b16 %v2044
  %v2322 = vunpack.c.l.b16 %v2045
  %v2323 = vunpack.c.h.b16 %v2045
  %v2324 = vunpack.c.l.b16 %v2046
  %v2325 = vunpack.c.h.b16 %v2046
  %v2326 = vunpack.c.l.b16 %v2047
  %v2327 = vunpack.c.h.b16 %v2047
  %v2328 = vunpack.c.l.b16 %v2048
  %v2329 = vunpack.c.h.b16 %v2048
  %v2330 = vunpack.c.l.b16 %v2049
  %v2331 = vunpack.c.h.b16 %v2049
  %v2332 = vunpack.c.l.b16 %v2050
  %v2333 = vunpack.c.h.b16 %v2050
  %v2334 = vunpack.c.l.b16 %v2051
  %v2335 = vunpack.c.h.b16 %v2051
  %v2336 = vunpack.c.l.b16 %v2052
  %v2337 = vunpack.c.h.b16 %v2052
  %v2338 = vunpack.c.l.b16 %v2053
  %v2339 = vunpack.c.h.b16 %v2053
  %v2340 = vunpack.c.l.b16 %v2054
  %v2341 = vunpack.c.h.b16 %v2054
  %v2342 = vunpack.c.l.b16 %v2055
  %v2343 = vunpack.c.h.b16 %v2055
  %v2344 = vunpack.c.l.b16 %v2056
  %v2345 = vunpack.c.h.b16 %v2056
  %v2346 = vunpack.c.l.b16 %v2057
  %v2347 = vunpack.c.h.b16 %v2057
  %v2348 = vunpack.c.l.b16 %v2058
  %v2349 = vunpack.c.h.b16 %v2058
  %v2350 = vunpack.c.l.b16 %v2059
  %v2351 = vunpack.c.h.b16 %v2059
  %v2352 = vunpack.c.l.b16 %v2060
  %v2353 = vunpack.c.h.b16 %v2060
  %v2354 = vunpack.c.l.b16 %v2061
  %v2355 = vunpack.c.h.b16 %v2061
  %v2356 = vunpack.c.l.b16 %v2062
  %v2357 = vunpack.c.h.b16 %v2062
  %v2358 = vunpack.c.l.b16 %v2063
  %v2359 = vunpack.c.h.b16 %v2063
  %v2360 = vunpack.c.l.b16 %v2064
  %v2361 = vunpack.c.h.b16 %v2064
  %v2362 = vunpack.c.l.b16 %v2065
  %v2363 = vunpack.c.h.b16 %v2065
  %v2364 = vunpack.c.l.b16 %v2066
  %v2365 = vunpack.c.h.b16 %v2066
  %v2366 = vunpack.c.l.b16 %v2067
  %v2367 = vunpack.c.h.b16 %v2067
  %v2368 = vunpack.c.l.b16 %v2068
  %v2369 = vunpack.c.h.b16 %v2068
  %v2370 = vunpack.c.l.b16 %v2069
  %v2371 = vunpack.c.h.b16 %v2069
  %v2372 = vunpack.c.l.b16 %v2070
  %v2373 = vunpack.c.h.b16 %v2070
  %v2374 = vunpack.c.l.b16 %v2071
  %v2375 = vunpack.c.h.b16 %v2071
  %v2376 = vunpack.c.l.b16 %v2072
  %v2377 = vunpack.c.h.b16 %v2072
  %v2378 = vunpack.c.l.b16 %v2073
  %v2379 = vunpack.c.h.b16 %v2073
  %v2380 = vunpack.c.l.b16 %v2074
  %v2381 = vunpack.c.h.b16 %v2074
  %v2382 = vunpack.c.l.b16 %v2075
  %v2383 = vunpack.c.h.b16 %v2075
  %v2384 = vunpack.c.l.b16 %v2076
  %v2385 = vunpack.c.h.b16 %v2076
  %v2386 = vunpack.c.l.b16 %v2077
  %v2387 = vunpack.c.h.b16 %v2077
  %v2388 = vunpack.c.l.b16 %v2078
  %v2389 = vunpack.c.h.b16 %v2078
  %v2390 = vunpack.c.l.b16 %v2079
  %v2391 = vunpack.c.h.b16 %v2079
  %v2392 = vunpack.c.l.b16 %v2080
  %v2393 = vunpack.c.h.b16 %v2080
  %v2394 = vunpack.c.l.b16 %v2081
  %v2395 = vunpack.c.h.b16 %v2081
  %v2396 = vunpack.c.l.b16 %v2082
  %v2397 = vunpack.c.h.b16 %v2082
  %v2398 = vunpack.c.l.b16 %v2083
  %v2399 = vunpack.c.h.b16 %v2083
  %v2400 = vunpack.c.l.b16 %v2084
  %v2401 = vunpack.c.h.b16 %v2084
  %v2402 = vunpack.c.l.b16 %v2085
  %v2403 = vunpack.c.h.b16 %v2085
  %v2404 = vunpack.c.l.b16 %v2086
  %v2405 = vunpack.c.h.b16 %v2086
  %v2406 = vunpack.c.l.b16 %v2087
  %v2407 = vunpack.c.h.b16 %v2087
  %v2408 = vunpack.c.l.b16 %v2088
  %v2409 = vunpack.c.h.b16 %v2088
  %v2410 = vunpack.c.l.b16 %v2089
  %v2411 = vunpack.c.h.b16 %v2089
  %v2412 = vunpack.c.l.b16 %v2090
  %v2413 = vunpack.c.h.b16 %v2090
  %v2414 = vunpack.c.l.b16 %v2091
  %v2415 = vunpack.c.h.b16 %v2091
  %v2416 = vunpack.c.l.b16 %v2092
  %v2417 = vunpack.c.h.b16 %v2092
  %v2418 = vunpack.c.l.b16 %v2093
  %v2419 = vunpack.c.h.b16 %v2093
  %v2420 = vunpack.c.l.b16 %v2094
  %v2421 = vunpack.c.h.b16 %v2094
  %v2422 = vunpack.c.l.b16 %v2095
  %v2423 = vunpack.c.h.b16 %v2095
  %v2424 = vunpack.c.l.b16 %v2096
  %v2425 = vunpack.c.h.b16 %v2096
  %v2426 = vunpack.c.l.b16 %v2097
  %v2427 = vunpack.c.h.b16 %v2097
  %v2428 = vunpack.c.l.b16 %v2098
  %v2429 = vunpack.c.h.b16 %v2098
  %v2430 = vunpack.c.l.b16 %v2099
  %v2431 = vunpack.c.h.b16 %v2099
  %v2432 = vunpack.c.l.b16 %v2100
  %v2433 = vunpack.c.h.b16 %v2100
  %v2434 = vunpack.c.l.b16 %v2101
  %v2435 = vunpack.c.h.b16 %v2101
  %v2436 = vunpack.c.l.b16 %v2102
  %v2437 = vunpack.c.h.b16 %v2102
  %v2438 = vunpack.c.l.b16 %v2103
  %v2439 = vunpack.c.h.b16 %v2103
  %v2440 = vunpack.c.l.b16 %v2104
  %v2441 = vunpack.c.h.b16 %v2104
  %v2442 = vunpack.c.l.b16 %v2105
  %v2443 = vunpack.c.h.b16 %v2105
  %v2444 = vunpack.c.l.b16 %v2106
  %v2445 = vunpack.c.h.b16 %v2106
  %v2446 = vunpack.c.l.b16 %v2107
  %v2447 = vunpack.c.h.b16 %v2107
  %v2448 = vunpack.c.l.b16 %v2108
  %v2449 = vunpack.c.h.b16 %v2108
  %v2450 = vunpack.c.l.b16 %v2109
  %v2451 = vunpack.c.h.b16 %v2109
  %v2452 = vunpack.c.l.b16 %v2110
  %v2453 = vunpack.c.h.b16 %v2110
  %v2454 = vunpack.c.l.b16 %v2111
  %v2455 = vunpack.c.h.b16 %v2111
  %v2456 = vunpack.c.l.b16 %v2112
  %v2457 = vunpack.c.h.b16 %v2112
  %v2458 = vunpack.c.l.b16 %v2113
  %v2459 = vunpack.c.h.b16 %v2113
  %v2460 = vunpack.c.l.b16 %v2114
  %v2461 = vunpack.c.h.b16 %v2114
  %v2462 = vunpack.c.l.b16 %v2115
  %v2463 = vunpack.c.h.b16 %v2115
  %v2464 = vunpack.c.l.b16 %v2116
  %v2465 = vunpack.c.h.b16 %v2116
  %v2466 = vunpack.c.l.b16 %v2117
  %v2467 = vunpack.c.h.b16 %v2117
  %v2468 = vunpack.c.l.b16 %v2118
  %v2469 = vunpack.c.h.b16 %v2118
  %v2470 = vunpack.c.l.b16 %v2119
  %v2471 = vunpack.c.h.b16 %v2119
  %v2472 = vunpack.c.l.b16 %v2120
  %v2473 = vunpack.c.h.b16 %v2120
  %v2474 = vunpack.c.l.b16 %v2121
  %v2475 = vunpack.c.h.b16 %v2121
  %v2476 = vunpack.c.l.b16 %v2122
  %v2477 = vunpack.c.h.b16 %v2122
  %v2478 = vunpack.c.l.b16 %v2123
  %v2479 = vunpack.c.h.b16 %v2123
  %v2480 = vunpack.c.l.b16 %v2124
  %v2481 = vunpack.c.h.b16 %v2124
  %v2482 = vunpack.c.l.b16 %v2125
  %v2483 = vunpack.c.h.b16 %v2125
  %v2484 = vunpack.c.l.b16 %v2126
  %v2485 = vunpack.c.h.b16 %v2126
  %v2486 = vunpack.c.l.b16 %v2127
  %v2487 = vunpack.c.h.b16 %v2127
  %v2488 = vunpack.c.l.b16 %v2128
  %v2489 = vunpack.c.h.b16 %v2128
  %v2490 = vunpack.c.l.b16 %v2129
  %v2491 = vunpack.c.h.b16 %v2129
  %v2492 = vunpack.c.l.b16 %v2130
  %v2493 = vunpack.c.h.b16 %v2130
  %v2494 = vunpack.c.l.b16 %v2131
  %v2495 = vunpack.c.h.b16 %v2131
  %v2496 = vunpack.c.l.b16 %v2132
  %v2497 = vunpack.c.h.b16 %v2132
  %v2498 = vunpack.c.l.b16 %v2133
  %v2499 = vunpack.c.h.b16 %v2133
  %v2500 = vunpack.c.l.b16 %v2134
  %v2501 = vunpack.c.h.b16 %v2134
  %v2502 = vunpack.c.l.b16 %v2135
  %v2503 = vunpack.c.h.b16 %v2135
  %v2504 = vunpack.c.l.b16 %v2136
  %v2505 = vunpack.c.h.b16 %v2136
  %v2506 = vunpack.c.l.b16 %v2137
  %v2507 = vunpack.c.h.b16 %v2137
  %v2508 = vunpack.c.l.b16 %v2138
  %v2509 = vunpack.c.h.b16 %v2138
  %v2510 = vunpack.c.l.b16 %v2139
  %v2511 = vunpack.c.h.b16 %v2139
  %v2512 = vunpack.c.l.b16 %v2140
  %v2513 = vunpack.c.h.b16 %v2140
  %v2514 = vunpack.c.l.b16 %v2141
  %v2515 = vunpack.c.h.b16 %v2141
  %v2516 = vunpack.c.l.b16 %v2142
  %v2517 = vunpack.c.h.b16 %v2142
  %v2518 = vunpack.c.l.b16 %v2143
  %v2519 = vunpack.c.h.b16 %v2143
  %v2520 = vunpack.c.l.b16 %v2144
  %v2521 = vunpack.c.h.b16 %v2144
  %v2522 = vunpack.c.l.b16 %v2145
  %v2523 = vunpack.c.h.b16 %v2145
  %v2524 = vunpack.c.l.b16 %v2146
  %v2525 = vunpack.c.h.b16 %v2146
  %v2526 = vunpack.c.l.b16 %v2147
  %v2527 = vunpack.c.h.b16 %v2147
  %v2528 = vunpack.c.l.b16 %v2148
  %v2529 = vunpack.c.h.b16 %v2148
  %v2530 = vunpack.c.l.b16 %v2149
  %v2531 = vunpack.c.h.b16 %v2149
  %v2532 = vunpack.c.l.b16 %v2150
  %v2533 = vunpack.c.h.b16 %v2150
  %v2534 = vunpack.c.l.b16 %v2151
  %v2535 = vunpack.c.h.b16 %v2151
  %v2536 = vpack.c.b16 %v2288, %v2280
  %v2537 = vpack.c.b16 %v2289, %v2281
  %v2538 = vpack.c.b16 %v2290, %v2282
  %v2539 = vpack.c.b16 %v2291, %v2283
  %v2540 = vpack.c.b16 %v2292, %v2284
  %v2541 = vpack.c.b16 %v2293, %v2285
  %v2542 = vpack.c.b16 %v2294, %v2286
  %v2543 = vpack.c.b16 %v2295, %v2287
  %v2544 = vpack.c.b16 %v2304, %v2296
  %v2545 = vpack.c.b16 %v2305, %v2297
  %v2546 = vpack.c.b16 %v2306, %v2298
  %v2547 = vpack.c.b16 %v2307, %v2299
  %v2548 = vpack.c.b16 %v2308, %v2300
  %v2549 = vpack.c.b16 %v2309, %v2301
  %v2550 = vpack.c.b16 %v2310, %v2302
  %v2551 = vpack.c.b16 %v2311, %v2303
  %v2552 = vpack.c.b16 %v2320, %v2312
  %v2553 = vpack.c.b16 %v2321, %v2313
  %v2554 = vpack.c.b16 %v2322, %v2314
  %v2555 = vpack.c.b16 %v2323, %v2315
  %v2556 = vpack.c.b16 %v2324, %v2316
  %v2557 = vpack.c.b16 %v2325, %v2317
  %v2558 = vpack.c.b16 %v2326, %v2318
  %v2559 = vpack.c.b16 %v2327, %v2319
  %v2560 = vpack.c.b16 %v2336, %v2328
  %v2561 = vpack.c.b16 %v2337, %v2329
  %v2562 = vpack.c.b16 %v2338, %v2330
  %v2563 = vpack.c.b16 %v2339, %v2331
  %v2564 = vpack.c.b16 %v2340, %v2332
  %v2565 = vpack.c.b16 %v2341, %v2333
  %v2566 = vpack.c.b16 %v2342, %v2334
  %v2567 = vpack.c.b16 %v2343, %v2335
  %v2568 = vpack.c.b16 %v2352, %v2344
  %v2569 = vpack.c.b16 %v2353, %v2345
  %v2570 = vpack.c.b16 %v2354, %v2346
  %v2571 = vpack.c.b16 %v2355, %v2347
  %v2572 = vpack.c.b16 %v2356, %v2348
  %v2573 = vpack.c.b16 %v2357, %v2349
  %v2574 = vpack.c.b16 %v2358, %v2350
  %v2575 = vpack.c.b16 %v2359, %v2351
  %v2576 = vpack.c.b16 %v2368, %v2360
  %v2577 = vpack.c.b16 %v2369, %v2361
  %v2578 = vpack.c.b16 %v2370, %v2362
  %v2579 = vpack.c.b16 %v2371, %v2363
  %v2580 = vpack.c.b16 %v2372, %v2364
  %v2581 = vpack.c.b16 %v2373, %v2365
  %v2582 = vpack.c.b16 %v2374, %v2366
  %v2583 = vpack.c.b16 %v2375, %v2367
  %v2584 = vpack.c.b16 %v2384, %v2376
  %v2585 = vpack.c.b16 %v2385, %v2377
  %v2586 = vpack.c.b16 %v2386, %v2378
  %v2587 = vpack.c.b16 %v2387, %v2379
  %v2588 = vpack.c.b16 %v2388, %v2380
  %v2589 = vpack.c.b16 %v2389, %v2381
  %v2590 = vpack.c.b16 %v2390, %v2382
  %v2591 = vpack.c.b16 %v2391, %v2383
  %v2592 = vpack.c.b16 %v2400, %v2392
  %v2593 = vpack.c.b16 %v2401, %v2393
  %v2594 = vpack.c.b16 %v2402, %v2394
  %v2595 = vpack.c.b16 %v2403, %v2395
  %v2596 = vpack.c.b16 %v2404, %v2396
  %v2597 = vpack.c.b16 %v2405, %v2397
  %v2598 = vpack.c.b16 %v2406, %v2398
  %v2599 = vpack.c.b16 %v2407, %v2399
  %v2600 = vpack.c.b16 %v2416, %v2408
  %v2601 = vpack.c.b16 %v2417, %v2409
  %v2602 = vpack.c.b16 %v2418, %v2410
  %v2603 = vpack.c.b16 %v2419, %v2411
  %v2604 = vpack.c.b16 %v2420, %v2412
  %v2605 = vpack.c.b16 %v2421, %v2413
  %v2606 = vpack.c.b16 %v2422, %v2414
  %v2607 = vpack.c.b16 %v2423, %v2415
  %v2608 = vpack.c.b16 %v2432, %v2424
  %v2609 = vpack.c.b16 %v2433, %v2425
  %v2610 = vpack.c.b16 %v2434, %v2426
  %v2611 = vpack.c.b16 %v2435, %v2427
  %v2612 = vpack.c.b16 %v2436, %v2428
  %v2613 = vpack.c.b16 %v2437, %v2429
  %v2614 = vpack.c.b16 %v2438, %v2430
  %v2615 = vpack.c.b16 %v2439, %v2431
  %v2616 = vpack.c.b16 %v2448, %v2440
  %v2617 = vpack.c.b16 %v2449, %v2441
  %v2618 = vpack.c.b16 %v2450, %v2442
  %v2619 = vpack.c.b16 %v2451, %v2443
  %v2620 = vpack.c.b16 %v2452, %v2444
  %v2621 = vpack.c.b16 %v2453, %v2445
  %v2622 = vpack.c.b16 %v2454, %v2446
  %v2623 = vpack.c.b16 %v2455, %v2447
  %v2624 = vpack.c.b16 %v2464, %v2456
  %v2625 = vpack.c.b16 %v2465, %v2457
  %v2626 = vpack.c.b16 %v2466, %v2458
  %v2627 = vpack.c.b16 %v2467, %v2459
  %v2628 = vpack.c.b16 %v2468, %v2460
  %v2629 = vpack.c.b16 %v2469, %v2461
  %v2630 = vpack.c.b16 %v2470, %v2462
  %v2631 = vpack.c.b16 %v2471, %v2463
  %v2632 = vpack.c.b16 %v2480, %v2472
  %v2633 = vpack.c.b16 %v2481, %v2473
  %v2634 = vpack.c.b16 %v2482, %v2474
  %v2635 = vpack.c.b16 %v2483, %v2475
  %v2636 = vpack.c.b16 %v2484, %v2476
  %v2637 = vpack.c.b16 %v2485, %v2477
  %v2638 = vpack.c.b16 %v2486, %v2478
  %v2639 = vpack.c.b16 %v2487, %v2479
  %v2640 = vpack.c.b16 %v2496, %v2488
  %v2641 = vpack.c.b16 %v2497, %v2489
  %v2642 = vpack.c.b16 %v2498, %v2490
  %v2643 = vpack.c.b16 %v2499, %v2491
  %v2644 = vpack.c.b16 %v2500, %v2492
  %v2645 = vpack.c.b16 %v2501, %v2493
  %v2646 = vpack.c.b16 %v2502, %v2494
  %v2647 = vpack.c.b16 %v2503, %v2495
  %v2648 = vpack.c.b16 %v2512, %v2504
  %v2649 = vpack.c.b16 %v2513, %v2505
  %v2650 = vpack.c.b16 %v2514, %v2506
  %v2651 = vpack.c.b16 %v2515, %v2507
  %v2652 = vpack.c.b16 %v2516, %v2508
  %v2653 = vpack.c.b16 %v2517, %v2509
  %v2654 = vpack.c.b16 %v2518, %v2510
  %v2655 = vpack.c.b16 %v2519, %v2511
  %v2656 = vpack.c.b16 %v2528, %v2520
  %v2657 = vpack.c.b16 %v2529, %v2521
  %v2658 = vpack.c.b16 %v2530, %v2522
  %v2659 = vpack.c.b16 %v2531, %v2523
  %v2660 = vpack.c.b16 %v2532, %v2524
  %v2661 = vpack.c.b16 %v2533, %v2525
  %v2662 = vpack.c.b16 %v2534, %v2526
  %v2663 = vpack.c.b16 %v2535, %v2527
  %2792 = vmatpush.bf16.msra.mxu0 %v2592
  %2793 = vmatpush.bf16.msra.mxu0 %v2584
  %2794 = vmatpush.bf16.msra.mxu0 %v2576
  %2795 = vmatpush.bf16.msra.mxu0 %v2568
  %2796 = vmatpush.bf16.msra.mxu0 %v2560
  %2797 = vmatpush.bf16.msra.mxu0 %v2552
  %2798 = vmatpush.bf16.msra.mxu0 %v2544
  %2799 = vmatpush.bf16.msra.mxu0 %v2536
  %2800 = vmatmul.bf16.gmra.mxu0 %v162
  %v2801 = vpop.f32.mrf.mxu0
  %v2802 = vadd.f32 0.0, %v2801
  %v2803 = vpop.f32.mrf.mxu0
  %v2804 = vadd.f32 0.0, %v2803
  %2805 = vdwg.mxu0
  %2806 = vmatpush.bf16.msra.mxu0 %v2656
  %2807 = vmatpush.bf16.msra.mxu0 %v2648
  %2808 = vmatpush.bf16.msra.mxu0 %v2640
  %2809 = vmatpush.bf16.msra.mxu0 %v2632
  %2810 = vmatpush.bf16.msra.mxu0 %v2624
  %2811 = vmatpush.bf16.msra.mxu0 %v2616
  %2812 = vmatpush.bf16.msra.mxu0 %v2608
  %2813 = vmatpush.bf16.msra.mxu0 %v2600
  %2814 = vmatmul.bf16.gmra.mxu0 %v163
  %v2815 = vpop.f32.mrf.mxu0
  %v2816 = vadd.f32 %v2802, %v2815
  %v2817 = vpop.f32.mrf.mxu0
  %v2818 = vadd.f32 %v2804, %v2817
  %2819 = vdwg.mxu0
  %2820 = vmatpush.bf16.msra.mxu0 %v2593
  %2821 = vmatpush.bf16.msra.mxu0 %v2585
  %2822 = vmatpush.bf16.msra.mxu0 %v2577
  %2823 = vmatpush.bf16.msra.mxu0 %v2569
  %2824 = vmatpush.bf16.msra.mxu0 %v2561
  %2825 = vmatpush.bf16.msra.mxu0 %v2553
  %2826 = vmatpush.bf16.msra.mxu0 %v2545
  %2827 = vmatpush.bf16.msra.mxu0 %v2537
  %2828 = vmatmul.bf16.gmra.mxu0 %v162
  %v2829 = vpop.f32.mrf.mxu0
  %v2830 = vadd.f32 0.0, %v2829
  %v2831 = vpop.f32.mrf.mxu0
  %v2832 = vadd.f32 0.0, %v2831
  %2833 = vdwg.mxu0
  %2834 = vmatpush.bf16.msra.mxu0 %v2657
  %2835 = vmatpush.bf16.msra.mxu0 %v2649
  %2836 = vmatpush.bf16.msra.mxu0 %v2641
  %2837 = vmatpush.bf16.msra.mxu0 %v2633
  %2838 = vmatpush.bf16.msra.mxu0 %v2625
  %2839 = vmatpush.bf16.msra.mxu0 %v2617
  %2840 = vmatpush.bf16.msra.mxu0 %v2609
  %2841 = vmatpush.bf16.msra.mxu0 %v2601
  %2842 = vmatmul.bf16.gmra.mxu0 %v163
  %v2843 = vpop.f32.mrf.mxu0
  %v2844 = vadd.f32 %v2830, %v2843
  %v2845 = vpop.f32.mrf.mxu0
  %v2846 = vadd.f32 %v2832, %v2845
  %2847 = vdwg.mxu0
  %2848 = vmatpush.bf16.msra.mxu0 %v2594
  %2849 = vmatpush.bf16.msra.mxu0 %v2586
  %2850 = vmatpush.bf16.msra.mxu0 %v2578
  %2851 = vmatpush.bf16.msra.mxu0 %v2570
  %2852 = vmatpush.bf16.msra.mxu0 %v2562
  %2853 = vmatpush.bf16.msra.mxu0 %v2554
  %2854 = vmatpush.bf16.msra.mxu0 %v2546
  %2855 = vmatpush.bf16.msra.mxu0 %v2538
  %2856 = vmatmul.bf16.gmra.mxu0 %v162
  %v2857 = vpop.f32.mrf.mxu0
  %v2858 = vadd.f32 0.0, %v2857
  %v2859 = vpop.f32.mrf.mxu0
  %v2860 = vadd.f32 0.0, %v2859
  %2861 = vdwg.mxu0
  %2862 = vmatpush.bf16.msra.mxu0 %v2658
  %2863 = vmatpush.bf16.msra.mxu0 %v2650
  %2864 = vmatpush.bf16.msra.mxu0 %v2642
  %2865 = vmatpush.bf16.msra.mxu0 %v2634
  %2866 = vmatpush.bf16.msra.mxu0 %v2626
  %2867 = vmatpush.bf16.msra.mxu0 %v2618
  %2868 = vmatpush.bf16.msra.mxu0 %v2610
  %2869 = vmatpush.bf16.msra.mxu0 %v2602
  %2870 = vmatmul.bf16.gmra.mxu0 %v163
  %v2871 = vpop.f32.mrf.mxu0
  %v2872 = vadd.f32 %v2858, %v2871
  %v2873 = vpop.f32.mrf.mxu0
  %v2874 = vadd.f32 %v2860, %v2873
  %2875 = vdwg.mxu0
  %2876 = vmatpush.bf16.msra.mxu0 %v2595
  %2877 = vmatpush.bf16.msra.mxu0 %v2587
  %2878 = vmatpush.bf16.msra.mxu0 %v2579
  %2879 = vmatpush.bf16.msra.mxu0 %v2571
  %2880 = vmatpush.bf16.msra.mxu0 %v2563
  %2881 = vmatpush.bf16.msra.mxu0 %v2555
  %2882 = vmatpush.bf16.msra.mxu0 %v2547
  %2883 = vmatpush.bf16.msra.mxu0 %v2539
  %2884 = vmatmul.bf16.gmra.mxu0 %v162
  %v2885 = vpop.f32.mrf.mxu0
  %v2886 = vadd.f32 0.0, %v2885
  %v2887 = vpop.f32.mrf.mxu0
  %v2888 = vadd.f32 0.0, %v2887
  %2889 = vdwg.mxu0
  %2890 = vmatpush.bf16.msra.mxu0 %v2659
  %2891 = vmatpush.bf16.msra.mxu0 %v2651
  %2892 = vmatpush.bf16.msra.mxu0 %v2643
  %2893 = vmatpush.bf16.msra.mxu0 %v2635
  %2894 = vmatpush.bf16.msra.mxu0 %v2627
  %2895 = vmatpush.bf16.msra.mxu0 %v2619
  %2896 = vmatpush.bf16.msra.mxu0 %v2611
  %2897 = vmatpush.bf16.msra.mxu0 %v2603
  %2898 = vmatmul.bf16.gmra.mxu0 %v163
  %v2899 = vpop.f32.mrf.mxu0
  %v2900 = vadd.f32 %v2886, %v2899
  %v2901 = vpop.f32.mrf.mxu0
  %v2902 = vadd.f32 %v2888, %v2901
  %2903 = vdwg.mxu0
  %2904 = vmatpush.bf16.msra.mxu0 %v2596
  %2905 = vmatpush.bf16.msra.mxu0 %v2588
  %2906 = vmatpush.bf16.msra.mxu0 %v2580
  %2907 = vmatpush.bf16.msra.mxu0 %v2572
  %2908 = vmatpush.bf16.msra.mxu0 %v2564
  %2909 = vmatpush.bf16.msra.mxu0 %v2556
  %2910 = vmatpush.bf16.msra.mxu0 %v2548
  %2911 = vmatpush.bf16.msra.mxu0 %v2540
  %2912 = vmatmul.bf16.gmra.mxu0 %v162
  %v2913 = vpop.f32.mrf.mxu0
  %v2914 = vadd.f32 0.0, %v2913
  %v2915 = vpop.f32.mrf.mxu0
  %v2916 = vadd.f32 0.0, %v2915
  %2917 = vdwg.mxu0
  %2918 = vmatpush.bf16.msra.mxu0 %v2660
  %2919 = vmatpush.bf16.msra.mxu0 %v2652
  %2920 = vmatpush.bf16.msra.mxu0 %v2644
  %2921 = vmatpush.bf16.msra.mxu0 %v2636
  %2922 = vmatpush.bf16.msra.mxu0 %v2628
  %2923 = vmatpush.bf16.msra.mxu0 %v2620
  %2924 = vmatpush.bf16.msra.mxu0 %v2612
  %2925 = vmatpush.bf16.msra.mxu0 %v2604
  %2926 = vmatmul.bf16.gmra.mxu0 %v163
  %v2927 = vpop.f32.mrf.mxu0
  %v2928 = vadd.f32 %v2914, %v2927
  %v2929 = vpop.f32.mrf.mxu0
  %v2930 = vadd.f32 %v2916, %v2929
  %2931 = vdwg.mxu0
  %2932 = vmatpush.bf16.msra.mxu0 %v2597
  %2933 = vmatpush.bf16.msra.mxu0 %v2589
  %2934 = vmatpush.bf16.msra.mxu0 %v2581
  %2935 = vmatpush.bf16.msra.mxu0 %v2573
  %2936 = vmatpush.bf16.msra.mxu0 %v2565
  %2937 = vmatpush.bf16.msra.mxu0 %v2557
  %2938 = vmatpush.bf16.msra.mxu0 %v2549
  %2939 = vmatpush.bf16.msra.mxu0 %v2541
  %2940 = vmatmul.bf16.gmra.mxu0 %v162
  %v2941 = vpop.f32.mrf.mxu0
  %v2942 = vadd.f32 0.0, %v2941
  %v2943 = vpop.f32.mrf.mxu0
  %v2944 = vadd.f32 0.0, %v2943
  %2945 = vdwg.mxu0
  %2946 = vmatpush.bf16.msra.mxu0 %v2661
  %2947 = vmatpush.bf16.msra.mxu0 %v2653
  %2948 = vmatpush.bf16.msra.mxu0 %v2645
  %2949 = vmatpush.bf16.msra.mxu0 %v2637
  %2950 = vmatpush.bf16.msra.mxu0 %v2629
  %2951 = vmatpush.bf16.msra.mxu0 %v2621
  %2952 = vmatpush.bf16.msra.mxu0 %v2613
  %2953 = vmatpush.bf16.msra.mxu0 %v2605
  %2954 = vmatmul.bf16.gmra.mxu0 %v163
  %v2955 = vpop.f32.mrf.mxu0
  %v2956 = vadd.f32 %v2942, %v2955
  %v2957 = vpop.f32.mrf.mxu0
  %v2958 = vadd.f32 %v2944, %v2957
  %2959 = vdwg.mxu0
  %2960 = vmatpush.bf16.msra.mxu0 %v2598
  %2961 = vmatpush.bf16.msra.mxu0 %v2590
  %2962 = vmatpush.bf16.msra.mxu0 %v2582
  %2963 = vmatpush.bf16.msra.mxu0 %v2574
  %2964 = vmatpush.bf16.msra.mxu0 %v2566
  %2965 = vmatpush.bf16.msra.mxu0 %v2558
  %2966 = vmatpush.bf16.msra.mxu0 %v2550
  %2967 = vmatpush.bf16.msra.mxu0 %v2542
  %2968 = vmatmul.bf16.gmra.mxu0 %v162
  %v2969 = vpop.f32.mrf.mxu0
  %v2970 = vadd.f32 0.0, %v2969
  %v2971 = vpop.f32.mrf.mxu0
  %v2972 = vadd.f32 0.0, %v2971
  %2973 = vdwg.mxu0
  %2974 = vmatpush.bf16.msra.mxu0 %v2662
  %2975 = vmatpush.bf16.msra.mxu0 %v2654
  %2976 = vmatpush.bf16.msra.mxu0 %v2646
  %2977 = vmatpush.bf16.msra.mxu0 %v2638
  %2978 = vmatpush.bf16.msra.mxu0 %v2630
  %2979 = vmatpush.bf16.msra.mxu0 %v2622
  %2980 = vmatpush.bf16.msra.mxu0 %v2614
  %2981 = vmatpush.bf16.msra.mxu0 %v2606
  %2982 = vmatmul.bf16.gmra.mxu0 %v163
  %v2983 = vpop.f32.mrf.mxu0
  %v2984 = vadd.f32 %v2970, %v2983
  %v2985 = vpop.f32.mrf.mxu0
  %v2986 = vadd.f32 %v2972, %v2985
  %2987 = vdwg.mxu0
  %2988 = vmatpush.bf16.msra.mxu0 %v2599
  %2989 = vmatpush.bf16.msra.mxu0 %v2591
  %2990 = vmatpush.bf16.msra.mxu0 %v2583
  %2991 = vmatpush.bf16.msra.mxu0 %v2575
  %2992 = vmatpush.bf16.msra.mxu0 %v2567
  %2993 = vmatpush.bf16.msra.mxu0 %v2559
  %2994 = vmatpush.bf16.msra.mxu0 %v2551
  %2995 = vmatpush.bf16.msra.mxu0 %v2543
  %2996 = vmatmul.bf16.gmra.mxu0 %v162
  %v2997 = vpop.f32.mrf.mxu0
  %v2998 = vadd.f32 0.0, %v2997
  %v2999 = vpop.f32.mrf.mxu0
  %v3000 = vadd.f32 0.0, %v2999
  %3001 = vdwg.mxu0
  %3002 = vmatpush.bf16.msra.mxu0 %v2663
  %3003 = vmatpush.bf16.msra.mxu0 %v2655
  %3004 = vmatpush.bf16.msra.mxu0 %v2647
  %3005 = vmatpush.bf16.msra.mxu0 %v2639
  %3006 = vmatpush.bf16.msra.mxu0 %v2631
  %3007 = vmatpush.bf16.msra.mxu0 %v2623
  %3008 = vmatpush.bf16.msra.mxu0 %v2615
  %3009 = vmatpush.bf16.msra.mxu0 %v2607
  %3010 = vmatmul.bf16.gmra.mxu0 %v163
  %v3011 = vpop.f32.mrf.mxu0
  %v3012 = vadd.f32 %v2998, %v3011
  %v3013 = vpop.f32.mrf.mxu0
  %v3014 = vadd.f32 %v3000, %v3013
  %3015 = vdwg.mxu0
  %s3016 = scalar_lea.vmem %s0, 3072
  %v3017 = vld [vmem:[%s3016] sm:$0xff]
  %v3018 = vld [vmem:[%s3016 + $0x8] sm:$0xff]
  %v3019 = vld [vmem:[%s3016 + $0x10] sm:$0xff]
  %v3020 = vld [vmem:[%s3016 + $0x18] sm:$0xff]
  %v3021 = vld [vmem:[%s3016 + $0x20] sm:$0xff]
  %v3022 = vld [vmem:[%s3016 + $0x28] sm:$0xff]
  %v3023 = vld [vmem:[%s3016 + $0x30] sm:$0xff]
  %v3024 = vld [vmem:[%s3016 + $0x38] sm:$0xff]
  %v3025 = vld [vmem:[%s3016 + $0x40] sm:$0xff]
  %v3026 = vld [vmem:[%s3016 + $0x48] sm:$0xff]
  %v3027 = vld [vmem:[%s3016 + $0x50] sm:$0xff]
  %v3028 = vld [vmem:[%s3016 + $0x58] sm:$0xff]
  %v3029 = vld [vmem:[%s3016 + $0x60] sm:$0xff]
  %v3030 = vld [vmem:[%s3016 + $0x68] sm:$0xff]
  %v3031 = vld [vmem:[%s3016 + $0x70] sm:$0xff]
  %v3032 = vld [vmem:[%s3016 + $0x78] sm:$0xff]
  %v3033 = vld [vmem:[%s3016 + $0x80] sm:$0xff]
  %v3034 = vld [vmem:[%s3016 + $0x88] sm:$0xff]
  %v3035 = vld [vmem:[%s3016 + $0x90] sm:$0xff]
  %v3036 = vld [vmem:[%s3016 + $0x98] sm:$0xff]
  %v3037 = vld [vmem:[%s3016 + $0xa0] sm:$0xff]
  %v3038 = vld [vmem:[%s3016 + $0xa8] sm:$0xff]
  %v3039 = vld [vmem:[%s3016 + $0xb0] sm:$0xff]
  %v3040 = vld [vmem:[%s3016 + $0xb8] sm:$0xff]
  %v3041 = vld [vmem:[%s3016 + $0xc0] sm:$0xff]
  %v3042 = vld [vmem:[%s3016 + $0xc8] sm:$0xff]
  %v3043 = vld [vmem:[%s3016 + $0xd0] sm:$0xff]
  %v3044 = vld [vmem:[%s3016 + $0xd8] sm:$0xff]
  %v3045 = vld [vmem:[%s3016 + $0xe0] sm:$0xff]
  %v3046 = vld [vmem:[%s3016 + $0xe8] sm:$0xff]
  %v3047 = vld [vmem:[%s3016 + $0xf0] sm:$0xff]
  %v3048 = vld [vmem:[%s3016 + $0xf8] sm:$0xff]
  %v3049 = vld [vmem:[%s3016 + $0x100] sm:$0xff]
  %v3050 = vld [vmem:[%s3016 + $0x108] sm:$0xff]
  %v3051 = vld [vmem:[%s3016 + $0x110] sm:$0xff]
  %v3052 = vld [vmem:[%s3016 + $0x118] sm:$0xff]
  %v3053 = vld [vmem:[%s3016 + $0x120] sm:$0xff]
  %v3054 = vld [vmem:[%s3016 + $0x128] sm:$0xff]
  %v3055 = vld [vmem:[%s3016 + $0x130] sm:$0xff]
  %v3056 = vld [vmem:[%s3016 + $0x138] sm:$0xff]
  %v3057 = vld [vmem:[%s3016 + $0x140] sm:$0xff]
  %v3058 = vld [vmem:[%s3016 + $0x148] sm:$0xff]
  %v3059 = vld [vmem:[%s3016 + $0x150] sm:$0xff]
  %v3060 = vld [vmem:[%s3016 + $0x158] sm:$0xff]
  %v3061 = vld [vmem:[%s3016 + $0x160] sm:$0xff]
  %v3062 = vld [vmem:[%s3016 + $0x168] sm:$0xff]
  %v3063 = vld [vmem:[%s3016 + $0x170] sm:$0xff]
  %v3064 = vld [vmem:[%s3016 + $0x178] sm:$0xff]
  %v3065 = vld [vmem:[%s3016 + $0x180] sm:$0xff]
  %v3066 = vld [vmem:[%s3016 + $0x188] sm:$0xff]
  %v3067 = vld [vmem:[%s3016 + $0x190] sm:$0xff]
  %v3068 = vld [vmem:[%s3016 + $0x198] sm:$0xff]
  %v3069 = vld [vmem:[%s3016 + $0x1a0] sm:$0xff]
  %v3070 = vld [vmem:[%s3016 + $0x1a8] sm:$0xff]
  %v3071 = vld [vmem:[%s3016 + $0x1b0] sm:$0xff]
  %v3072 = vld [vmem:[%s3016 + $0x1b8] sm:$0xff]
  %v3073 = vld [vmem:[%s3016 + $0x1c0] sm:$0xff]
  %v3074 = vld [vmem:[%s3016 + $0x1c8] sm:$0xff]
  %v3075 = vld [vmem:[%s3016 + $0x1d0] sm:$0xff]
  %v3076 = vld [vmem:[%s3016 + $0x1d8] sm:$0xff]
  %v3077 = vld [vmem:[%s3016 + $0x1e0] sm:$0xff]
  %v3078 = vld [vmem:[%s3016 + $0x1e8] sm:$0xff]
  %v3079 = vld [vmem:[%s3016 + $0x1f0] sm:$0xff]
  %v3080 = vld [vmem:[%s3016 + $0x1f8] sm:$0xff]
  %v3081 = vld [vmem:[%s3016 + $0x200] sm:$0xff]
  %v3082 = vld [vmem:[%s3016 + $0x208] sm:$0xff]
  %v3083 = vld [vmem:[%s3016 + $0x210] sm:$0xff]
  %v3084 = vld [vmem:[%s3016 + $0x218] sm:$0xff]
  %v3085 = vld [vmem:[%s3016 + $0x220] sm:$0xff]
  %v3086 = vld [vmem:[%s3016 + $0x228] sm:$0xff]
  %v3087 = vld [vmem:[%s3016 + $0x230] sm:$0xff]
  %v3088 = vld [vmem:[%s3016 + $0x238] sm:$0xff]
  %v3089 = vld [vmem:[%s3016 + $0x240] sm:$0xff]
  %v3090 = vld [vmem:[%s3016 + $0x248] sm:$0xff]
  %v3091 = vld [vmem:[%s3016 + $0x250] sm:$0xff]
  %v3092 = vld [vmem:[%s3016 + $0x258] sm:$0xff]
  %v3093 = vld [vmem:[%s3016 + $0x260] sm:$0xff]
  %v3094 = vld [vmem:[%s3016 + $0x268] sm:$0xff]
  %v3095 = vld [vmem:[%s3016 + $0x270] sm:$0xff]
  %v3096 = vld [vmem:[%s3016 + $0x278] sm:$0xff]
  %v3097 = vld [vmem:[%s3016 + $0x280] sm:$0xff]
  %v3098 = vld [vmem:[%s3016 + $0x288] sm:$0xff]
  %v3099 = vld [vmem:[%s3016 + $0x290] sm:$0xff]
  %v3100 = vld [vmem:[%s3016 + $0x298] sm:$0xff]
  %v3101 = vld [vmem:[%s3016 + $0x2a0] sm:$0xff]
  %v3102 = vld [vmem:[%s3016 + $0x2a8] sm:$0xff]
  %v3103 = vld [vmem:[%s3016 + $0x2b0] sm:$0xff]
  %v3104 = vld [vmem:[%s3016 + $0x2b8] sm:$0xff]
  %v3105 = vld [vmem:[%s3016 + $0x2c0] sm:$0xff]
  %v3106 = vld [vmem:[%s3016 + $0x2c8] sm:$0xff]
  %v3107 = vld [vmem:[%s3016 + $0x2d0] sm:$0xff]
  %v3108 = vld [vmem:[%s3016 + $0x2d8] sm:$0xff]
  %v3109 = vld [vmem:[%s3016 + $0x2e0] sm:$0xff]
  %v3110 = vld [vmem:[%s3016 + $0x2e8] sm:$0xff]
  %v3111 = vld [vmem:[%s3016 + $0x2f0] sm:$0xff]
  %v3112 = vld [vmem:[%s3016 + $0x2f8] sm:$0xff]
  %v3113 = vld [vmem:[%s3016 + $0x300] sm:$0xff]
  %v3114 = vld [vmem:[%s3016 + $0x308] sm:$0xff]
  %v3115 = vld [vmem:[%s3016 + $0x310] sm:$0xff]
  %v3116 = vld [vmem:[%s3016 + $0x318] sm:$0xff]
  %v3117 = vld [vmem:[%s3016 + $0x320] sm:$0xff]
  %v3118 = vld [vmem:[%s3016 + $0x328] sm:$0xff]
  %v3119 = vld [vmem:[%s3016 + $0x330] sm:$0xff]
  %v3120 = vld [vmem:[%s3016 + $0x338] sm:$0xff]
  %v3121 = vld [vmem:[%s3016 + $0x340] sm:$0xff]
  %v3122 = vld [vmem:[%s3016 + $0x348] sm:$0xff]
  %v3123 = vld [vmem:[%s3016 + $0x350] sm:$0xff]
  %v3124 = vld [vmem:[%s3016 + $0x358] sm:$0xff]
  %v3125 = vld [vmem:[%s3016 + $0x360] sm:$0xff]
  %v3126 = vld [vmem:[%s3016 + $0x368] sm:$0xff]
  %v3127 = vld [vmem:[%s3016 + $0x370] sm:$0xff]
  %v3128 = vld [vmem:[%s3016 + $0x378] sm:$0xff]
  %v3129 = vld [vmem:[%s3016 + $0x380] sm:$0xff]
  %v3130 = vld [vmem:[%s3016 + $0x388] sm:$0xff]
  %v3131 = vld [vmem:[%s3016 + $0x390] sm:$0xff]
  %v3132 = vld [vmem:[%s3016 + $0x398] sm:$0xff]
  %v3133 = vld [vmem:[%s3016 + $0x3a0] sm:$0xff]
  %v3134 = vld [vmem:[%s3016 + $0x3a8] sm:$0xff]
  %v3135 = vld [vmem:[%s3016 + $0x3b0] sm:$0xff]
  %v3136 = vld [vmem:[%s3016 + $0x3b8] sm:$0xff]
  %v3137 = vld [vmem:[%s3016 + $0x3c0] sm:$0xff]
  %v3138 = vld [vmem:[%s3016 + $0x3c8] sm:$0xff]
  %v3139 = vld [vmem:[%s3016 + $0x3d0] sm:$0xff]
  %v3140 = vld [vmem:[%s3016 + $0x3d8] sm:$0xff]
  %v3141 = vld [vmem:[%s3016 + $0x3e0] sm:$0xff]
  %v3142 = vld [vmem:[%s3016 + $0x3e8] sm:$0xff]
  %v3143 = vld [vmem:[%s3016 + $0x3f0] sm:$0xff]
  %v3144 = vld [vmem:[%s3016 + $0x3f8] sm:$0xff]
  %v3273 = vunpack.c.l.b16 %v3017
  %v3274 = vunpack.c.h.b16 %v3017
  %v3275 = vunpack.c.l.b16 %v3018
  %v3276 = vunpack.c.h.b16 %v3018
  %v3277 = vunpack.c.l.b16 %v3019
  %v3278 = vunpack.c.h.b16 %v3019
  %v3279 = vunpack.c.l.b16 %v3020
  %v3280 = vunpack.c.h.b16 %v3020
  %v3281 = vunpack.c.l.b16 %v3021
  %v3282 = vunpack.c.h.b16 %v3021
  %v3283 = vunpack.c.l.b16 %v3022
  %v3284 = vunpack.c.h.b16 %v3022
  %v3285 = vunpack.c.l.b16 %v3023
  %v3286 = vunpack.c.h.b16 %v3023
  %v3287 = vunpack.c.l.b16 %v3024
  %v3288 = vunpack.c.h.b16 %v3024
  %v3289 = vunpack.c.l.b16 %v3025
  %v3290 = vunpack.c.h.b16 %v3025
  %v3291 = vunpack.c.l.b16 %v3026
  %v3292 = vunpack.c.h.b16 %v3026
  %v3293 = vunpack.c.l.b16 %v3027
  %v3294 = vunpack.c.h.b16 %v3027
  %v3295 = vunpack.c.l.b16 %v3028
  %v3296 = vunpack.c.h.b16 %v3028
  %v3297 = vunpack.c.l.b16 %v3029
  %v3298 = vunpack.c.h.b16 %v3029
  %v3299 = vunpack.c.l.b16 %v3030
  %v3300 = vunpack.c.h.b16 %v3030
  %v3301 = vunpack.c.l.b16 %v3031
  %v3302 = vunpack.c.h.b16 %v3031
  %v3303 = vunpack.c.l.b16 %v3032
  %v3304 = vunpack.c.h.b16 %v3032
  %v3305 = vunpack.c.l.b16 %v3033
  %v3306 = vunpack.c.h.b16 %v3033
  %v3307 = vunpack.c.l.b16 %v3034
  %v3308 = vunpack.c.h.b16 %v3034
  %v3309 = vunpack.c.l.b16 %v3035
  %v3310 = vunpack.c.h.b16 %v3035
  %v3311 = vunpack.c.l.b16 %v3036
  %v3312 = vunpack.c.h.b16 %v3036
  %v3313 = vunpack.c.l.b16 %v3037
  %v3314 = vunpack.c.h.b16 %v3037
  %v3315 = vunpack.c.l.b16 %v3038
  %v3316 = vunpack.c.h.b16 %v3038
  %v3317 = vunpack.c.l.b16 %v3039
  %v3318 = vunpack.c.h.b16 %v3039
  %v3319 = vunpack.c.l.b16 %v3040
  %v3320 = vunpack.c.h.b16 %v3040
  %v3321 = vunpack.c.l.b16 %v3041
  %v3322 = vunpack.c.h.b16 %v3041
  %v3323 = vunpack.c.l.b16 %v3042
  %v3324 = vunpack.c.h.b16 %v3042
  %v3325 = vunpack.c.l.b16 %v3043
  %v3326 = vunpack.c.h.b16 %v3043
  %v3327 = vunpack.c.l.b16 %v3044
  %v3328 = vunpack.c.h.b16 %v3044
  %v3329 = vunpack.c.l.b16 %v3045
  %v3330 = vunpack.c.h.b16 %v3045
  %v3331 = vunpack.c.l.b16 %v3046
  %v3332 = vunpack.c.h.b16 %v3046
  %v3333 = vunpack.c.l.b16 %v3047
  %v3334 = vunpack.c.h.b16 %v3047
  %v3335 = vunpack.c.l.b16 %v3048
  %v3336 = vunpack.c.h.b16 %v3048
  %v3337 = vunpack.c.l.b16 %v3049
  %v3338 = vunpack.c.h.b16 %v3049
  %v3339 = vunpack.c.l.b16 %v3050
  %v3340 = vunpack.c.h.b16 %v3050
  %v3341 = vunpack.c.l.b16 %v3051
  %v3342 = vunpack.c.h.b16 %v3051
  %v3343 = vunpack.c.l.b16 %v3052
  %v3344 = vunpack.c.h.b16 %v3052
  %v3345 = vunpack.c.l.b16 %v3053
  %v3346 = vunpack.c.h.b16 %v3053
  %v3347 = vunpack.c.l.b16 %v3054
  %v3348 = vunpack.c.h.b16 %v3054
  %v3349 = vunpack.c.l.b16 %v3055
  %v3350 = vunpack.c.h.b16 %v3055
  %v3351 = vunpack.c.l.b16 %v3056
  %v3352 = vunpack.c.h.b16 %v3056
  %v3353 = vunpack.c.l.b16 %v3057
  %v3354 = vunpack.c.h.b16 %v3057
  %v3355 = vunpack.c.l.b16 %v3058
  %v3356 = vunpack.c.h.b16 %v3058
  %v3357 = vunpack.c.l.b16 %v3059
  %v3358 = vunpack.c.h.b16 %v3059
  %v3359 = vunpack.c.l.b16 %v3060
  %v3360 = vunpack.c.h.b16 %v3060
  %v3361 = vunpack.c.l.b16 %v3061
  %v3362 = vunpack.c.h.b16 %v3061
  %v3363 = vunpack.c.l.b16 %v3062
  %v3364 = vunpack.c.h.b16 %v3062
  %v3365 = vunpack.c.l.b16 %v3063
  %v3366 = vunpack.c.h.b16 %v3063
  %v3367 = vunpack.c.l.b16 %v3064
  %v3368 = vunpack.c.h.b16 %v3064
  %v3369 = vunpack.c.l.b16 %v3065
  %v3370 = vunpack.c.h.b16 %v3065
  %v3371 = vunpack.c.l.b16 %v3066
  %v3372 = vunpack.c.h.b16 %v3066
  %v3373 = vunpack.c.l.b16 %v3067
  %v3374 = vunpack.c.h.b16 %v3067
  %v3375 = vunpack.c.l.b16 %v3068
  %v3376 = vunpack.c.h.b16 %v3068
  %v3377 = vunpack.c.l.b16 %v3069
  %v3378 = vunpack.c.h.b16 %v3069
  %v3379 = vunpack.c.l.b16 %v3070
  %v3380 = vunpack.c.h.b16 %v3070
  %v3381 = vunpack.c.l.b16 %v3071
  %v3382 = vunpack.c.h.b16 %v3071
  %v3383 = vunpack.c.l.b16 %v3072
  %v3384 = vunpack.c.h.b16 %v3072
  %v3385 = vunpack.c.l.b16 %v3073
  %v3386 = vunpack.c.h.b16 %v3073
  %v3387 = vunpack.c.l.b16 %v3074
  %v3388 = vunpack.c.h.b16 %v3074
  %v3389 = vunpack.c.l.b16 %v3075
  %v3390 = vunpack.c.h.b16 %v3075
  %v3391 = vunpack.c.l.b16 %v3076
  %v3392 = vunpack.c.h.b16 %v3076
  %v3393 = vunpack.c.l.b16 %v3077
  %v3394 = vunpack.c.h.b16 %v3077
  %v3395 = vunpack.c.l.b16 %v3078
  %v3396 = vunpack.c.h.b16 %v3078
  %v3397 = vunpack.c.l.b16 %v3079
  %v3398 = vunpack.c.h.b16 %v3079
  %v3399 = vunpack.c.l.b16 %v3080
  %v3400 = vunpack.c.h.b16 %v3080
  %v3401 = vunpack.c.l.b16 %v3081
  %v3402 = vunpack.c.h.b16 %v3081
  %v3403 = vunpack.c.l.b16 %v3082
  %v3404 = vunpack.c.h.b16 %v3082
  %v3405 = vunpack.c.l.b16 %v3083
  %v3406 = vunpack.c.h.b16 %v3083
  %v3407 = vunpack.c.l.b16 %v3084
  %v3408 = vunpack.c.h.b16 %v3084
  %v3409 = vunpack.c.l.b16 %v3085
  %v3410 = vunpack.c.h.b16 %v3085
  %v3411 = vunpack.c.l.b16 %v3086
  %v3412 = vunpack.c.h.b16 %v3086
  %v3413 = vunpack.c.l.b16 %v3087
  %v3414 = vunpack.c.h.b16 %v3087
  %v3415 = vunpack.c.l.b16 %v3088
  %v3416 = vunpack.c.h.b16 %v3088
  %v3417 = vunpack.c.l.b16 %v3089
  %v3418 = vunpack.c.h.b16 %v3089
  %v3419 = vunpack.c.l.b16 %v3090
  %v3420 = vunpack.c.h.b16 %v3090
  %v3421 = vunpack.c.l.b16 %v3091
  %v3422 = vunpack.c.h.b16 %v3091
  %v3423 = vunpack.c.l.b16 %v3092
  %v3424 = vunpack.c.h.b16 %v3092
  %v3425 = vunpack.c.l.b16 %v3093
  %v3426 = vunpack.c.h.b16 %v3093
  %v3427 = vunpack.c.l.b16 %v3094
  %v3428 = vunpack.c.h.b16 %v3094
  %v3429 = vunpack.c.l.b16 %v3095
  %v3430 = vunpack.c.h.b16 %v3095
  %v3431 = vunpack.c.l.b16 %v3096
  %v3432 = vunpack.c.h.b16 %v3096
  %v3433 = vunpack.c.l.b16 %v3097
  %v3434 = vunpack.c.h.b16 %v3097
  %v3435 = vunpack.c.l.b16 %v3098
  %v3436 = vunpack.c.h.b16 %v3098
  %v3437 = vunpack.c.l.b16 %v3099
  %v3438 = vunpack.c.h.b16 %v3099
  %v3439 = vunpack.c.l.b16 %v3100
  %v3440 = vunpack.c.h.b16 %v3100
  %v3441 = vunpack.c.l.b16 %v3101
  %v3442 = vunpack.c.h.b16 %v3101
  %v3443 = vunpack.c.l.b16 %v3102
  %v3444 = vunpack.c.h.b16 %v3102
  %v3445 = vunpack.c.l.b16 %v3103
  %v3446 = vunpack.c.h.b16 %v3103
  %v3447 = vunpack.c.l.b16 %v3104
  %v3448 = vunpack.c.h.b16 %v3104
  %v3449 = vunpack.c.l.b16 %v3105
  %v3450 = vunpack.c.h.b16 %v3105
  %v3451 = vunpack.c.l.b16 %v3106
  %v3452 = vunpack.c.h.b16 %v3106
  %v3453 = vunpack.c.l.b16 %v3107
  %v3454 = vunpack.c.h.b16 %v3107
  %v3455 = vunpack.c.l.b16 %v3108
  %v3456 = vunpack.c.h.b16 %v3108
  %v3457 = vunpack.c.l.b16 %v3109
  %v3458 = vunpack.c.h.b16 %v3109
  %v3459 = vunpack.c.l.b16 %v3110
  %v3460 = vunpack.c.h.b16 %v3110
  %v3461 = vunpack.c.l.b16 %v3111
  %v3462 = vunpack.c.h.b16 %v3111
  %v3463 = vunpack.c.l.b16 %v3112
  %v3464 = vunpack.c.h.b16 %v3112
  %v3465 = vunpack.c.l.b16 %v3113
  %v3466 = vunpack.c.h.b16 %v3113
  %v3467 = vunpack.c.l.b16 %v3114
  %v3468 = vunpack.c.h.b16 %v3114
  %v3469 = vunpack.c.l.b16 %v3115
  %v3470 = vunpack.c.h.b16 %v3115
  %v3471 = vunpack.c.l.b16 %v3116
  %v3472 = vunpack.c.h.b16 %v3116
  %v3473 = vunpack.c.l.b16 %v3117
  %v3474 = vunpack.c.h.b16 %v3117
  %v3475 = vunpack.c.l.b16 %v3118
  %v3476 = vunpack.c.h.b16 %v3118
  %v3477 = vunpack.c.l.b16 %v3119
  %v3478 = vunpack.c.h.b16 %v3119
  %v3479 = vunpack.c.l.b16 %v3120
  %v3480 = vunpack.c.h.b16 %v3120
  %v3481 = vunpack.c.l.b16 %v3121
  %v3482 = vunpack.c.h.b16 %v3121
  %v3483 = vunpack.c.l.b16 %v3122
  %v3484 = vunpack.c.h.b16 %v3122
  %v3485 = vunpack.c.l.b16 %v3123
  %v3486 = vunpack.c.h.b16 %v3123
  %v3487 = vunpack.c.l.b16 %v3124
  %v3488 = vunpack.c.h.b16 %v3124
  %v3489 = vunpack.c.l.b16 %v3125
  %v3490 = vunpack.c.h.b16 %v3125
  %v3491 = vunpack.c.l.b16 %v3126
  %v3492 = vunpack.c.h.b16 %v3126
  %v3493 = vunpack.c.l.b16 %v3127
  %v3494 = vunpack.c.h.b16 %v3127
  %v3495 = vunpack.c.l.b16 %v3128
  %v3496 = vunpack.c.h.b16 %v3128
  %v3497 = vunpack.c.l.b16 %v3129
  %v3498 = vunpack.c.h.b16 %v3129
  %v3499 = vunpack.c.l.b16 %v3130
  %v3500 = vunpack.c.h.b16 %v3130
  %v3501 = vunpack.c.l.b16 %v3131
  %v3502 = vunpack.c.h.b16 %v3131
  %v3503 = vunpack.c.l.b16 %v3132
  %v3504 = vunpack.c.h.b16 %v3132
  %v3505 = vunpack.c.l.b16 %v3133
  %v3506 = vunpack.c.h.b16 %v3133
  %v3507 = vunpack.c.l.b16 %v3134
  %v3508 = vunpack.c.h.b16 %v3134
  %v3509 = vunpack.c.l.b16 %v3135
  %v3510 = vunpack.c.h.b16 %v3135
  %v3511 = vunpack.c.l.b16 %v3136
  %v3512 = vunpack.c.h.b16 %v3136
  %v3513 = vunpack.c.l.b16 %v3137
  %v3514 = vunpack.c.h.b16 %v3137
  %v3515 = vunpack.c.l.b16 %v3138
  %v3516 = vunpack.c.h.b16 %v3138
  %v3517 = vunpack.c.l.b16 %v3139
  %v3518 = vunpack.c.h.b16 %v3139
  %v3519 = vunpack.c.l.b16 %v3140
  %v3520 = vunpack.c.h.b16 %v3140
  %v3521 = vunpack.c.l.b16 %v3141
  %v3522 = vunpack.c.h.b16 %v3141
  %v3523 = vunpack.c.l.b16 %v3142
  %v3524 = vunpack.c.h.b16 %v3142
  %v3525 = vunpack.c.l.b16 %v3143
  %v3526 = vunpack.c.h.b16 %v3143
  %v3527 = vunpack.c.l.b16 %v3144
  %v3528 = vunpack.c.h.b16 %v3144
  %v3529 = vpack.c.b16 %v3281, %v3273
  %v3530 = vpack.c.b16 %v3282, %v3274
  %v3531 = vpack.c.b16 %v3283, %v3275
  %v3532 = vpack.c.b16 %v3284, %v3276
  %v3533 = vpack.c.b16 %v3285, %v3277
  %v3534 = vpack.c.b16 %v3286, %v3278
  %v3535 = vpack.c.b16 %v3287, %v3279
  %v3536 = vpack.c.b16 %v3288, %v3280
  %v3537 = vpack.c.b16 %v3297, %v3289
  %v3538 = vpack.c.b16 %v3298, %v3290
  %v3539 = vpack.c.b16 %v3299, %v3291
  %v3540 = vpack.c.b16 %v3300, %v3292
  %v3541 = vpack.c.b16 %v3301, %v3293
  %v3542 = vpack.c.b16 %v3302, %v3294
  %v3543 = vpack.c.b16 %v3303, %v3295
  %v3544 = vpack.c.b16 %v3304, %v3296
  %v3545 = vpack.c.b16 %v3313, %v3305
  %v3546 = vpack.c.b16 %v3314, %v3306
  %v3547 = vpack.c.b16 %v3315, %v3307
  %v3548 = vpack.c.b16 %v3316, %v3308
  %v3549 = vpack.c.b16 %v3317, %v3309
  %v3550 = vpack.c.b16 %v3318, %v3310
  %v3551 = vpack.c.b16 %v3319, %v3311
  %v3552 = vpack.c.b16 %v3320, %v3312
  %v3553 = vpack.c.b16 %v3329, %v3321
  %v3554 = vpack.c.b16 %v3330, %v3322
  %v3555 = vpack.c.b16 %v3331, %v3323
  %v3556 = vpack.c.b16 %v3332, %v3324
  %v3557 = vpack.c.b16 %v3333, %v3325
  %v3558 = vpack.c.b16 %v3334, %v3326
  %v3559 = vpack.c.b16 %v3335, %v3327
  %v3560 = vpack.c.b16 %v3336, %v3328
  %v3561 = vpack.c.b16 %v3345, %v3337
  %v3562 = vpack.c.b16 %v3346, %v3338
  %v3563 = vpack.c.b16 %v3347, %v3339
  %v3564 = vpack.c.b16 %v3348, %v3340
  %v3565 = vpack.c.b16 %v3349, %v3341
  %v3566 = vpack.c.b16 %v3350, %v3342
  %v3567 = vpack.c.b16 %v3351, %v3343
  %v3568 = vpack.c.b16 %v3352, %v3344
  %v3569 = vpack.c.b16 %v3361, %v3353
  %v3570 = vpack.c.b16 %v3362, %v3354
  %v3571 = vpack.c.b16 %v3363, %v3355
  %v3572 = vpack.c.b16 %v3364, %v3356
  %v3573 = vpack.c.b16 %v3365, %v3357
  %v3574 = vpack.c.b16 %v3366, %v3358
  %v3575 = vpack.c.b16 %v3367, %v3359
  %v3576 = vpack.c.b16 %v3368, %v3360
  %v3577 = vpack.c.b16 %v3377, %v3369
  %v3578 = vpack.c.b16 %v3378, %v3370
  %v3579 = vpack.c.b16 %v3379, %v3371
  %v3580 = vpack.c.b16 %v3380, %v3372
  %v3581 = vpack.c.b16 %v3381, %v3373
  %v3582 = vpack.c.b16 %v3382, %v3374
  %v3583 = vpack.c.b16 %v3383, %v3375
  %v3584 = vpack.c.b16 %v3384, %v3376
  %v3585 = vpack.c.b16 %v3393, %v3385
  %v3586 = vpack.c.b16 %v3394, %v3386
  %v3587 = vpack.c.b16 %v3395, %v3387
  %v3588 = vpack.c.b16 %v3396, %v3388
  %v3589 = vpack.c.b16 %v3397, %v3389
  %v3590 = vpack.c.b16 %v3398, %v3390
  %v3591 = vpack.c.b16 %v3399, %v3391
  %v3592 = vpack.c.b16 %v3400, %v3392
  %v3593 = vpack.c.b16 %v3409, %v3401
  %v3594 = vpack.c.b16 %v3410, %v3402
  %v3595 = vpack.c.b16 %v3411, %v3403
  %v3596 = vpack.c.b16 %v3412, %v3404
  %v3597 = vpack.c.b16 %v3413, %v3405
  %v3598 = vpack.c.b16 %v3414, %v3406
  %v3599 = vpack.c.b16 %v3415, %v3407
  %v3600 = vpack.c.b16 %v3416, %v3408
  %v3601 = vpack.c.b16 %v3425, %v3417
  %v3602 = vpack.c.b16 %v3426, %v3418
  %v3603 = vpack.c.b16 %v3427, %v3419
  %v3604 = vpack.c.b16 %v3428, %v3420
  %v3605 = vpack.c.b16 %v3429, %v3421
  %v3606 = vpack.c.b16 %v3430, %v3422
  %v3607 = vpack.c.b16 %v3431, %v3423
  %v3608 = vpack.c.b16 %v3432, %v3424
  %v3609 = vpack.c.b16 %v3441, %v3433
  %v3610 = vpack.c.b16 %v3442, %v3434
  %v3611 = vpack.c.b16 %v3443, %v3435
  %v3612 = vpack.c.b16 %v3444, %v3436
  %v3613 = vpack.c.b16 %v3445, %v3437
  %v3614 = vpack.c.b16 %v3446, %v3438
  %v3615 = vpack.c.b16 %v3447, %v3439
  %v3616 = vpack.c.b16 %v3448, %v3440
  %v3617 = vpack.c.b16 %v3457, %v3449
  %v3618 = vpack.c.b16 %v3458, %v3450
  %v3619 = vpack.c.b16 %v3459, %v3451
  %v3620 = vpack.c.b16 %v3460, %v3452
  %v3621 = vpack.c.b16 %v3461, %v3453
  %v3622 = vpack.c.b16 %v3462, %v3454
  %v3623 = vpack.c.b16 %v3463, %v3455
  %v3624 = vpack.c.b16 %v3464, %v3456
  %v3625 = vpack.c.b16 %v3473, %v3465
  %v3626 = vpack.c.b16 %v3474, %v3466
  %v3627 = vpack.c.b16 %v3475, %v3467
  %v3628 = vpack.c.b16 %v3476, %v3468
  %v3629 = vpack.c.b16 %v3477, %v3469
  %v3630 = vpack.c.b16 %v3478, %v3470
  %v3631 = vpack.c.b16 %v3479, %v3471
  %v3632 = vpack.c.b16 %v3480, %v3472
  %v3633 = vpack.c.b16 %v3489, %v3481
  %v3634 = vpack.c.b16 %v3490, %v3482
  %v3635 = vpack.c.b16 %v3491, %v3483
  %v3636 = vpack.c.b16 %v3492, %v3484
  %v3637 = vpack.c.b16 %v3493, %v3485
  %v3638 = vpack.c.b16 %v3494, %v3486
  %v3639 = vpack.c.b16 %v3495, %v3487
  %v3640 = vpack.c.b16 %v3496, %v3488
  %v3641 = vpack.c.b16 %v3505, %v3497
  %v3642 = vpack.c.b16 %v3506, %v3498
  %v3643 = vpack.c.b16 %v3507, %v3499
  %v3644 = vpack.c.b16 %v3508, %v3500
  %v3645 = vpack.c.b16 %v3509, %v3501
  %v3646 = vpack.c.b16 %v3510, %v3502
  %v3647 = vpack.c.b16 %v3511, %v3503
  %v3648 = vpack.c.b16 %v3512, %v3504
  %v3649 = vpack.c.b16 %v3521, %v3513
  %v3650 = vpack.c.b16 %v3522, %v3514
  %v3651 = vpack.c.b16 %v3523, %v3515
  %v3652 = vpack.c.b16 %v3524, %v3516
  %v3653 = vpack.c.b16 %v3525, %v3517
  %v3654 = vpack.c.b16 %v3526, %v3518
  %v3655 = vpack.c.b16 %v3527, %v3519
  %v3656 = vpack.c.b16 %v3528, %v3520
  %3785 = vmatpush.bf16.msra.mxu0 %v3585
  %3786 = vmatpush.bf16.msra.mxu0 %v3577
  %3787 = vmatpush.bf16.msra.mxu0 %v3569
  %3788 = vmatpush.bf16.msra.mxu0 %v3561
  %3789 = vmatpush.bf16.msra.mxu0 %v3553
  %3790 = vmatpush.bf16.msra.mxu0 %v3545
  %3791 = vmatpush.bf16.msra.mxu0 %v3537
  %3792 = vmatpush.bf16.msra.mxu0 %v3529
  %3793 = vmatmul.bf16.gmra.mxu0 %v162
  %v3794 = vpop.f32.mrf.mxu0
  %v3795 = vadd.f32 0.0, %v3794
  %v3796 = vpop.f32.mrf.mxu0
  %v3797 = vadd.f32 0.0, %v3796
  %3798 = vdwg.mxu0
  %3799 = vmatpush.bf16.msra.mxu0 %v3649
  %3800 = vmatpush.bf16.msra.mxu0 %v3641
  %3801 = vmatpush.bf16.msra.mxu0 %v3633
  %3802 = vmatpush.bf16.msra.mxu0 %v3625
  %3803 = vmatpush.bf16.msra.mxu0 %v3617
  %3804 = vmatpush.bf16.msra.mxu0 %v3609
  %3805 = vmatpush.bf16.msra.mxu0 %v3601
  %3806 = vmatpush.bf16.msra.mxu0 %v3593
  %3807 = vmatmul.bf16.gmra.mxu0 %v163
  %v3808 = vpop.f32.mrf.mxu0
  %v3809 = vadd.f32 %v3795, %v3808
  %v3810 = vpop.f32.mrf.mxu0
  %v3811 = vadd.f32 %v3797, %v3810
  %3812 = vdwg.mxu0
  %3813 = vmatpush.bf16.msra.mxu0 %v3586
  %3814 = vmatpush.bf16.msra.mxu0 %v3578
  %3815 = vmatpush.bf16.msra.mxu0 %v3570
  %3816 = vmatpush.bf16.msra.mxu0 %v3562
  %3817 = vmatpush.bf16.msra.mxu0 %v3554
  %3818 = vmatpush.bf16.msra.mxu0 %v3546
  %3819 = vmatpush.bf16.msra.mxu0 %v3538
  %3820 = vmatpush.bf16.msra.mxu0 %v3530
  %3821 = vmatmul.bf16.gmra.mxu0 %v162
  %v3822 = vpop.f32.mrf.mxu0
  %v3823 = vadd.f32 0.0, %v3822
  %v3824 = vpop.f32.mrf.mxu0
  %v3825 = vadd.f32 0.0, %v3824
  %3826 = vdwg.mxu0
  %3827 = vmatpush.bf16.msra.mxu0 %v3650
  %3828 = vmatpush.bf16.msra.mxu0 %v3642
  %3829 = vmatpush.bf16.msra.mxu0 %v3634
  %3830 = vmatpush.bf16.msra.mxu0 %v3626
  %3831 = vmatpush.bf16.msra.mxu0 %v3618
  %3832 = vmatpush.bf16.msra.mxu0 %v3610
  %3833 = vmatpush.bf16.msra.mxu0 %v3602
  %3834 = vmatpush.bf16.msra.mxu0 %v3594
  %3835 = vmatmul.bf16.gmra.mxu0 %v163
  %v3836 = vpop.f32.mrf.mxu0
  %v3837 = vadd.f32 %v3823, %v3836
  %v3838 = vpop.f32.mrf.mxu0
  %v3839 = vadd.f32 %v3825, %v3838
  %3840 = vdwg.mxu0
  %3841 = vmatpush.bf16.msra.mxu0 %v3587
  %3842 = vmatpush.bf16.msra.mxu0 %v3579
  %3843 = vmatpush.bf16.msra.mxu0 %v3571
  %3844 = vmatpush.bf16.msra.mxu0 %v3563
  %3845 = vmatpush.bf16.msra.mxu0 %v3555
  %3846 = vmatpush.bf16.msra.mxu0 %v3547
  %3847 = vmatpush.bf16.msra.mxu0 %v3539
  %3848 = vmatpush.bf16.msra.mxu0 %v3531
  %3849 = vmatmul.bf16.gmra.mxu0 %v162
  %v3850 = vpop.f32.mrf.mxu0
  %v3851 = vadd.f32 0.0, %v3850
  %v3852 = vpop.f32.mrf.mxu0
  %v3853 = vadd.f32 0.0, %v3852
  %3854 = vdwg.mxu0
  %3855 = vmatpush.bf16.msra.mxu0 %v3651
  %3856 = vmatpush.bf16.msra.mxu0 %v3643
  %3857 = vmatpush.bf16.msra.mxu0 %v3635
  %3858 = vmatpush.bf16.msra.mxu0 %v3627
  %3859 = vmatpush.bf16.msra.mxu0 %v3619
  %3860 = vmatpush.bf16.msra.mxu0 %v3611
  %3861 = vmatpush.bf16.msra.mxu0 %v3603
  %3862 = vmatpush.bf16.msra.mxu0 %v3595
  %3863 = vmatmul.bf16.gmra.mxu0 %v163
  %v3864 = vpop.f32.mrf.mxu0
  %v3865 = vadd.f32 %v3851, %v3864
  %v3866 = vpop.f32.mrf.mxu0
  %v3867 = vadd.f32 %v3853, %v3866
  %3868 = vdwg.mxu0
  %3869 = vmatpush.bf16.msra.mxu0 %v3588
  %3870 = vmatpush.bf16.msra.mxu0 %v3580
  %3871 = vmatpush.bf16.msra.mxu0 %v3572
  %3872 = vmatpush.bf16.msra.mxu0 %v3564
  %3873 = vmatpush.bf16.msra.mxu0 %v3556
  %3874 = vmatpush.bf16.msra.mxu0 %v3548
  %3875 = vmatpush.bf16.msra.mxu0 %v3540
  %3876 = vmatpush.bf16.msra.mxu0 %v3532
  %3877 = vmatmul.bf16.gmra.mxu0 %v162
  %v3878 = vpop.f32.mrf.mxu0
  %v3879 = vadd.f32 0.0, %v3878
  %v3880 = vpop.f32.mrf.mxu0
  %v3881 = vadd.f32 0.0, %v3880
  %3882 = vdwg.mxu0
  %3883 = vmatpush.bf16.msra.mxu0 %v3652
  %3884 = vmatpush.bf16.msra.mxu0 %v3644
  %3885 = vmatpush.bf16.msra.mxu0 %v3636
  %3886 = vmatpush.bf16.msra.mxu0 %v3628
  %3887 = vmatpush.bf16.msra.mxu0 %v3620
  %3888 = vmatpush.bf16.msra.mxu0 %v3612
  %3889 = vmatpush.bf16.msra.mxu0 %v3604
  %3890 = vmatpush.bf16.msra.mxu0 %v3596
  %3891 = vmatmul.bf16.gmra.mxu0 %v163
  %v3892 = vpop.f32.mrf.mxu0
  %v3893 = vadd.f32 %v3879, %v3892
  %v3894 = vpop.f32.mrf.mxu0
  %v3895 = vadd.f32 %v3881, %v3894
  %3896 = vdwg.mxu0
  %3897 = vmatpush.bf16.msra.mxu0 %v3589
  %3898 = vmatpush.bf16.msra.mxu0 %v3581
  %3899 = vmatpush.bf16.msra.mxu0 %v3573
  %3900 = vmatpush.bf16.msra.mxu0 %v3565
  %3901 = vmatpush.bf16.msra.mxu0 %v3557
  %3902 = vmatpush.bf16.msra.mxu0 %v3549
  %3903 = vmatpush.bf16.msra.mxu0 %v3541
  %3904 = vmatpush.bf16.msra.mxu0 %v3533
  %3905 = vmatmul.bf16.gmra.mxu0 %v162
  %v3906 = vpop.f32.mrf.mxu0
  %v3907 = vadd.f32 0.0, %v3906
  %v3908 = vpop.f32.mrf.mxu0
  %v3909 = vadd.f32 0.0, %v3908
  %3910 = vdwg.mxu0
  %3911 = vmatpush.bf16.msra.mxu0 %v3653
  %3912 = vmatpush.bf16.msra.mxu0 %v3645
  %3913 = vmatpush.bf16.msra.mxu0 %v3637
  %3914 = vmatpush.bf16.msra.mxu0 %v3629
  %3915 = vmatpush.bf16.msra.mxu0 %v3621
  %3916 = vmatpush.bf16.msra.mxu0 %v3613
  %3917 = vmatpush.bf16.msra.mxu0 %v3605
  %3918 = vmatpush.bf16.msra.mxu0 %v3597
  %3919 = vmatmul.bf16.gmra.mxu0 %v163
  %v3920 = vpop.f32.mrf.mxu0
  %v3921 = vadd.f32 %v3907, %v3920
  %v3922 = vpop.f32.mrf.mxu0
  %v3923 = vadd.f32 %v3909, %v3922
  %3924 = vdwg.mxu0
  %3925 = vmatpush.bf16.msra.mxu0 %v3590
  %3926 = vmatpush.bf16.msra.mxu0 %v3582
  %3927 = vmatpush.bf16.msra.mxu0 %v3574
  %3928 = vmatpush.bf16.msra.mxu0 %v3566
  %3929 = vmatpush.bf16.msra.mxu0 %v3558
  %3930 = vmatpush.bf16.msra.mxu0 %v3550
  %3931 = vmatpush.bf16.msra.mxu0 %v3542
  %3932 = vmatpush.bf16.msra.mxu0 %v3534
  %3933 = vmatmul.bf16.gmra.mxu0 %v162
  %v3934 = vpop.f32.mrf.mxu0
  %v3935 = vadd.f32 0.0, %v3934
  %v3936 = vpop.f32.mrf.mxu0
  %v3937 = vadd.f32 0.0, %v3936
  %3938 = vdwg.mxu0
  %3939 = vmatpush.bf16.msra.mxu0 %v3654
  %3940 = vmatpush.bf16.msra.mxu0 %v3646
  %3941 = vmatpush.bf16.msra.mxu0 %v3638
  %3942 = vmatpush.bf16.msra.mxu0 %v3630
  %3943 = vmatpush.bf16.msra.mxu0 %v3622
  %3944 = vmatpush.bf16.msra.mxu0 %v3614
  %3945 = vmatpush.bf16.msra.mxu0 %v3606
  %3946 = vmatpush.bf16.msra.mxu0 %v3598
  %3947 = vmatmul.bf16.gmra.mxu0 %v163
  %v3948 = vpop.f32.mrf.mxu0
  %v3949 = vadd.f32 %v3935, %v3948
  %v3950 = vpop.f32.mrf.mxu0
  %v3951 = vadd.f32 %v3937, %v3950
  %3952 = vdwg.mxu0
  %3953 = vmatpush.bf16.msra.mxu0 %v3591
  %3954 = vmatpush.bf16.msra.mxu0 %v3583
  %3955 = vmatpush.bf16.msra.mxu0 %v3575
  %3956 = vmatpush.bf16.msra.mxu0 %v3567
  %3957 = vmatpush.bf16.msra.mxu0 %v3559
  %3958 = vmatpush.bf16.msra.mxu0 %v3551
  %3959 = vmatpush.bf16.msra.mxu0 %v3543
  %3960 = vmatpush.bf16.msra.mxu0 %v3535
  %3961 = vmatmul.bf16.gmra.mxu0 %v162
  %v3962 = vpop.f32.mrf.mxu0
  %v3963 = vadd.f32 0.0, %v3962
  %v3964 = vpop.f32.mrf.mxu0
  %v3965 = vadd.f32 0.0, %v3964
  %3966 = vdwg.mxu0
  %3967 = vmatpush.bf16.msra.mxu0 %v3655
  %3968 = vmatpush.bf16.msra.mxu0 %v3647
  %3969 = vmatpush.bf16.msra.mxu0 %v3639
  %3970 = vmatpush.bf16.msra.mxu0 %v3631
  %3971 = vmatpush.bf16.msra.mxu0 %v3623
  %3972 = vmatpush.bf16.msra.mxu0 %v3615
  %3973 = vmatpush.bf16.msra.mxu0 %v3607
  %3974 = vmatpush.bf16.msra.mxu0 %v3599
  %3975 = vmatmul.bf16.gmra.mxu0 %v163
  %v3976 = vpop.f32.mrf.mxu0
  %v3977 = vadd.f32 %v3963, %v3976
  %v3978 = vpop.f32.mrf.mxu0
  %v3979 = vadd.f32 %v3965, %v3978
  %3980 = vdwg.mxu0
  %3981 = vmatpush.bf16.msra.mxu0 %v3592
  %3982 = vmatpush.bf16.msra.mxu0 %v3584
  %3983 = vmatpush.bf16.msra.mxu0 %v3576
  %3984 = vmatpush.bf16.msra.mxu0 %v3568
  %3985 = vmatpush.bf16.msra.mxu0 %v3560
  %3986 = vmatpush.bf16.msra.mxu0 %v3552
  %3987 = vmatpush.bf16.msra.mxu0 %v3544
  %3988 = vmatpush.bf16.msra.mxu0 %v3536
  %3989 = vmatmul.bf16.gmra.mxu0 %v162
  %v3990 = vpop.f32.mrf.mxu0
  %v3991 = vadd.f32 0.0, %v3990
  %v3992 = vpop.f32.mrf.mxu0
  %v3993 = vadd.f32 0.0, %v3992
  %3994 = vdwg.mxu0
  %3995 = vmatpush.bf16.msra.mxu0 %v3656
  %3996 = vmatpush.bf16.msra.mxu0 %v3648
  %3997 = vmatpush.bf16.msra.mxu0 %v3640
  %3998 = vmatpush.bf16.msra.mxu0 %v3632
  %3999 = vmatpush.bf16.msra.mxu0 %v3624
  %4000 = vmatpush.bf16.msra.mxu0 %v3616
  %4001 = vmatpush.bf16.msra.mxu0 %v3608
  %4002 = vmatpush.bf16.msra.mxu0 %v3600
  %4003 = vmatmul.bf16.gmra.mxu0 %v163
  %v4004 = vpop.f32.mrf.mxu0
  %v4005 = vadd.f32 %v3991, %v4004
  %v4006 = vpop.f32.mrf.mxu0
  %v4007 = vadd.f32 %v3993, %v4006
  %4008 = vdwg.mxu0
  %v4009 = vmax.f32 %v830, %v1823
  %v4010 = vmax.f32 %v858, %v1851
  %v4011 = vmax.f32 %v886, %v1879
  %v4012 = vmax.f32 %v914, %v1907
  %v4013 = vmax.f32 %v942, %v1935
  %v4014 = vmax.f32 %v970, %v1963
  %v4015 = vmax.f32 %v998, %v1991
  %v4016 = vmax.f32 %v1026, %v2019
  %v4017 = vmax.f32 %v832, %v1825
  %v4018 = vmax.f32 %v860, %v1853
  %v4019 = vmax.f32 %v888, %v1881
  %v4020 = vmax.f32 %v916, %v1909
  %v4021 = vmax.f32 %v944, %v1937
  %v4022 = vmax.f32 %v972, %v1965
  %v4023 = vmax.f32 %v1000, %v1993
  %v4024 = vmax.f32 %v1028, %v2021
  %v4025 = vmax.f32 %v2816, %v3809
  %v4026 = vmax.f32 %v2844, %v3837
  %v4027 = vmax.f32 %v2872, %v3865
  %v4028 = vmax.f32 %v2900, %v3893
  %v4029 = vmax.f32 %v2928, %v3921
  %v4030 = vmax.f32 %v2956, %v3949
  %v4031 = vmax.f32 %v2984, %v3977
  %v4032 = vmax.f32 %v3012, %v4005
  %v4033 = vmax.f32 %v2818, %v3811
  %v4034 = vmax.f32 %v2846, %v3839
  %v4035 = vmax.f32 %v2874, %v3867
  %v4036 = vmax.f32 %v2902, %v3895
  %v4037 = vmax.f32 %v2930, %v3923
  %v4038 = vmax.f32 %v2958, %v3951
  %v4039 = vmax.f32 %v2986, %v3979
  %v4040 = vmax.f32 %v3014, %v4007
  %v4041 = vmax.f32 %v4009, %v4025
  %v4042 = vmax.f32 %v4010, %v4026
  %v4043 = vmax.f32 %v4011, %v4027
  %v4044 = vmax.f32 %v4012, %v4028
  %v4045 = vmax.f32 %v4013, %v4029
  %v4046 = vmax.f32 %v4014, %v4030
  %v4047 = vmax.f32 %v4015, %v4031
  %v4048 = vmax.f32 %v4016, %v4032
  %v4049 = vmax.f32 %v4017, %v4033
  %v4050 = vmax.f32 %v4018, %v4034
  %v4051 = vmax.f32 %v4019, %v4035
  %v4052 = vmax.f32 %v4020, %v4036
  %v4053 = vmax.f32 %v4021, %v4037
  %v4054 = vmax.f32 %v4022, %v4038
  %v4055 = vmax.f32 %v4023, %v4039
  %v4056 = vmax.f32 %v4024, %v4040
  %v4057 = vld [vmem:[%s2] sm:$0xff]
  %v4058 = vld [vmem:[%s2 + $0x8] sm:$0xff]
  %4060 = vset.pattern.permute.xlu0 0
  %4061 = vperm.xlu0 %4060, %v4057
  %v4062 = vpop.permute.xlu0 %4061
  %4065 = vset.pattern.permute.xlu0 0
  %4066 = vperm.xlu0 %4065, %v4058
  %v4067 = vpop.permute.xlu0 %4066
  %v4069 = vadd.f32 %v4041, %v4062
  %v4070 = vadd.f32 %v4042, %v4062
  %v4071 = vadd.f32 %v4043, %v4062
  %v4072 = vadd.f32 %v4044, %v4062
  %v4073 = vadd.f32 %v4045, %v4062
  %v4074 = vadd.f32 %v4046, %v4062
  %v4075 = vadd.f32 %v4047, %v4062
  %v4076 = vadd.f32 %v4048, %v4062
  %v4077 = vadd.f32 %v4049, %v4067
  %v4078 = vadd.f32 %v4050, %v4067
  %v4079 = vadd.f32 %v4051, %v4067
  %v4080 = vadd.f32 %v4052, %v4067
  %v4081 = vadd.f32 %v4053, %v4067
  %v4082 = vadd.f32 %v4054, %v4067
  %v4083 = vadd.f32 %v4055, %v4067
  %v4084 = vadd.f32 %v4056, %v4067
  %v4085 = vmax.f32 %v4069, 0.0
  %v4086 = vmax.f32 %v4070, 0.0
  %v4087 = vmax.f32 %v4071, 0.0
  %v4088 = vmax.f32 %v4072, 0.0
  %v4089 = vmax.f32 %v4073, 0.0
  %v4090 = vmax.f32 %v4074, 0.0
  %v4091 = vmax.f32 %v4075, 0.0
  %v4092 = vmax.f32 %v4076, 0.0
  %v4093 = vmax.f32 %v4077, 0.0
  %v4094 = vmax.f32 %v4078, 0.0
  %v4095 = vmax.f32 %v4079, 0.0
  %v4096 = vmax.f32 %v4080, 0.0
  %v4097 = vmax.f32 %v4081, 0.0
  %v4098 = vmax.f32 %v4082, 0.0
  %v4099 = vmax.f32 %v4083, 0.0
  %v4100 = vmax.f32 %v4084, 0.0
  %4102 = vst [vmem:[#allocation2] ss:$8 sm:$0x1] %v4085
  %4103 = vst [vmem:[#allocation2] ss:$8 sm:$0x0] %v4085
  %s4105 = scalar_lea.vmem [#allocation2], 1
  %4106 = vst [vmem:[%s4105] ss:$8 sm:$0x1] %v4086
  %4107 = vst [vmem:[%s4105] ss:$8 sm:$0x0] %v4086
  %s4109 = scalar_lea.vmem [#allocation2], 2
  %4110 = vst [vmem:[%s4109] ss:$8 sm:$0x1] %v4087
  %4111 = vst [vmem:[%s4109] ss:$8 sm:$0x0] %v4087
  %s4113 = scalar_lea.vmem [#allocation2], 3
  %4114 = vst [vmem:[%s4113] ss:$8 sm:$0x1] %v4088
  %4115 = vst [vmem:[%s4113] ss:$8 sm:$0x0] %v4088
  %s4117 = scalar_lea.vmem [#allocation2], 4
  %4118 = vst [vmem:[%s4117] ss:$8 sm:$0x1] %v4089
  %4119 = vst [vmem:[%s4117] ss:$8 sm:$0x0] %v4089
  %s4121 = scalar_lea.vmem [#allocation2], 5
  %4122 = vst [vmem:[%s4121] ss:$8 sm:$0x1] %v4090
  %4123 = vst [vmem:[%s4121] ss:$8 sm:$0x0] %v4090
  %s4125 = scalar_lea.vmem [#allocation2], 6
  %4126 = vst [vmem:[%s4125] ss:$8 sm:$0x1] %v4091
  %4127 = vst [vmem:[%s4125] ss:$8 sm:$0x0] %v4091
  %s4129 = scalar_lea.vmem [#allocation2], 7
  %4130 = vst [vmem:[%s4129] ss:$8 sm:$0x1] %v4092
  %4131 = vst [vmem:[%s4129] ss:$8 sm:$0x0] %v4092
  %v4132 = vrot.slane %v4085, 1
  %s4133 = scalar_lea.vmem [#allocation2], 8
  %4134 = vst [vmem:[%s4133] ss:$8 sm:$0x1] %v4132
  %4135 = vst [vmem:[%s4133] ss:$8 sm:$0x0] %v4132
  %v4136 = vrot.slane %v4086, 1
  %s4137 = scalar_lea.vmem [#allocation2], 9
  %4138 = vst [vmem:[%s4137] ss:$8 sm:$0x1] %v4136
  %4139 = vst [vmem:[%s4137] ss:$8 sm:$0x0] %v4136
  %v4140 = vrot.slane %v4087, 1
  %s4141 = scalar_lea.vmem [#allocation2], 10
  %4142 = vst [vmem:[%s4141] ss:$8 sm:$0x1] %v4140
  %4143 = vst [vmem:[%s4141] ss:$8 sm:$0x0] %v4140
  %v4144 = vrot.slane %v4088, 1
  %s4145 = scalar_lea.vmem [#allocation2], 11
  %4146 = vst [vmem:[%s4145] ss:$8 sm:$0x1] %v4144
  %4147 = vst [vmem:[%s4145] ss:$8 sm:$0x0] %v4144
  %v4148 = vrot.slane %v4089, 1
  %s4149 = scalar_lea.vmem [#allocation2], 12
  %4150 = vst [vmem:[%s4149] ss:$8 sm:$0x1] %v4148
  %4151 = vst [vmem:[%s4149] ss:$8 sm:$0x0] %v4148
  %v4152 = vrot.slane %v4090, 1
  %s4153 = scalar_lea.vmem [#allocation2], 13
  %4154 = vst [vmem:[%s4153] ss:$8 sm:$0x1] %v4152
  %4155 = vst [vmem:[%s4153] ss:$8 sm:$0x0] %v4152
  %v4156 = vrot.slane %v4091, 1
  %s4157 = scalar_lea.vmem [#allocation2], 14
  %4158 = vst [vmem:[%s4157] ss:$8 sm:$0x1] %v4156
  %4159 = vst [vmem:[%s4157] ss:$8 sm:$0x0] %v4156
  %v4160 = vrot.slane %v4092, 1
  %s4161 = scalar_lea.vmem [#allocation2], 15
  %4162 = vst [vmem:[%s4161] ss:$8 sm:$0x1] %v4160
  %4163 = vst [vmem:[%s4161] ss:$8 sm:$0x0] %v4160
  %v4164 = vrot.slane %v4085, 2
  %s4165 = scalar_lea.vmem [#allocation2], 16
  %4166 = vst [vmem:[%s4165] ss:$8 sm:$0x1] %v4164
  %4167 = vst [vmem:[%s4165] ss:$8 sm:$0x0] %v4164
  %v4168 = vrot.slane %v4086, 2
  %s4169 = scalar_lea.vmem [#allocation2], 17
  %4170 = vst [vmem:[%s4169] ss:$8 sm:$0x1] %v4168
  %4171 = vst [vmem:[%s4169] ss:$8 sm:$0x0] %v4168
  %v4172 = vrot.slane %v4087, 2
  %s4173 = scalar_lea.vmem [#allocation2], 18
  %4174 = vst [vmem:[%s4173] ss:$8 sm:$0x1] %v4172
  %4175 = vst [vmem:[%s4173] ss:$8 sm:$0x0] %v4172
  %v4176 = vrot.slane %v4088, 2
  %s4177 = scalar_lea.vmem [#allocation2], 19
  %4178 = vst [vmem:[%s4177] ss:$8 sm:$0x1] %v4176
  %4179 = vst [vmem:[%s4177] ss:$8 sm:$0x0] %v4176
  %v4180 = vrot.slane %v4089, 2
  %s4181 = scalar_lea.vmem [#allocation2], 20
  %4182 = vst [vmem:[%s4181] ss:$8 sm:$0x1] %v4180
  %4183 = vst [vmem:[%s4181] ss:$8 sm:$0x0] %v4180
  %v4184 = vrot.slane %v4090, 2
  %s4185 = scalar_lea.vmem [#allocation2], 21
  %4186 = vst [vmem:[%s4185] ss:$8 sm:$0x1] %v4184
  %4187 = vst [vmem:[%s4185] ss:$8 sm:$0x0] %v4184
  %v4188 = vrot.slane %v4091, 2
  %s4189 = scalar_lea.vmem [#allocation2], 22
  %4190 = vst [vmem:[%s4189] ss:$8 sm:$0x1] %v4188
  %4191 = vst [vmem:[%s4189] ss:$8 sm:$0x0] %v4188
  %v4192 = vrot.slane %v4092, 2
  %s4193 = scalar_lea.vmem [#allocation2], 23
  %4194 = vst [vmem:[%s4193] ss:$8 sm:$0x1] %v4192
  %4195 = vst [vmem:[%s4193] ss:$8 sm:$0x0] %v4192
  %v4196 = vrot.slane %v4085, 3
  %s4197 = scalar_lea.vmem [#allocation2], 24
  %4198 = vst [vmem:[%s4197] ss:$8 sm:$0x1] %v4196
  %4199 = vst [vmem:[%s4197] ss:$8 sm:$0x0] %v4196
  %v4200 = vrot.slane %v4086, 3
  %s4201 = scalar_lea.vmem [#allocation2], 25
  %4202 = vst [vmem:[%s4201] ss:$8 sm:$0x1] %v4200
  %4203 = vst [vmem:[%s4201] ss:$8 sm:$0x0] %v4200
  %v4204 = vrot.slane %v4087, 3
  %s4205 = scalar_lea.vmem [#allocation2], 26
  %4206 = vst [vmem:[%s4205] ss:$8 sm:$0x1] %v4204
  %4207 = vst [vmem:[%s4205] ss:$8 sm:$0x0] %v4204
  %v4208 = vrot.slane %v4088, 3
  %s4209 = scalar_lea.vmem [#allocation2], 27
  %4210 = vst [vmem:[%s4209] ss:$8 sm:$0x1] %v4208
  %4211 = vst [vmem:[%s4209] ss:$8 sm:$0x0] %v4208
  %v4212 = vrot.slane %v4089, 3
  %s4213 = scalar_lea.vmem [#allocation2], 28
  %4214 = vst [vmem:[%s4213] ss:$8 sm:$0x1] %v4212
  %4215 = vst [vmem:[%s4213] ss:$8 sm:$0x0] %v4212
  %v4216 = vrot.slane %v4090, 3
  %s4217 = scalar_lea.vmem [#allocation2], 29
  %4218 = vst [vmem:[%s4217] ss:$8 sm:$0x1] %v4216
  %4219 = vst [vmem:[%s4217] ss:$8 sm:$0x0] %v4216
  %v4220 = vrot.slane %v4091, 3
  %s4221 = scalar_lea.vmem [#allocation2], 30
  %4222 = vst [vmem:[%s4221] ss:$8 sm:$0x1] %v4220
  %4223 = vst [vmem:[%s4221] ss:$8 sm:$0x0] %v4220
  %v4224 = vrot.slane %v4092, 3
  %s4225 = scalar_lea.vmem [#allocation2], 31
  %4226 = vst [vmem:[%s4225] ss:$8 sm:$0x1] %v4224
  %4227 = vst [vmem:[%s4225] ss:$8 sm:$0x0] %v4224
  %v4228 = vrot.slane %v4085, 4
  %s4229 = scalar_lea.vmem [#allocation2], 32
  %4230 = vst [vmem:[%s4229] ss:$8 sm:$0x1] %v4228
  %4231 = vst [vmem:[%s4229] ss:$8 sm:$0x0] %v4228
  %v4232 = vrot.slane %v4086, 4
  %s4233 = scalar_lea.vmem [#allocation2], 33
  %4234 = vst [vmem:[%s4233] ss:$8 sm:$0x1] %v4232
  %4235 = vst [vmem:[%s4233] ss:$8 sm:$0x0] %v4232
  %v4236 = vrot.slane %v4087, 4
  %s4237 = scalar_lea.vmem [#allocation2], 34
  %4238 = vst [vmem:[%s4237] ss:$8 sm:$0x1] %v4236
  %4239 = vst [vmem:[%s4237] ss:$8 sm:$0x0] %v4236
  %v4240 = vrot.slane %v4088, 4
  %s4241 = scalar_lea.vmem [#allocation2], 35
  %4242 = vst [vmem:[%s4241] ss:$8 sm:$0x1] %v4240
  %4243 = vst [vmem:[%s4241] ss:$8 sm:$0x0] %v4240
  %v4244 = vrot.slane %v4089, 4
  %s4245 = scalar_lea.vmem [#allocation2], 36
  %4246 = vst [vmem:[%s4245] ss:$8 sm:$0x1] %v4244
  %4247 = vst [vmem:[%s4245] ss:$8 sm:$0x0] %v4244
  %v4248 = vrot.slane %v4090, 4
  %s4249 = scalar_lea.vmem [#allocation2], 37
  %4250 = vst [vmem:[%s4249] ss:$8 sm:$0x1] %v4248
  %4251 = vst [vmem:[%s4249] ss:$8 sm:$0x0] %v4248
  %v4252 = vrot.slane %v4091, 4
  %s4253 = scalar_lea.vmem [#allocation2], 38
  %4254 = vst [vmem:[%s4253] ss:$8 sm:$0x1] %v4252
  %4255 = vst [vmem:[%s4253] ss:$8 sm:$0x0] %v4252
  %v4256 = vrot.slane %v4092, 4
  %s4257 = scalar_lea.vmem [#allocation2], 39
  %4258 = vst [vmem:[%s4257] ss:$8 sm:$0x1] %v4256
  %4259 = vst [vmem:[%s4257] ss:$8 sm:$0x0] %v4256
  %v4260 = vrot.slane %v4085, 5
  %s4261 = scalar_lea.vmem [#allocation2], 40
  %4262 = vst [vmem:[%s4261] ss:$8 sm:$0x1] %v4260
  %4263 = vst [vmem:[%s4261] ss:$8 sm:$0x0] %v4260
  %v4264 = vrot.slane %v4086, 5
  %s4265 = scalar_lea.vmem [#allocation2], 41
  %4266 = vst [vmem:[%s4265] ss:$8 sm:$0x1] %v4264
  %4267 = vst [vmem:[%s4265] ss:$8 sm:$0x0] %v4264
  %v4268 = vrot.slane %v4087, 5
  %s4269 = scalar_lea.vmem [#allocation2], 42
  %4270 = vst [vmem:[%s4269] ss:$8 sm:$0x1] %v4268
  %4271 = vst [vmem:[%s4269] ss:$8 sm:$0x0] %v4268
  %v4272 = vrot.slane %v4088, 5
  %s4273 = scalar_lea.vmem [#allocation2], 43
  %4274 = vst [vmem:[%s4273] ss:$8 sm:$0x1] %v4272
  %4275 = vst [vmem:[%s4273] ss:$8 sm:$0x0] %v4272
  %v4276 = vrot.slane %v4089, 5
  %s4277 = scalar_lea.vmem [#allocation2], 44
  %4278 = vst [vmem:[%s4277] ss:$8 sm:$0x1] %v4276
  %4279 = vst [vmem:[%s4277] ss:$8 sm:$0x0] %v4276
  %v4280 = vrot.slane %v4090, 5
  %s4281 = scalar_lea.vmem [#allocation2], 45
  %4282 = vst [vmem:[%s4281] ss:$8 sm:$0x1] %v4280
  %4283 = vst [vmem:[%s4281] ss:$8 sm:$0x0] %v4280
  %v4284 = vrot.slane %v4091, 5
  %s4285 = scalar_lea.vmem [#allocation2], 46
  %4286 = vst [vmem:[%s4285] ss:$8 sm:$0x1] %v4284
  %4287 = vst [vmem:[%s4285] ss:$8 sm:$0x0] %v4284
  %v4288 = vrot.slane %v4092, 5
  %s4289 = scalar_lea.vmem [#allocation2], 47
  %4290 = vst [vmem:[%s4289] ss:$8 sm:$0x1] %v4288
  %4291 = vst [vmem:[%s4289] ss:$8 sm:$0x0] %v4288
  %v4292 = vrot.slane %v4085, 6
  %s4293 = scalar_lea.vmem [#allocation2], 48
  %4294 = vst [vmem:[%s4293] ss:$8 sm:$0x1] %v4292
  %4295 = vst [vmem:[%s4293] ss:$8 sm:$0x0] %v4292
  %v4296 = vrot.slane %v4086, 6
  %s4297 = scalar_lea.vmem [#allocation2], 49
  %4298 = vst [vmem:[%s4297] ss:$8 sm:$0x1] %v4296
  %4299 = vst [vmem:[%s4297] ss:$8 sm:$0x0] %v4296
  %v4300 = vrot.slane %v4087, 6
  %s4301 = scalar_lea.vmem [#allocation2], 50
  %4302 = vst [vmem:[%s4301] ss:$8 sm:$0x1] %v4300
  %4303 = vst [vmem:[%s4301] ss:$8 sm:$0x0] %v4300
  %v4304 = vrot.slane %v4088, 6
  %s4305 = scalar_lea.vmem [#allocation2], 51
  %4306 = vst [vmem:[%s4305] ss:$8 sm:$0x1] %v4304
  %4307 = vst [vmem:[%s4305] ss:$8 sm:$0x0] %v4304
  %v4308 = vrot.slane %v4089, 6
  %s4309 = scalar_lea.vmem [#allocation2], 52
  %4310 = vst [vmem:[%s4309] ss:$8 sm:$0x1] %v4308
  %4311 = vst [vmem:[%s4309] ss:$8 sm:$0x0] %v4308
  %v4312 = vrot.slane %v4090, 6
  %s4313 = scalar_lea.vmem [#allocation2], 53
  %4314 = vst [vmem:[%s4313] ss:$8 sm:$0x1] %v4312
  %4315 = vst [vmem:[%s4313] ss:$8 sm:$0x0] %v4312
  %v4316 = vrot.slane %v4091, 6
  %s4317 = scalar_lea.vmem [#allocation2], 54
  %4318 = vst [vmem:[%s4317] ss:$8 sm:$0x1] %v4316
  %4319 = vst [vmem:[%s4317] ss:$8 sm:$0x0] %v4316
  %v4320 = vrot.slane %v4092, 6
  %s4321 = scalar_lea.vmem [#allocation2], 55
  %4322 = vst [vmem:[%s4321] ss:$8 sm:$0x1] %v4320
  %4323 = vst [vmem:[%s4321] ss:$8 sm:$0x0] %v4320
  %v4324 = vrot.slane %v4085, 7
  %s4325 = scalar_lea.vmem [#allocation2], 56
  %4326 = vst [vmem:[%s4325] ss:$8 sm:$0x1] %v4324
  %4327 = vst [vmem:[%s4325] ss:$8 sm:$0x0] %v4324
  %v4328 = vrot.slane %v4086, 7
  %s4329 = scalar_lea.vmem [#allocation2], 57
  %4330 = vst [vmem:[%s4329] ss:$8 sm:$0x1] %v4328
  %4331 = vst [vmem:[%s4329] ss:$8 sm:$0x0] %v4328
  %v4332 = vrot.slane %v4087, 7
  %s4333 = scalar_lea.vmem [#allocation2], 58
  %4334 = vst [vmem:[%s4333] ss:$8 sm:$0x1] %v4332
  %4335 = vst [vmem:[%s4333] ss:$8 sm:$0x0] %v4332
  %v4336 = vrot.slane %v4088, 7
  %s4337 = scalar_lea.vmem [#allocation2], 59
  %4338 = vst [vmem:[%s4337] ss:$8 sm:$0x1] %v4336
  %4339 = vst [vmem:[%s4337] ss:$8 sm:$0x0] %v4336
  %v4340 = vrot.slane %v4089, 7
  %s4341 = scalar_lea.vmem [#allocation2], 60
  %4342 = vst [vmem:[%s4341] ss:$8 sm:$0x1] %v4340
  %4343 = vst [vmem:[%s4341] ss:$8 sm:$0x0] %v4340
  %v4344 = vrot.slane %v4090, 7
  %s4345 = scalar_lea.vmem [#allocation2], 61
  %4346 = vst [vmem:[%s4345] ss:$8 sm:$0x1] %v4344
  %4347 = vst [vmem:[%s4345] ss:$8 sm:$0x0] %v4344
  %v4348 = vrot.slane %v4091, 7
  %s4349 = scalar_lea.vmem [#allocation2], 62
  %4350 = vst [vmem:[%s4349] ss:$8 sm:$0x1] %v4348
  %4351 = vst [vmem:[%s4349] ss:$8 sm:$0x0] %v4348
  %v4352 = vrot.slane %v4092, 7
  %s4353 = scalar_lea.vmem [#allocation2], 63
  %4354 = vst [vmem:[%s4353] ss:$8 sm:$0x1] %v4352
  %4355 = vst [vmem:[%s4353] ss:$8 sm:$0x0] %v4352
  %s4357 = scalar_lea.vmem [#allocation2], 64
  %4358 = vst [vmem:[%s4357] ss:$8 sm:$0x1] %v4093
  %4359 = vst [vmem:[%s4357] ss:$8 sm:$0x0] %v4093
  %s4361 = scalar_lea.vmem [#allocation2], 65
  %4362 = vst [vmem:[%s4361] ss:$8 sm:$0x1] %v4094
  %4363 = vst [vmem:[%s4361] ss:$8 sm:$0x0] %v4094
  %s4365 = scalar_lea.vmem [#allocation2], 66
  %4366 = vst [vmem:[%s4365] ss:$8 sm:$0x1] %v4095
  %4367 = vst [vmem:[%s4365] ss:$8 sm:$0x0] %v4095
  %s4369 = scalar_lea.vmem [#allocation2], 67
  %4370 = vst [vmem:[%s4369] ss:$8 sm:$0x1] %v4096
  %4371 = vst [vmem:[%s4369] ss:$8 sm:$0x0] %v4096
  %s4373 = scalar_lea.vmem [#allocation2], 68
  %4374 = vst [vmem:[%s4373] ss:$8 sm:$0x1] %v4097
  %4375 = vst [vmem:[%s4373] ss:$8 sm:$0x0] %v4097
  %s4377 = scalar_lea.vmem [#allocation2], 69
  %4378 = vst [vmem:[%s4377] ss:$8 sm:$0x1] %v4098
  %4379 = vst [vmem:[%s4377] ss:$8 sm:$0x0] %v4098
  %s4381 = scalar_lea.vmem [#allocation2], 70
  %4382 = vst [vmem:[%s4381] ss:$8 sm:$0x1] %v4099
  %4383 = vst [vmem:[%s4381] ss:$8 sm:$0x0] %v4099
  %s4385 = scalar_lea.vmem [#allocation2], 71
  %4386 = vst [vmem:[%s4385] ss:$8 sm:$0x1] %v4100
  %4387 = vst [vmem:[%s4385] ss:$8 sm:$0x0] %v4100
  %v4388 = vrot.slane %v4093, 1
  %s4389 = scalar_lea.vmem [#allocation2], 72
  %4390 = vst [vmem:[%s4389] ss:$8 sm:$0x1] %v4388
  %4391 = vst [vmem:[%s4389] ss:$8 sm:$0x0] %v4388
  %v4392 = vrot.slane %v4094, 1
  %s4393 = scalar_lea.vmem [#allocation2], 73
  %4394 = vst [vmem:[%s4393] ss:$8 sm:$0x1] %v4392
  %4395 = vst [vmem:[%s4393] ss:$8 sm:$0x0] %v4392
  %v4396 = vrot.slane %v4095, 1
  %s4397 = scalar_lea.vmem [#allocation2], 74
  %4398 = vst [vmem:[%s4397] ss:$8 sm:$0x1] %v4396
  %4399 = vst [vmem:[%s4397] ss:$8 sm:$0x0] %v4396
  %v4400 = vrot.slane %v4096, 1
  %s4401 = scalar_lea.vmem [#allocation2], 75
  %4402 = vst [vmem:[%s4401] ss:$8 sm:$0x1] %v4400
  %4403 = vst [vmem:[%s4401] ss:$8 sm:$0x0] %v4400
  %v4404 = vrot.slane %v4097, 1
  %s4405 = scalar_lea.vmem [#allocation2], 76
  %4406 = vst [vmem:[%s4405] ss:$8 sm:$0x1] %v4404
  %4407 = vst [vmem:[%s4405] ss:$8 sm:$0x0] %v4404
  %v4408 = vrot.slane %v4098, 1
  %s4409 = scalar_lea.vmem [#allocation2], 77
  %4410 = vst [vmem:[%s4409] ss:$8 sm:$0x1] %v4408
  %4411 = vst [vmem:[%s4409] ss:$8 sm:$0x0] %v4408
  %v4412 = vrot.slane %v4099, 1
  %s4413 = scalar_lea.vmem [#allocation2], 78
  %4414 = vst [vmem:[%s4413] ss:$8 sm:$0x1] %v4412
  %4415 = vst [vmem:[%s4413] ss:$8 sm:$0x0] %v4412
  %v4416 = vrot.slane %v4100, 1
  %s4417 = scalar_lea.vmem [#allocation2], 79
  %4418 = vst [vmem:[%s4417] ss:$8 sm:$0x1] %v4416
  %4419 = vst [vmem:[%s4417] ss:$8 sm:$0x0] %v4416
  %v4420 = vrot.slane %v4093, 2
  %s4421 = scalar_lea.vmem [#allocation2], 80
  %4422 = vst [vmem:[%s4421] ss:$8 sm:$0x1] %v4420
  %4423 = vst [vmem:[%s4421] ss:$8 sm:$0x0] %v4420
  %v4424 = vrot.slane %v4094, 2
  %s4425 = scalar_lea.vmem [#allocation2], 81
  %4426 = vst [vmem:[%s4425] ss:$8 sm:$0x1] %v4424
  %4427 = vst [vmem:[%s4425] ss:$8 sm:$0x0] %v4424
  %v4428 = vrot.slane %v4095, 2
  %s4429 = scalar_lea.vmem [#allocation2], 82
  %4430 = vst [vmem:[%s4429] ss:$8 sm:$0x1] %v4428
  %4431 = vst [vmem:[%s4429] ss:$8 sm:$0x0] %v4428
  %v4432 = vrot.slane %v4096, 2
  %s4433 = scalar_lea.vmem [#allocation2], 83
  %4434 = vst [vmem:[%s4433] ss:$8 sm:$0x1] %v4432
  %4435 = vst [vmem:[%s4433] ss:$8 sm:$0x0] %v4432
  %v4436 = vrot.slane %v4097, 2
  %s4437 = scalar_lea.vmem [#allocation2], 84
  %4438 = vst [vmem:[%s4437] ss:$8 sm:$0x1] %v4436
  %4439 = vst [vmem:[%s4437] ss:$8 sm:$0x0] %v4436
  %v4440 = vrot.slane %v4098, 2
  %s4441 = scalar_lea.vmem [#allocation2], 85
  %4442 = vst [vmem:[%s4441] ss:$8 sm:$0x1] %v4440
  %4443 = vst [vmem:[%s4441] ss:$8 sm:$0x0] %v4440
  %v4444 = vrot.slane %v4099, 2
  %s4445 = scalar_lea.vmem [#allocation2], 86
  %4446 = vst [vmem:[%s4445] ss:$8 sm:$0x1] %v4444
  %4447 = vst [vmem:[%s4445] ss:$8 sm:$0x0] %v4444
  %v4448 = vrot.slane %v4100, 2
  %s4449 = scalar_lea.vmem [#allocation2], 87
  %4450 = vst [vmem:[%s4449] ss:$8 sm:$0x1] %v4448
  %4451 = vst [vmem:[%s4449] ss:$8 sm:$0x0] %v4448
  %v4452 = vrot.slane %v4093, 3
  %s4453 = scalar_lea.vmem [#allocation2], 88
  %4454 = vst [vmem:[%s4453] ss:$8 sm:$0x1] %v4452
  %4455 = vst [vmem:[%s4453] ss:$8 sm:$0x0] %v4452
  %v4456 = vrot.slane %v4094, 3
  %s4457 = scalar_lea.vmem [#allocation2], 89
  %4458 = vst [vmem:[%s4457] ss:$8 sm:$0x1] %v4456
  %4459 = vst [vmem:[%s4457] ss:$8 sm:$0x0] %v4456
  %v4460 = vrot.slane %v4095, 3
  %s4461 = scalar_lea.vmem [#allocation2], 90
  %4462 = vst [vmem:[%s4461] ss:$8 sm:$0x1] %v4460
  %4463 = vst [vmem:[%s4461] ss:$8 sm:$0x0] %v4460
  %v4464 = vrot.slane %v4096, 3
  %s4465 = scalar_lea.vmem [#allocation2], 91
  %4466 = vst [vmem:[%s4465] ss:$8 sm:$0x1] %v4464
  %4467 = vst [vmem:[%s4465] ss:$8 sm:$0x0] %v4464
  %v4468 = vrot.slane %v4097, 3
  %s4469 = scalar_lea.vmem [#allocation2], 92
  %4470 = vst [vmem:[%s4469] ss:$8 sm:$0x1] %v4468
  %4471 = vst [vmem:[%s4469] ss:$8 sm:$0x0] %v4468
  %v4472 = vrot.slane %v4098, 3
  %s4473 = scalar_lea.vmem [#allocation2], 93
  %4474 = vst [vmem:[%s4473] ss:$8 sm:$0x1] %v4472
  %4475 = vst [vmem:[%s4473] ss:$8 sm:$0x0] %v4472
  %v4476 = vrot.slane %v4099, 3
  %s4477 = scalar_lea.vmem [#allocation2], 94
  %4478 = vst [vmem:[%s4477] ss:$8 sm:$0x1] %v4476
  %4479 = vst [vmem:[%s4477] ss:$8 sm:$0x0] %v4476
  %v4480 = vrot.slane %v4100, 3
  %s4481 = scalar_lea.vmem [#allocation2], 95
  %4482 = vst [vmem:[%s4481] ss:$8 sm:$0x1] %v4480
  %4483 = vst [vmem:[%s4481] ss:$8 sm:$0x0] %v4480
  %v4484 = vrot.slane %v4093, 4
  %s4485 = scalar_lea.vmem [#allocation2], 96
  %4486 = vst [vmem:[%s4485] ss:$8 sm:$0x1] %v4484
  %4487 = vst [vmem:[%s4485] ss:$8 sm:$0x0] %v4484
  %v4488 = vrot.slane %v4094, 4
  %s4489 = scalar_lea.vmem [#allocation2], 97
  %4490 = vst [vmem:[%s4489] ss:$8 sm:$0x1] %v4488
  %4491 = vst [vmem:[%s4489] ss:$8 sm:$0x0] %v4488
  %v4492 = vrot.slane %v4095, 4
  %s4493 = scalar_lea.vmem [#allocation2], 98
  %4494 = vst [vmem:[%s4493] ss:$8 sm:$0x1] %v4492
  %4495 = vst [vmem:[%s4493] ss:$8 sm:$0x0] %v4492
  %v4496 = vrot.slane %v4096, 4
  %s4497 = scalar_lea.vmem [#allocation2], 99
  %4498 = vst [vmem:[%s4497] ss:$8 sm:$0x1] %v4496
  %4499 = vst [vmem:[%s4497] ss:$8 sm:$0x0] %v4496
  %v4500 = vrot.slane %v4097, 4
  %s4501 = scalar_lea.vmem [#allocation2], 100
  %4502 = vst [vmem:[%s4501] ss:$8 sm:$0x1] %v4500
  %4503 = vst [vmem:[%s4501] ss:$8 sm:$0x0] %v4500
  %v4504 = vrot.slane %v4098, 4
  %s4505 = scalar_lea.vmem [#allocation2], 101
  %4506 = vst [vmem:[%s4505] ss:$8 sm:$0x1] %v4504
  %4507 = vst [vmem:[%s4505] ss:$8 sm:$0x0] %v4504
  %v4508 = vrot.slane %v4099, 4
  %s4509 = scalar_lea.vmem [#allocation2], 102
  %4510 = vst [vmem:[%s4509] ss:$8 sm:$0x1] %v4508
  %4511 = vst [vmem:[%s4509] ss:$8 sm:$0x0] %v4508
  %v4512 = vrot.slane %v4100, 4
  %s4513 = scalar_lea.vmem [#allocation2], 103
  %4514 = vst [vmem:[%s4513] ss:$8 sm:$0x1] %v4512
  %4515 = vst [vmem:[%s4513] ss:$8 sm:$0x0] %v4512
  %v4516 = vrot.slane %v4093, 5
  %s4517 = scalar_lea.vmem [#allocation2], 104
  %4518 = vst [vmem:[%s4517] ss:$8 sm:$0x1] %v4516
  %4519 = vst [vmem:[%s4517] ss:$8 sm:$0x0] %v4516
  %v4520 = vrot.slane %v4094, 5
  %s4521 = scalar_lea.vmem [#allocation2], 105
  %4522 = vst [vmem:[%s4521] ss:$8 sm:$0x1] %v4520
  %4523 = vst [vmem:[%s4521] ss:$8 sm:$0x0] %v4520
  %v4524 = vrot.slane %v4095, 5
  %s4525 = scalar_lea.vmem [#allocation2], 106
  %4526 = vst [vmem:[%s4525] ss:$8 sm:$0x1] %v4524
  %4527 = vst [vmem:[%s4525] ss:$8 sm:$0x0] %v4524
  %v4528 = vrot.slane %v4096, 5
  %s4529 = scalar_lea.vmem [#allocation2], 107
  %4530 = vst [vmem:[%s4529] ss:$8 sm:$0x1] %v4528
  %4531 = vst [vmem:[%s4529] ss:$8 sm:$0x0] %v4528
  %v4532 = vrot.slane %v4097, 5
  %s4533 = scalar_lea.vmem [#allocation2], 108
  %4534 = vst [vmem:[%s4533] ss:$8 sm:$0x1] %v4532
  %4535 = vst [vmem:[%s4533] ss:$8 sm:$0x0] %v4532
  %v4536 = vrot.slane %v4098, 5
  %s4537 = scalar_lea.vmem [#allocation2], 109
  %4538 = vst [vmem:[%s4537] ss:$8 sm:$0x1] %v4536
  %4539 = vst [vmem:[%s4537] ss:$8 sm:$0x0] %v4536
  %v4540 = vrot.slane %v4099, 5
  %s4541 = scalar_lea.vmem [#allocation2], 110
  %4542 = vst [vmem:[%s4541] ss:$8 sm:$0x1] %v4540
  %4543 = vst [vmem:[%s4541] ss:$8 sm:$0x0] %v4540
  %v4544 = vrot.slane %v4100, 5
  %s4545 = scalar_lea.vmem [#allocation2], 111
  %4546 = vst [vmem:[%s4545] ss:$8 sm:$0x1] %v4544
  %4547 = vst [vmem:[%s4545] ss:$8 sm:$0x0] %v4544
  %v4548 = vrot.slane %v4093, 6
  %s4549 = scalar_lea.vmem [#allocation2], 112
  %4550 = vst [vmem:[%s4549] ss:$8 sm:$0x1] %v4548
  %4551 = vst [vmem:[%s4549] ss:$8 sm:$0x0] %v4548
  %v4552 = vrot.slane %v4094, 6
  %s4553 = scalar_lea.vmem [#allocation2], 113
  %4554 = vst [vmem:[%s4553] ss:$8 sm:$0x1] %v4552
  %4555 = vst [vmem:[%s4553] ss:$8 sm:$0x0] %v4552
  %v4556 = vrot.slane %v4095, 6
  %s4557 = scalar_lea.vmem [#allocation2], 114
  %4558 = vst [vmem:[%s4557] ss:$8 sm:$0x1] %v4556
  %4559 = vst [vmem:[%s4557] ss:$8 sm:$0x0] %v4556
  %v4560 = vrot.slane %v4096, 6
  %s4561 = scalar_lea.vmem [#allocation2], 115
  %4562 = vst [vmem:[%s4561] ss:$8 sm:$0x1] %v4560
  %4563 = vst [vmem:[%s4561] ss:$8 sm:$0x0] %v4560
  %v4564 = vrot.slane %v4097, 6
  %s4565 = scalar_lea.vmem [#allocation2], 116
  %4566 = vst [vmem:[%s4565] ss:$8 sm:$0x1] %v4564
  %4567 = vst [vmem:[%s4565] ss:$8 sm:$0x0] %v4564
  %v4568 = vrot.slane %v4098, 6
  %s4569 = scalar_lea.vmem [#allocation2], 117
  %4570 = vst [vmem:[%s4569] ss:$8 sm:$0x1] %v4568
  %4571 = vst [vmem:[%s4569] ss:$8 sm:$0x0] %v4568
  %v4572 = vrot.slane %v4099, 6
  %s4573 = scalar_lea.vmem [#allocation2], 118
  %4574 = vst [vmem:[%s4573] ss:$8 sm:$0x1] %v4572
  %4575 = vst [vmem:[%s4573] ss:$8 sm:$0x0] %v4572
  %v4576 = vrot.slane %v4100, 6
  %s4577 = scalar_lea.vmem [#allocation2], 119
  %4578 = vst [vmem:[%s4577] ss:$8 sm:$0x1] %v4576
  %4579 = vst [vmem:[%s4577] ss:$8 sm:$0x0] %v4576
  %v4580 = vrot.slane %v4093, 7
  %s4581 = scalar_lea.vmem [#allocation2], 120
  %4582 = vst [vmem:[%s4581] ss:$8 sm:$0x1] %v4580
  %4583 = vst [vmem:[%s4581] ss:$8 sm:$0x0] %v4580
  %v4584 = vrot.slane %v4094, 7
  %s4585 = scalar_lea.vmem [#allocation2], 121
  %4586 = vst [vmem:[%s4585] ss:$8 sm:$0x1] %v4584
  %4587 = vst [vmem:[%s4585] ss:$8 sm:$0x0] %v4584
  %v4588 = vrot.slane %v4095, 7
  %s4589 = scalar_lea.vmem [#allocation2], 122
  %4590 = vst [vmem:[%s4589] ss:$8 sm:$0x1] %v4588
  %4591 = vst [vmem:[%s4589] ss:$8 sm:$0x0] %v4588
  %v4592 = vrot.slane %v4096, 7
  %s4593 = scalar_lea.vmem [#allocation2], 123
  %4594 = vst [vmem:[%s4593] ss:$8 sm:$0x1] %v4592
  %4595 = vst [vmem:[%s4593] ss:$8 sm:$0x0] %v4592
  %v4596 = vrot.slane %v4097, 7
  %s4597 = scalar_lea.vmem [#allocation2], 124
  %4598 = vst [vmem:[%s4597] ss:$8 sm:$0x1] %v4596
  %4599 = vst [vmem:[%s4597] ss:$8 sm:$0x0] %v4596
  %v4600 = vrot.slane %v4098, 7
  %s4601 = scalar_lea.vmem [#allocation2], 125
  %4602 = vst [vmem:[%s4601] ss:$8 sm:$0x1] %v4600
  %4603 = vst [vmem:[%s4601] ss:$8 sm:$0x0] %v4600
  %v4604 = vrot.slane %v4099, 7
  %s4605 = scalar_lea.vmem [#allocation2], 126
  %4606 = vst [vmem:[%s4605] ss:$8 sm:$0x1] %v4604
  %4607 = vst [vmem:[%s4605] ss:$8 sm:$0x0] %v4604
  %v4608 = vrot.slane %v4100, 7
  %s4609 = scalar_lea.vmem [#allocation2], 127
  %4610 = vst [vmem:[%s4609] ss:$8 sm:$0x1] %v4608
  %4611 = vst [vmem:[%s4609] ss:$8 sm:$0x0] %v4608
  %v4612 = vld [vmem:[#allocation2] sm:$0xff]
  %v4613 = vld [vmem:[#allocation2 + $0x8] sm:$0xff]
  %v4614 = vld [vmem:[#allocation2 + $0x10] sm:$0xff]
  %v4615 = vld [vmem:[#allocation2 + $0x18] sm:$0xff]
  %v4616 = vld [vmem:[#allocation2 + $0x20] sm:$0xff]
  %v4617 = vld [vmem:[#allocation2 + $0x28] sm:$0xff]
  %v4618 = vld [vmem:[#allocation2 + $0x30] sm:$0xff]
  %v4619 = vld [vmem:[#allocation2 + $0x38] sm:$0xff]
  %v4620 = vld [vmem:[#allocation2 + $0x40] sm:$0xff]
  %v4621 = vld [vmem:[#allocation2 + $0x48] sm:$0xff]
  %v4622 = vld [vmem:[#allocation2 + $0x50] sm:$0xff]
  %v4623 = vld [vmem:[#allocation2 + $0x58] sm:$0xff]
  %v4624 = vld [vmem:[#allocation2 + $0x60] sm:$0xff]
  %v4625 = vld [vmem:[#allocation2 + $0x68] sm:$0xff]
  %v4626 = vld [vmem:[#allocation2 + $0x70] sm:$0xff]
  %v4627 = vld [vmem:[#allocation2 + $0x78] sm:$0xff]
  %v4628 = vpack.c.bf16 %v4612, %v4612
  %v4629 = vpack.c.bf16 %v4613, %v4613
  %v4630 = vpack.c.bf16 %v4614, %v4614
  %v4631 = vpack.c.bf16 %v4615, %v4615
  %v4632 = vpack.c.bf16 %v4616, %v4616
  %v4633 = vpack.c.bf16 %v4617, %v4617
  %v4634 = vpack.c.bf16 %v4618, %v4618
  %v4635 = vpack.c.bf16 %v4619, %v4619
  %v4636 = vpack.c.bf16 %v4620, %v4620
  %v4637 = vpack.c.bf16 %v4621, %v4621
  %v4638 = vpack.c.bf16 %v4622, %v4622
  %v4639 = vpack.c.bf16 %v4623, %v4623
  %v4640 = vpack.c.bf16 %v4624, %v4624
  %v4641 = vpack.c.bf16 %v4625, %v4625
  %v4642 = vpack.c.bf16 %v4626, %v4626
  %v4643 = vpack.c.bf16 %v4627, %v4627
  %v4644 = vld [vmem:[%s3] sm:$0xff]
  %v4645 = vld [vmem:[%s3 + $0x8] sm:$0xff]
  %v4646 = vld [vmem:[%s3 + $0x10] sm:$0xff]
  %v4647 = vld [vmem:[%s3 + $0x18] sm:$0xff]
  %v4648 = vld [vmem:[%s3 + $0x20] sm:$0xff]
  %v4649 = vld [vmem:[%s3 + $0x28] sm:$0xff]
  %v4650 = vld [vmem:[%s3 + $0x30] sm:$0xff]
  %v4651 = vld [vmem:[%s3 + $0x38] sm:$0xff]
  %v4652 = vld [vmem:[%s3 + $0x40] sm:$0xff]
  %v4653 = vld [vmem:[%s3 + $0x48] sm:$0xff]
  %v4654 = vld [vmem:[%s3 + $0x50] sm:$0xff]
  %v4655 = vld [vmem:[%s3 + $0x58] sm:$0xff]
  %v4656 = vld [vmem:[%s3 + $0x60] sm:$0xff]
  %v4657 = vld [vmem:[%s3 + $0x68] sm:$0xff]
  %v4658 = vld [vmem:[%s3 + $0x70] sm:$0xff]
  %v4659 = vld [vmem:[%s3 + $0x78] sm:$0xff]
  %v4660 = vld [vmem:[%s3 + $0x80] sm:$0xff]
  %v4661 = vld [vmem:[%s3 + $0x88] sm:$0xff]
  %v4662 = vld [vmem:[%s3 + $0x90] sm:$0xff]
  %v4663 = vld [vmem:[%s3 + $0x98] sm:$0xff]
  %v4664 = vld [vmem:[%s3 + $0xa0] sm:$0xff]
  %v4665 = vld [vmem:[%s3 + $0xa8] sm:$0xff]
  %v4666 = vld [vmem:[%s3 + $0xb0] sm:$0xff]
  %v4667 = vld [vmem:[%s3 + $0xb8] sm:$0xff]
  %v4668 = vld [vmem:[%s3 + $0xc0] sm:$0xff]
  %v4669 = vld [vmem:[%s3 + $0xc8] sm:$0xff]
  %v4670 = vld [vmem:[%s3 + $0xd0] sm:$0xff]
  %v4671 = vld [vmem:[%s3 + $0xd8] sm:$0xff]
  %v4672 = vld [vmem:[%s3 + $0xe0] sm:$0xff]
  %v4673 = vld [vmem:[%s3 + $0xe8] sm:$0xff]
  %v4674 = vld [vmem:[%s3 + $0xf0] sm:$0xff]
  %v4675 = vld [vmem:[%s3 + $0xf8] sm:$0xff]
  %v4676 = vld [vmem:[%s3 + $0x100] sm:$0xff]
  %v4677 = vld [vmem:[%s3 + $0x108] sm:$0xff]
  %v4678 = vld [vmem:[%s3 + $0x110] sm:$0xff]
  %v4679 = vld [vmem:[%s3 + $0x118] sm:$0xff]
  %v4680 = vld [vmem:[%s3 + $0x120] sm:$0xff]
  %v4681 = vld [vmem:[%s3 + $0x128] sm:$0xff]
  %v4682 = vld [vmem:[%s3 + $0x130] sm:$0xff]
  %v4683 = vld [vmem:[%s3 + $0x138] sm:$0xff]
  %v4684 = vld [vmem:[%s3 + $0x140] sm:$0xff]
  %v4685 = vld [vmem:[%s3 + $0x148] sm:$0xff]
  %v4686 = vld [vmem:[%s3 + $0x150] sm:$0xff]
  %v4687 = vld [vmem:[%s3 + $0x158] sm:$0xff]
  %v4688 = vld [vmem:[%s3 + $0x160] sm:$0xff]
  %v4689 = vld [vmem:[%s3 + $0x168] sm:$0xff]
  %v4690 = vld [vmem:[%s3 + $0x170] sm:$0xff]
  %v4691 = vld [vmem:[%s3 + $0x178] sm:$0xff]
  %v4692 = vld [vmem:[%s3 + $0x180] sm:$0xff]
  %v4693 = vld [vmem:[%s3 + $0x188] sm:$0xff]
  %v4694 = vld [vmem:[%s3 + $0x190] sm:$0xff]
  %v4695 = vld [vmem:[%s3 + $0x198] sm:$0xff]
  %v4696 = vld [vmem:[%s3 + $0x1a0] sm:$0xff]
  %v4697 = vld [vmem:[%s3 + $0x1a8] sm:$0xff]
  %v4698 = vld [vmem:[%s3 + $0x1b0] sm:$0xff]
  %v4699 = vld [vmem:[%s3 + $0x1b8] sm:$0xff]
  %v4700 = vld [vmem:[%s3 + $0x1c0] sm:$0xff]
  %v4701 = vld [vmem:[%s3 + $0x1c8] sm:$0xff]
  %v4702 = vld [vmem:[%s3 + $0x1d0] sm:$0xff]
  %v4703 = vld [vmem:[%s3 + $0x1d8] sm:$0xff]
  %v4704 = vld [vmem:[%s3 + $0x1e0] sm:$0xff]
  %v4705 = vld [vmem:[%s3 + $0x1e8] sm:$0xff]
  %v4706 = vld [vmem:[%s3 + $0x1f0] sm:$0xff]
  %v4707 = vld [vmem:[%s3 + $0x1f8] sm:$0xff]
  %v4708 = vld [vmem:[%s3 + $0x200] sm:$0xff]
  %v4709 = vld [vmem:[%s3 + $0x208] sm:$0xff]
  %v4710 = vld [vmem:[%s3 + $0x210] sm:$0xff]
  %v4711 = vld [vmem:[%s3 + $0x218] sm:$0xff]
  %v4712 = vld [vmem:[%s3 + $0x220] sm:$0xff]
  %v4713 = vld [vmem:[%s3 + $0x228] sm:$0xff]
  %v4714 = vld [vmem:[%s3 + $0x230] sm:$0xff]
  %v4715 = vld [vmem:[%s3 + $0x238] sm:$0xff]
  %v4716 = vld [vmem:[%s3 + $0x240] sm:$0xff]
  %v4717 = vld [vmem:[%s3 + $0x248] sm:$0xff]
  %v4718 = vld [vmem:[%s3 + $0x250] sm:$0xff]
  %v4719 = vld [vmem:[%s3 + $0x258] sm:$0xff]
  %v4720 = vld [vmem:[%s3 + $0x260] sm:$0xff]
  %v4721 = vld [vmem:[%s3 + $0x268] sm:$0xff]
  %v4722 = vld [vmem:[%s3 + $0x270] sm:$0xff]
  %v4723 = vld [vmem:[%s3 + $0x278] sm:$0xff]
  %v4724 = vld [vmem:[%s3 + $0x280] sm:$0xff]
  %v4725 = vld [vmem:[%s3 + $0x288] sm:$0xff]
  %v4726 = vld [vmem:[%s3 + $0x290] sm:$0xff]
  %v4727 = vld [vmem:[%s3 + $0x298] sm:$0xff]
  %v4728 = vld [vmem:[%s3 + $0x2a0] sm:$0xff]
  %v4729 = vld [vmem:[%s3 + $0x2a8] sm:$0xff]
  %v4730 = vld [vmem:[%s3 + $0x2b0] sm:$0xff]
  %v4731 = vld [vmem:[%s3 + $0x2b8] sm:$0xff]
  %v4732 = vld [vmem:[%s3 + $0x2c0] sm:$0xff]
  %v4733 = vld [vmem:[%s3 + $0x2c8] sm:$0xff]
  %v4734 = vld [vmem:[%s3 + $0x2d0] sm:$0xff]
  %v4735 = vld [vmem:[%s3 + $0x2d8] sm:$0xff]
  %v4736 = vld [vmem:[%s3 + $0x2e0] sm:$0xff]
  %v4737 = vld [vmem:[%s3 + $0x2e8] sm:$0xff]
  %v4738 = vld [vmem:[%s3 + $0x2f0] sm:$0xff]
  %v4739 = vld [vmem:[%s3 + $0x2f8] sm:$0xff]
  %v4740 = vld [vmem:[%s3 + $0x300] sm:$0xff]
  %v4741 = vld [vmem:[%s3 + $0x308] sm:$0xff]
  %v4742 = vld [vmem:[%s3 + $0x310] sm:$0xff]
  %v4743 = vld [vmem:[%s3 + $0x318] sm:$0xff]
  %v4744 = vld [vmem:[%s3 + $0x320] sm:$0xff]
  %v4745 = vld [vmem:[%s3 + $0x328] sm:$0xff]
  %v4746 = vld [vmem:[%s3 + $0x330] sm:$0xff]
  %v4747 = vld [vmem:[%s3 + $0x338] sm:$0xff]
  %v4748 = vld [vmem:[%s3 + $0x340] sm:$0xff]
  %v4749 = vld [vmem:[%s3 + $0x348] sm:$0xff]
  %v4750 = vld [vmem:[%s3 + $0x350] sm:$0xff]
  %v4751 = vld [vmem:[%s3 + $0x358] sm:$0xff]
  %v4752 = vld [vmem:[%s3 + $0x360] sm:$0xff]
  %v4753 = vld [vmem:[%s3 + $0x368] sm:$0xff]
  %v4754 = vld [vmem:[%s3 + $0x370] sm:$0xff]
  %v4755 = vld [vmem:[%s3 + $0x378] sm:$0xff]
  %v4756 = vld [vmem:[%s3 + $0x380] sm:$0xff]
  %v4757 = vld [vmem:[%s3 + $0x388] sm:$0xff]
  %v4758 = vld [vmem:[%s3 + $0x390] sm:$0xff]
  %v4759 = vld [vmem:[%s3 + $0x398] sm:$0xff]
  %v4760 = vld [vmem:[%s3 + $0x3a0] sm:$0xff]
  %v4761 = vld [vmem:[%s3 + $0x3a8] sm:$0xff]
  %v4762 = vld [vmem:[%s3 + $0x3b0] sm:$0xff]
  %v4763 = vld [vmem:[%s3 + $0x3b8] sm:$0xff]
  %v4764 = vld [vmem:[%s3 + $0x3c0] sm:$0xff]
  %v4765 = vld [vmem:[%s3 + $0x3c8] sm:$0xff]
  %v4766 = vld [vmem:[%s3 + $0x3d0] sm:$0xff]
  %v4767 = vld [vmem:[%s3 + $0x3d8] sm:$0xff]
  %v4768 = vld [vmem:[%s3 + $0x3e0] sm:$0xff]
  %v4769 = vld [vmem:[%s3 + $0x3e8] sm:$0xff]
  %v4770 = vld [vmem:[%s3 + $0x3f0] sm:$0xff]
  %v4771 = vld [vmem:[%s3 + $0x3f8] sm:$0xff]
  %v4772 = vld [vmem:[%s3 + $0x400] sm:$0xff]
  %v4773 = vld [vmem:[%s3 + $0x408] sm:$0xff]
  %v4774 = vld [vmem:[%s3 + $0x410] sm:$0xff]
  %v4775 = vld [vmem:[%s3 + $0x418] sm:$0xff]
  %v4776 = vld [vmem:[%s3 + $0x420] sm:$0xff]
  %v4777 = vld [vmem:[%s3 + $0x428] sm:$0xff]
  %v4778 = vld [vmem:[%s3 + $0x430] sm:$0xff]
  %v4779 = vld [vmem:[%s3 + $0x438] sm:$0xff]
  %v4780 = vld [vmem:[%s3 + $0x440] sm:$0xff]
  %v4781 = vld [vmem:[%s3 + $0x448] sm:$0xff]
  %v4782 = vld [vmem:[%s3 + $0x450] sm:$0xff]
  %v4783 = vld [vmem:[%s3 + $0x458] sm:$0xff]
  %v4784 = vld [vmem:[%s3 + $0x460] sm:$0xff]
  %v4785 = vld [vmem:[%s3 + $0x468] sm:$0xff]
  %v4786 = vld [vmem:[%s3 + $0x470] sm:$0xff]
  %v4787 = vld [vmem:[%s3 + $0x478] sm:$0xff]
  %v4788 = vld [vmem:[%s3 + $0x480] sm:$0xff]
  %v4789 = vld [vmem:[%s3 + $0x488] sm:$0xff]
  %v4790 = vld [vmem:[%s3 + $0x490] sm:$0xff]
  %v4791 = vld [vmem:[%s3 + $0x498] sm:$0xff]
  %v4792 = vld [vmem:[%s3 + $0x4a0] sm:$0xff]
  %v4793 = vld [vmem:[%s3 + $0x4a8] sm:$0xff]
  %v4794 = vld [vmem:[%s3 + $0x4b0] sm:$0xff]
  %v4795 = vld [vmem:[%s3 + $0x4b8] sm:$0xff]
  %v4796 = vld [vmem:[%s3 + $0x4c0] sm:$0xff]
  %v4797 = vld [vmem:[%s3 + $0x4c8] sm:$0xff]
  %v4798 = vld [vmem:[%s3 + $0x4d0] sm:$0xff]
  %v4799 = vld [vmem:[%s3 + $0x4d8] sm:$0xff]
  %v4800 = vld [vmem:[%s3 + $0x4e0] sm:$0xff]
  %v4801 = vld [vmem:[%s3 + $0x4e8] sm:$0xff]
  %v4802 = vld [vmem:[%s3 + $0x4f0] sm:$0xff]
  %v4803 = vld [vmem:[%s3 + $0x4f8] sm:$0xff]
  %v4804 = vld [vmem:[%s3 + $0x500] sm:$0xff]
  %v4805 = vld [vmem:[%s3 + $0x508] sm:$0xff]
  %v4806 = vld [vmem:[%s3 + $0x510] sm:$0xff]
  %v4807 = vld [vmem:[%s3 + $0x518] sm:$0xff]
  %v4808 = vld [vmem:[%s3 + $0x520] sm:$0xff]
  %v4809 = vld [vmem:[%s3 + $0x528] sm:$0xff]
  %v4810 = vld [vmem:[%s3 + $0x530] sm:$0xff]
  %v4811 = vld [vmem:[%s3 + $0x538] sm:$0xff]
  %v4812 = vld [vmem:[%s3 + $0x540] sm:$0xff]
  %v4813 = vld [vmem:[%s3 + $0x548] sm:$0xff]
  %v4814 = vld [vmem:[%s3 + $0x550] sm:$0xff]
  %v4815 = vld [vmem:[%s3 + $0x558] sm:$0xff]
  %v4816 = vld [vmem:[%s3 + $0x560] sm:$0xff]
  %v4817 = vld [vmem:[%s3 + $0x568] sm:$0xff]
  %v4818 = vld [vmem:[%s3 + $0x570] sm:$0xff]
  %v4819 = vld [vmem:[%s3 + $0x578] sm:$0xff]
  %v4820 = vld [vmem:[%s3 + $0x580] sm:$0xff]
  %v4821 = vld [vmem:[%s3 + $0x588] sm:$0xff]
  %v4822 = vld [vmem:[%s3 + $0x590] sm:$0xff]
  %v4823 = vld [vmem:[%s3 + $0x598] sm:$0xff]
  %v4824 = vld [vmem:[%s3 + $0x5a0] sm:$0xff]
  %v4825 = vld [vmem:[%s3 + $0x5a8] sm:$0xff]
  %v4826 = vld [vmem:[%s3 + $0x5b0] sm:$0xff]
  %v4827 = vld [vmem:[%s3 + $0x5b8] sm:$0xff]
  %v4828 = vld [vmem:[%s3 + $0x5c0] sm:$0xff]
  %v4829 = vld [vmem:[%s3 + $0x5c8] sm:$0xff]
  %v4830 = vld [vmem:[%s3 + $0x5d0] sm:$0xff]
  %v4831 = vld [vmem:[%s3 + $0x5d8] sm:$0xff]
  %v4832 = vld [vmem:[%s3 + $0x5e0] sm:$0xff]
  %v4833 = vld [vmem:[%s3 + $0x5e8] sm:$0xff]
  %v4834 = vld [vmem:[%s3 + $0x5f0] sm:$0xff]
  %v4835 = vld [vmem:[%s3 + $0x5f8] sm:$0xff]
  %v4836 = vld [vmem:[%s3 + $0x600] sm:$0xff]
  %v4837 = vld [vmem:[%s3 + $0x608] sm:$0xff]
  %v4838 = vld [vmem:[%s3 + $0x610] sm:$0xff]
  %v4839 = vld [vmem:[%s3 + $0x618] sm:$0xff]
  %v4840 = vld [vmem:[%s3 + $0x620] sm:$0xff]
  %v4841 = vld [vmem:[%s3 + $0x628] sm:$0xff]
  %v4842 = vld [vmem:[%s3 + $0x630] sm:$0xff]
  %v4843 = vld [vmem:[%s3 + $0x638] sm:$0xff]
  %v4844 = vld [vmem:[%s3 + $0x640] sm:$0xff]
  %v4845 = vld [vmem:[%s3 + $0x648] sm:$0xff]
  %v4846 = vld [vmem:[%s3 + $0x650] sm:$0xff]
  %v4847 = vld [vmem:[%s3 + $0x658] sm:$0xff]
  %v4848 = vld [vmem:[%s3 + $0x660] sm:$0xff]
  %v4849 = vld [vmem:[%s3 + $0x668] sm:$0xff]
  %v4850 = vld [vmem:[%s3 + $0x670] sm:$0xff]
  %v4851 = vld [vmem:[%s3 + $0x678] sm:$0xff]
  %v4852 = vld [vmem:[%s3 + $0x680] sm:$0xff]
  %v4853 = vld [vmem:[%s3 + $0x688] sm:$0xff]
  %v4854 = vld [vmem:[%s3 + $0x690] sm:$0xff]
  %v4855 = vld [vmem:[%s3 + $0x698] sm:$0xff]
  %v4856 = vld [vmem:[%s3 + $0x6a0] sm:$0xff]
  %v4857 = vld [vmem:[%s3 + $0x6a8] sm:$0xff]
  %v4858 = vld [vmem:[%s3 + $0x6b0] sm:$0xff]
  %v4859 = vld [vmem:[%s3 + $0x6b8] sm:$0xff]
  %v4860 = vld [vmem:[%s3 + $0x6c0] sm:$0xff]
  %v4861 = vld [vmem:[%s3 + $0x6c8] sm:$0xff]
  %v4862 = vld [vmem:[%s3 + $0x6d0] sm:$0xff]
  %v4863 = vld [vmem:[%s3 + $0x6d8] sm:$0xff]
  %v4864 = vld [vmem:[%s3 + $0x6e0] sm:$0xff]
  %v4865 = vld [vmem:[%s3 + $0x6e8] sm:$0xff]
  %v4866 = vld [vmem:[%s3 + $0x6f0] sm:$0xff]
  %v4867 = vld [vmem:[%s3 + $0x6f8] sm:$0xff]
  %v4868 = vld [vmem:[%s3 + $0x700] sm:$0xff]
  %v4869 = vld [vmem:[%s3 + $0x708] sm:$0xff]
  %v4870 = vld [vmem:[%s3 + $0x710] sm:$0xff]
  %v4871 = vld [vmem:[%s3 + $0x718] sm:$0xff]
  %v4872 = vld [vmem:[%s3 + $0x720] sm:$0xff]
  %v4873 = vld [vmem:[%s3 + $0x728] sm:$0xff]
  %v4874 = vld [vmem:[%s3 + $0x730] sm:$0xff]
  %v4875 = vld [vmem:[%s3 + $0x738] sm:$0xff]
  %v4876 = vld [vmem:[%s3 + $0x740] sm:$0xff]
  %v4877 = vld [vmem:[%s3 + $0x748] sm:$0xff]
  %v4878 = vld [vmem:[%s3 + $0x750] sm:$0xff]
  %v4879 = vld [vmem:[%s3 + $0x758] sm:$0xff]
  %v4880 = vld [vmem:[%s3 + $0x760] sm:$0xff]
  %v4881 = vld [vmem:[%s3 + $0x768] sm:$0xff]
  %v4882 = vld [vmem:[%s3 + $0x770] sm:$0xff]
  %v4883 = vld [vmem:[%s3 + $0x778] sm:$0xff]
  %v4884 = vld [vmem:[%s3 + $0x780] sm:$0xff]
  %v4885 = vld [vmem:[%s3 + $0x788] sm:$0xff]
  %v4886 = vld [vmem:[%s3 + $0x790] sm:$0xff]
  %v4887 = vld [vmem:[%s3 + $0x798] sm:$0xff]
  %v4888 = vld [vmem:[%s3 + $0x7a0] sm:$0xff]
  %v4889 = vld [vmem:[%s3 + $0x7a8] sm:$0xff]
  %v4890 = vld [vmem:[%s3 + $0x7b0] sm:$0xff]
  %v4891 = vld [vmem:[%s3 + $0x7b8] sm:$0xff]
  %v4892 = vld [vmem:[%s3 + $0x7c0] sm:$0xff]
  %v4893 = vld [vmem:[%s3 + $0x7c8] sm:$0xff]
  %v4894 = vld [vmem:[%s3 + $0x7d0] sm:$0xff]
  %v4895 = vld [vmem:[%s3 + $0x7d8] sm:$0xff]
  %v4896 = vld [vmem:[%s3 + $0x7e0] sm:$0xff]
  %v4897 = vld [vmem:[%s3 + $0x7e8] sm:$0xff]
  %v4898 = vld [vmem:[%s3 + $0x7f0] sm:$0xff]
  %v4899 = vld [vmem:[%s3 + $0x7f8] sm:$0xff]
  %v4916 = vunpack.c.l.b16 %v4644
  %v4917 = vunpack.c.h.b16 %v4644
  %v4918 = vunpack.c.l.b16 %v4645
  %v4919 = vunpack.c.h.b16 %v4645
  %v4920 = vunpack.c.l.b16 %v4646
  %v4921 = vunpack.c.h.b16 %v4646
  %v4922 = vunpack.c.l.b16 %v4647
  %v4923 = vunpack.c.h.b16 %v4647
  %v4924 = vunpack.c.l.b16 %v4648
  %v4925 = vunpack.c.h.b16 %v4648
  %v4926 = vunpack.c.l.b16 %v4649
  %v4927 = vunpack.c.h.b16 %v4649
  %v4928 = vunpack.c.l.b16 %v4650
  %v4929 = vunpack.c.h.b16 %v4650
  %v4930 = vunpack.c.l.b16 %v4651
  %v4931 = vunpack.c.h.b16 %v4651
  %v4932 = vunpack.c.l.b16 %v4652
  %v4933 = vunpack.c.h.b16 %v4652
  %v4934 = vunpack.c.l.b16 %v4653
  %v4935 = vunpack.c.h.b16 %v4653
  %v4936 = vunpack.c.l.b16 %v4654
  %v4937 = vunpack.c.h.b16 %v4654
  %v4938 = vunpack.c.l.b16 %v4655
  %v4939 = vunpack.c.h.b16 %v4655
  %v4940 = vunpack.c.l.b16 %v4656
  %v4941 = vunpack.c.h.b16 %v4656
  %v4942 = vunpack.c.l.b16 %v4657
  %v4943 = vunpack.c.h.b16 %v4657
  %v4944 = vunpack.c.l.b16 %v4658
  %v4945 = vunpack.c.h.b16 %v4658
  %v4946 = vunpack.c.l.b16 %v4659
  %v4947 = vunpack.c.h.b16 %v4659
  %v4948 = vpack.c.b16 %v4918, %v4916
  %v4949 = vpack.c.b16 %v4919, %v4917
  %v4950 = vpack.c.b16 %v4922, %v4920
  %v4951 = vpack.c.b16 %v4923, %v4921
  %v4952 = vpack.c.b16 %v4926, %v4924
  %v4953 = vpack.c.b16 %v4927, %v4925
  %v4954 = vpack.c.b16 %v4930, %v4928
  %v4955 = vpack.c.b16 %v4931, %v4929
  %v4956 = vpack.c.b16 %v4934, %v4932
  %v4957 = vpack.c.b16 %v4935, %v4933
  %v4958 = vpack.c.b16 %v4938, %v4936
  %v4959 = vpack.c.b16 %v4939, %v4937
  %v4960 = vpack.c.b16 %v4942, %v4940
  %v4961 = vpack.c.b16 %v4943, %v4941
  %v4962 = vpack.c.b16 %v4946, %v4944
  %v4963 = vpack.c.b16 %v4947, %v4945
  %4980 = vmatpush.bf16.msra.mxu0 %v4962
  %4981 = vmatpush.bf16.msra.mxu0 %v4960
  %4982 = vmatpush.bf16.msra.mxu0 %v4958
  %4983 = vmatpush.bf16.msra.mxu0 %v4956
  %4984 = vmatpush.bf16.msra.mxu0 %v4954
  %4985 = vmatpush.bf16.msra.mxu0 %v4952
  %4986 = vmatpush.bf16.msra.mxu0 %v4950
  %4987 = vmatpush.bf16.msra.mxu0 %v4948
  %4988 = vmatmul.bf16.gmra.mxu0 %v4628
  %v4989 = vpop.f32.mrf.mxu0
  %v4990 = vadd.f32 0.0, %v4989
  %v4991 = vpop.f32.mrf.mxu0
  %4992 = vdwg.mxu0
  %4993 = vmatpush.bf16.msra.mxu0 %v4963
  %4994 = vmatpush.bf16.msra.mxu0 %v4961
  %4995 = vmatpush.bf16.msra.mxu0 %v4959
  %4996 = vmatpush.bf16.msra.mxu0 %v4957
  %4997 = vmatpush.bf16.msra.mxu0 %v4955
  %4998 = vmatpush.bf16.msra.mxu0 %v4953
  %4999 = vmatpush.bf16.msra.mxu0 %v4951
  %5000 = vmatpush.bf16.msra.mxu0 %v4949
  %5001 = vmatmul.bf16.gmra.mxu0 %v4628
  %v5002 = vpop.f32.mrf.mxu0
  %v5003 = vadd.f32 0.0, %v5002
  %v5004 = vpop.f32.mrf.mxu0
  %5005 = vdwg.mxu0
  %v5022 = vunpack.c.l.b16 %v4660
  %v5023 = vunpack.c.h.b16 %v4660
  %v5024 = vunpack.c.l.b16 %v4661
  %v5025 = vunpack.c.h.b16 %v4661
  %v5026 = vunpack.c.l.b16 %v4662
  %v5027 = vunpack.c.h.b16 %v4662
  %v5028 = vunpack.c.l.b16 %v4663
  %v5029 = vunpack.c.h.b16 %v4663
  %v5030 = vunpack.c.l.b16 %v4664
  %v5031 = vunpack.c.h.b16 %v4664
  %v5032 = vunpack.c.l.b16 %v4665
  %v5033 = vunpack.c.h.b16 %v4665
  %v5034 = vunpack.c.l.b16 %v4666
  %v5035 = vunpack.c.h.b16 %v4666
  %v5036 = vunpack.c.l.b16 %v4667
  %v5037 = vunpack.c.h.b16 %v4667
  %v5038 = vunpack.c.l.b16 %v4668
  %v5039 = vunpack.c.h.b16 %v4668
  %v5040 = vunpack.c.l.b16 %v4669
  %v5041 = vunpack.c.h.b16 %v4669
  %v5042 = vunpack.c.l.b16 %v4670
  %v5043 = vunpack.c.h.b16 %v4670
  %v5044 = vunpack.c.l.b16 %v4671
  %v5045 = vunpack.c.h.b16 %v4671
  %v5046 = vunpack.c.l.b16 %v4672
  %v5047 = vunpack.c.h.b16 %v4672
  %v5048 = vunpack.c.l.b16 %v4673
  %v5049 = vunpack.c.h.b16 %v4673
  %v5050 = vunpack.c.l.b16 %v4674
  %v5051 = vunpack.c.h.b16 %v4674
  %v5052 = vunpack.c.l.b16 %v4675
  %v5053 = vunpack.c.h.b16 %v4675
  %v5054 = vpack.c.b16 %v5024, %v5022
  %v5055 = vpack.c.b16 %v5025, %v5023
  %v5056 = vpack.c.b16 %v5028, %v5026
  %v5057 = vpack.c.b16 %v5029, %v5027
  %v5058 = vpack.c.b16 %v5032, %v5030
  %v5059 = vpack.c.b16 %v5033, %v5031
  %v5060 = vpack.c.b16 %v5036, %v5034
  %v5061 = vpack.c.b16 %v5037, %v5035
  %v5062 = vpack.c.b16 %v5040, %v5038
  %v5063 = vpack.c.b16 %v5041, %v5039
  %v5064 = vpack.c.b16 %v5044, %v5042
  %v5065 = vpack.c.b16 %v5045, %v5043
  %v5066 = vpack.c.b16 %v5048, %v5046
  %v5067 = vpack.c.b16 %v5049, %v5047
  %v5068 = vpack.c.b16 %v5052, %v5050
  %v5069 = vpack.c.b16 %v5053, %v5051
  %5086 = vmatpush.bf16.msra.mxu0 %v5068
  %5087 = vmatpush.bf16.msra.mxu0 %v5066
  %5088 = vmatpush.bf16.msra.mxu0 %v5064
  %5089 = vmatpush.bf16.msra.mxu0 %v5062
  %5090 = vmatpush.bf16.msra.mxu0 %v5060
  %5091 = vmatpush.bf16.msra.mxu0 %v5058
  %5092 = vmatpush.bf16.msra.mxu0 %v5056
  %5093 = vmatpush.bf16.msra.mxu0 %v5054
  %5094 = vmatmul.bf16.gmra.mxu0 %v4629
  %v5095 = vpop.f32.mrf.mxu0
  %v5096 = vadd.f32 0.0, %v5095
  %v5097 = vpop.f32.mrf.mxu0
  %5098 = vdwg.mxu0
  %5099 = vmatpush.bf16.msra.mxu0 %v5069
  %5100 = vmatpush.bf16.msra.mxu0 %v5067
  %5101 = vmatpush.bf16.msra.mxu0 %v5065
  %5102 = vmatpush.bf16.msra.mxu0 %v5063
  %5103 = vmatpush.bf16.msra.mxu0 %v5061
  %5104 = vmatpush.bf16.msra.mxu0 %v5059
  %5105 = vmatpush.bf16.msra.mxu0 %v5057
  %5106 = vmatpush.bf16.msra.mxu0 %v5055
  %5107 = vmatmul.bf16.gmra.mxu0 %v4629
  %v5108 = vpop.f32.mrf.mxu0
  %v5109 = vadd.f32 0.0, %v5108
  %v5110 = vpop.f32.mrf.mxu0
  %5111 = vdwg.mxu0
  %v5128 = vunpack.c.l.b16 %v4676
  %v5129 = vunpack.c.h.b16 %v4676
  %v5130 = vunpack.c.l.b16 %v4677
  %v5131 = vunpack.c.h.b16 %v4677
  %v5132 = vunpack.c.l.b16 %v4678
  %v5133 = vunpack.c.h.b16 %v4678
  %v5134 = vunpack.c.l.b16 %v4679
  %v5135 = vunpack.c.h.b16 %v4679
  %v5136 = vunpack.c.l.b16 %v4680
  %v5137 = vunpack.c.h.b16 %v4680
  %v5138 = vunpack.c.l.b16 %v4681
  %v5139 = vunpack.c.h.b16 %v4681
  %v5140 = vunpack.c.l.b16 %v4682
  %v5141 = vunpack.c.h.b16 %v4682
  %v5142 = vunpack.c.l.b16 %v4683
  %v5143 = vunpack.c.h.b16 %v4683
  %v5144 = vunpack.c.l.b16 %v4684
  %v5145 = vunpack.c.h.b16 %v4684
  %v5146 = vunpack.c.l.b16 %v4685
  %v5147 = vunpack.c.h.b16 %v4685
  %v5148 = vunpack.c.l.b16 %v4686
  %v5149 = vunpack.c.h.b16 %v4686
  %v5150 = vunpack.c.l.b16 %v4687
  %v5151 = vunpack.c.h.b16 %v4687
  %v5152 = vunpack.c.l.b16 %v4688
  %v5153 = vunpack.c.h.b16 %v4688
  %v5154 = vunpack.c.l.b16 %v4689
  %v5155 = vunpack.c.h.b16 %v4689
  %v5156 = vunpack.c.l.b16 %v4690
  %v5157 = vunpack.c.h.b16 %v4690
  %v5158 = vunpack.c.l.b16 %v4691
  %v5159 = vunpack.c.h.b16 %v4691
  %v5160 = vpack.c.b16 %v5130, %v5128
  %v5161 = vpack.c.b16 %v5131, %v5129
  %v5162 = vpack.c.b16 %v5134, %v5132
  %v5163 = vpack.c.b16 %v5135, %v5133
  %v5164 = vpack.c.b16 %v5138, %v5136
  %v5165 = vpack.c.b16 %v5139, %v5137
  %v5166 = vpack.c.b16 %v5142, %v5140
  %v5167 = vpack.c.b16 %v5143, %v5141
  %v5168 = vpack.c.b16 %v5146, %v5144
  %v5169 = vpack.c.b16 %v5147, %v5145
  %v5170 = vpack.c.b16 %v5150, %v5148
  %v5171 = vpack.c.b16 %v5151, %v5149
  %v5172 = vpack.c.b16 %v5154, %v5152
  %v5173 = vpack.c.b16 %v5155, %v5153
  %v5174 = vpack.c.b16 %v5158, %v5156
  %v5175 = vpack.c.b16 %v5159, %v5157
  %5192 = vmatpush.bf16.msra.mxu0 %v5174
  %5193 = vmatpush.bf16.msra.mxu0 %v5172
  %5194 = vmatpush.bf16.msra.mxu0 %v5170
  %5195 = vmatpush.bf16.msra.mxu0 %v5168
  %5196 = vmatpush.bf16.msra.mxu0 %v5166
  %5197 = vmatpush.bf16.msra.mxu0 %v5164
  %5198 = vmatpush.bf16.msra.mxu0 %v5162
  %5199 = vmatpush.bf16.msra.mxu0 %v5160
  %5200 = vmatmul.bf16.gmra.mxu0 %v4630
  %v5201 = vpop.f32.mrf.mxu0
  %v5202 = vadd.f32 0.0, %v5201
  %v5203 = vpop.f32.mrf.mxu0
  %5204 = vdwg.mxu0
  %5205 = vmatpush.bf16.msra.mxu0 %v5175
  %5206 = vmatpush.bf16.msra.mxu0 %v5173
  %5207 = vmatpush.bf16.msra.mxu0 %v5171
  %5208 = vmatpush.bf16.msra.mxu0 %v5169
  %5209 = vmatpush.bf16.msra.mxu0 %v5167
  %5210 = vmatpush.bf16.msra.mxu0 %v5165
  %5211 = vmatpush.bf16.msra.mxu0 %v5163
  %5212 = vmatpush.bf16.msra.mxu0 %v5161
  %5213 = vmatmul.bf16.gmra.mxu0 %v4630
  %v5214 = vpop.f32.mrf.mxu0
  %v5215 = vadd.f32 0.0, %v5214
  %v5216 = vpop.f32.mrf.mxu0
  %5217 = vdwg.mxu0
  %v5234 = vunpack.c.l.b16 %v4692
  %v5235 = vunpack.c.h.b16 %v4692
  %v5236 = vunpack.c.l.b16 %v4693
  %v5237 = vunpack.c.h.b16 %v4693
  %v5238 = vunpack.c.l.b16 %v4694
  %v5239 = vunpack.c.h.b16 %v4694
  %v5240 = vunpack.c.l.b16 %v4695
  %v5241 = vunpack.c.h.b16 %v4695
  %v5242 = vunpack.c.l.b16 %v4696
  %v5243 = vunpack.c.h.b16 %v4696
  %v5244 = vunpack.c.l.b16 %v4697
  %v5245 = vunpack.c.h.b16 %v4697
  %v5246 = vunpack.c.l.b16 %v4698
  %v5247 = vunpack.c.h.b16 %v4698
  %v5248 = vunpack.c.l.b16 %v4699
  %v5249 = vunpack.c.h.b16 %v4699
  %v5250 = vunpack.c.l.b16 %v4700
  %v5251 = vunpack.c.h.b16 %v4700
  %v5252 = vunpack.c.l.b16 %v4701
  %v5253 = vunpack.c.h.b16 %v4701
  %v5254 = vunpack.c.l.b16 %v4702
  %v5255 = vunpack.c.h.b16 %v4702
  %v5256 = vunpack.c.l.b16 %v4703
  %v5257 = vunpack.c.h.b16 %v4703
  %v5258 = vunpack.c.l.b16 %v4704
  %v5259 = vunpack.c.h.b16 %v4704
  %v5260 = vunpack.c.l.b16 %v4705
  %v5261 = vunpack.c.h.b16 %v4705
  %v5262 = vunpack.c.l.b16 %v4706
  %v5263 = vunpack.c.h.b16 %v4706
  %v5264 = vunpack.c.l.b16 %v4707
  %v5265 = vunpack.c.h.b16 %v4707
  %v5266 = vpack.c.b16 %v5236, %v5234
  %v5267 = vpack.c.b16 %v5237, %v5235
  %v5268 = vpack.c.b16 %v5240, %v5238
  %v5269 = vpack.c.b16 %v5241, %v5239
  %v5270 = vpack.c.b16 %v5244, %v5242
  %v5271 = vpack.c.b16 %v5245, %v5243
  %v5272 = vpack.c.b16 %v5248, %v5246
  %v5273 = vpack.c.b16 %v5249, %v5247
  %v5274 = vpack.c.b16 %v5252, %v5250
  %v5275 = vpack.c.b16 %v5253, %v5251
  %v5276 = vpack.c.b16 %v5256, %v5254
  %v5277 = vpack.c.b16 %v5257, %v5255
  %v5278 = vpack.c.b16 %v5260, %v5258
  %v5279 = vpack.c.b16 %v5261, %v5259
  %v5280 = vpack.c.b16 %v5264, %v5262
  %v5281 = vpack.c.b16 %v5265, %v5263
  %5298 = vmatpush.bf16.msra.mxu0 %v5280
  %5299 = vmatpush.bf16.msra.mxu0 %v5278
  %5300 = vmatpush.bf16.msra.mxu0 %v5276
  %5301 = vmatpush.bf16.msra.mxu0 %v5274
  %5302 = vmatpush.bf16.msra.mxu0 %v5272
  %5303 = vmatpush.bf16.msra.mxu0 %v5270
  %5304 = vmatpush.bf16.msra.mxu0 %v5268
  %5305 = vmatpush.bf16.msra.mxu0 %v5266
  %5306 = vmatmul.bf16.gmra.mxu0 %v4631
  %v5307 = vpop.f32.mrf.mxu0
  %v5308 = vadd.f32 0.0, %v5307
  %v5309 = vpop.f32.mrf.mxu0
  %5310 = vdwg.mxu0
  %5311 = vmatpush.bf16.msra.mxu0 %v5281
  %5312 = vmatpush.bf16.msra.mxu0 %v5279
  %5313 = vmatpush.bf16.msra.mxu0 %v5277
  %5314 = vmatpush.bf16.msra.mxu0 %v5275
  %5315 = vmatpush.bf16.msra.mxu0 %v5273
  %5316 = vmatpush.bf16.msra.mxu0 %v5271
  %5317 = vmatpush.bf16.msra.mxu0 %v5269
  %5318 = vmatpush.bf16.msra.mxu0 %v5267
  %5319 = vmatmul.bf16.gmra.mxu0 %v4631
  %v5320 = vpop.f32.mrf.mxu0
  %v5321 = vadd.f32 0.0, %v5320
  %v5322 = vpop.f32.mrf.mxu0
  %5323 = vdwg.mxu0
  %v5340 = vunpack.c.l.b16 %v4708
  %v5341 = vunpack.c.h.b16 %v4708
  %v5342 = vunpack.c.l.b16 %v4709
  %v5343 = vunpack.c.h.b16 %v4709
  %v5344 = vunpack.c.l.b16 %v4710
  %v5345 = vunpack.c.h.b16 %v4710
  %v5346 = vunpack.c.l.b16 %v4711
  %v5347 = vunpack.c.h.b16 %v4711
  %v5348 = vunpack.c.l.b16 %v4712
  %v5349 = vunpack.c.h.b16 %v4712
  %v5350 = vunpack.c.l.b16 %v4713
  %v5351 = vunpack.c.h.b16 %v4713
  %v5352 = vunpack.c.l.b16 %v4714
  %v5353 = vunpack.c.h.b16 %v4714
  %v5354 = vunpack.c.l.b16 %v4715
  %v5355 = vunpack.c.h.b16 %v4715
  %v5356 = vunpack.c.l.b16 %v4716
  %v5357 = vunpack.c.h.b16 %v4716
  %v5358 = vunpack.c.l.b16 %v4717
  %v5359 = vunpack.c.h.b16 %v4717
  %v5360 = vunpack.c.l.b16 %v4718
  %v5361 = vunpack.c.h.b16 %v4718
  %v5362 = vunpack.c.l.b16 %v4719
  %v5363 = vunpack.c.h.b16 %v4719
  %v5364 = vunpack.c.l.b16 %v4720
  %v5365 = vunpack.c.h.b16 %v4720
  %v5366 = vunpack.c.l.b16 %v4721
  %v5367 = vunpack.c.h.b16 %v4721
  %v5368 = vunpack.c.l.b16 %v4722
  %v5369 = vunpack.c.h.b16 %v4722
  %v5370 = vunpack.c.l.b16 %v4723
  %v5371 = vunpack.c.h.b16 %v4723
  %v5372 = vpack.c.b16 %v5342, %v5340
  %v5373 = vpack.c.b16 %v5343, %v5341
  %v5374 = vpack.c.b16 %v5346, %v5344
  %v5375 = vpack.c.b16 %v5347, %v5345
  %v5376 = vpack.c.b16 %v5350, %v5348
  %v5377 = vpack.c.b16 %v5351, %v5349
  %v5378 = vpack.c.b16 %v5354, %v5352
  %v5379 = vpack.c.b16 %v5355, %v5353
  %v5380 = vpack.c.b16 %v5358, %v5356
  %v5381 = vpack.c.b16 %v5359, %v5357
  %v5382 = vpack.c.b16 %v5362, %v5360
  %v5383 = vpack.c.b16 %v5363, %v5361
  %v5384 = vpack.c.b16 %v5366, %v5364
  %v5385 = vpack.c.b16 %v5367, %v5365
  %v5386 = vpack.c.b16 %v5370, %v5368
  %v5387 = vpack.c.b16 %v5371, %v5369
  %5404 = vmatpush.bf16.msra.mxu0 %v5386
  %5405 = vmatpush.bf16.msra.mxu0 %v5384
  %5406 = vmatpush.bf16.msra.mxu0 %v5382
  %5407 = vmatpush.bf16.msra.mxu0 %v5380
  %5408 = vmatpush.bf16.msra.mxu0 %v5378
  %5409 = vmatpush.bf16.msra.mxu0 %v5376
  %5410 = vmatpush.bf16.msra.mxu0 %v5374
  %5411 = vmatpush.bf16.msra.mxu0 %v5372
  %5412 = vmatmul.bf16.gmra.mxu0 %v4632
  %v5413 = vpop.f32.mrf.mxu0
  %v5414 = vadd.f32 0.0, %v5413
  %v5415 = vpop.f32.mrf.mxu0
  %5416 = vdwg.mxu0
  %5417 = vmatpush.bf16.msra.mxu0 %v5387
  %5418 = vmatpush.bf16.msra.mxu0 %v5385
  %5419 = vmatpush.bf16.msra.mxu0 %v5383
  %5420 = vmatpush.bf16.msra.mxu0 %v5381
  %5421 = vmatpush.bf16.msra.mxu0 %v5379
  %5422 = vmatpush.bf16.msra.mxu0 %v5377
  %5423 = vmatpush.bf16.msra.mxu0 %v5375
  %5424 = vmatpush.bf16.msra.mxu0 %v5373
  %5425 = vmatmul.bf16.gmra.mxu0 %v4632
  %v5426 = vpop.f32.mrf.mxu0
  %v5427 = vadd.f32 0.0, %v5426
  %v5428 = vpop.f32.mrf.mxu0
  %5429 = vdwg.mxu0
  %v5446 = vunpack.c.l.b16 %v4724
  %v5447 = vunpack.c.h.b16 %v4724
  %v5448 = vunpack.c.l.b16 %v4725
  %v5449 = vunpack.c.h.b16 %v4725
  %v5450 = vunpack.c.l.b16 %v4726
  %v5451 = vunpack.c.h.b16 %v4726
  %v5452 = vunpack.c.l.b16 %v4727
  %v5453 = vunpack.c.h.b16 %v4727
  %v5454 = vunpack.c.l.b16 %v4728
  %v5455 = vunpack.c.h.b16 %v4728
  %v5456 = vunpack.c.l.b16 %v4729
  %v5457 = vunpack.c.h.b16 %v4729
  %v5458 = vunpack.c.l.b16 %v4730
  %v5459 = vunpack.c.h.b16 %v4730
  %v5460 = vunpack.c.l.b16 %v4731
  %v5461 = vunpack.c.h.b16 %v4731
  %v5462 = vunpack.c.l.b16 %v4732
  %v5463 = vunpack.c.h.b16 %v4732
  %v5464 = vunpack.c.l.b16 %v4733
  %v5465 = vunpack.c.h.b16 %v4733
  %v5466 = vunpack.c.l.b16 %v4734
  %v5467 = vunpack.c.h.b16 %v4734
  %v5468 = vunpack.c.l.b16 %v4735
  %v5469 = vunpack.c.h.b16 %v4735
  %v5470 = vunpack.c.l.b16 %v4736
  %v5471 = vunpack.c.h.b16 %v4736
  %v5472 = vunpack.c.l.b16 %v4737
  %v5473 = vunpack.c.h.b16 %v4737
  %v5474 = vunpack.c.l.b16 %v4738
  %v5475 = vunpack.c.h.b16 %v4738
  %v5476 = vunpack.c.l.b16 %v4739
  %v5477 = vunpack.c.h.b16 %v4739
  %v5478 = vpack.c.b16 %v5448, %v5446
  %v5479 = vpack.c.b16 %v5449, %v5447
  %v5480 = vpack.c.b16 %v5452, %v5450
  %v5481 = vpack.c.b16 %v5453, %v5451
  %v5482 = vpack.c.b16 %v5456, %v5454
  %v5483 = vpack.c.b16 %v5457, %v5455
  %v5484 = vpack.c.b16 %v5460, %v5458
  %v5485 = vpack.c.b16 %v5461, %v5459
  %v5486 = vpack.c.b16 %v5464, %v5462
  %v5487 = vpack.c.b16 %v5465, %v5463
  %v5488 = vpack.c.b16 %v5468, %v5466
  %v5489 = vpack.c.b16 %v5469, %v5467
  %v5490 = vpack.c.b16 %v5472, %v5470
  %v5491 = vpack.c.b16 %v5473, %v5471
  %v5492 = vpack.c.b16 %v5476, %v5474
  %v5493 = vpack.c.b16 %v5477, %v5475
  %5510 = vmatpush.bf16.msra.mxu0 %v5492
  %5511 = vmatpush.bf16.msra.mxu0 %v5490
  %5512 = vmatpush.bf16.msra.mxu0 %v5488
  %5513 = vmatpush.bf16.msra.mxu0 %v5486
  %5514 = vmatpush.bf16.msra.mxu0 %v5484
  %5515 = vmatpush.bf16.msra.mxu0 %v5482
  %5516 = vmatpush.bf16.msra.mxu0 %v5480
  %5517 = vmatpush.bf16.msra.mxu0 %v5478
  %5518 = vmatmul.bf16.gmra.mxu0 %v4633
  %v5519 = vpop.f32.mrf.mxu0
  %v5520 = vadd.f32 0.0, %v5519
  %v5521 = vpop.f32.mrf.mxu0
  %5522 = vdwg.mxu0
  %5523 = vmatpush.bf16.msra.mxu0 %v5493
  %5524 = vmatpush.bf16.msra.mxu0 %v5491
  %5525 = vmatpush.bf16.msra.mxu0 %v5489
  %5526 = vmatpush.bf16.msra.mxu0 %v5487
  %5527 = vmatpush.bf16.msra.mxu0 %v5485
  %5528 = vmatpush.bf16.msra.mxu0 %v5483
  %5529 = vmatpush.bf16.msra.mxu0 %v5481
  %5530 = vmatpush.bf16.msra.mxu0 %v5479
  %5531 = vmatmul.bf16.gmra.mxu0 %v4633
  %v5532 = vpop.f32.mrf.mxu0
  %v5533 = vadd.f32 0.0, %v5532
  %v5534 = vpop.f32.mrf.mxu0
  %5535 = vdwg.mxu0
  %v5552 = vunpack.c.l.b16 %v4740
  %v5553 = vunpack.c.h.b16 %v4740
  %v5554 = vunpack.c.l.b16 %v4741
  %v5555 = vunpack.c.h.b16 %v4741
  %v5556 = vunpack.c.l.b16 %v4742
  %v5557 = vunpack.c.h.b16 %v4742
  %v5558 = vunpack.c.l.b16 %v4743
  %v5559 = vunpack.c.h.b16 %v4743
  %v5560 = vunpack.c.l.b16 %v4744
  %v5561 = vunpack.c.h.b16 %v4744
  %v5562 = vunpack.c.l.b16 %v4745
  %v5563 = vunpack.c.h.b16 %v4745
  %v5564 = vunpack.c.l.b16 %v4746
  %v5565 = vunpack.c.h.b16 %v4746
  %v5566 = vunpack.c.l.b16 %v4747
  %v5567 = vunpack.c.h.b16 %v4747
  %v5568 = vunpack.c.l.b16 %v4748
  %v5569 = vunpack.c.h.b16 %v4748
  %v5570 = vunpack.c.l.b16 %v4749
  %v5571 = vunpack.c.h.b16 %v4749
  %v5572 = vunpack.c.l.b16 %v4750
  %v5573 = vunpack.c.h.b16 %v4750
  %v5574 = vunpack.c.l.b16 %v4751
  %v5575 = vunpack.c.h.b16 %v4751
  %v5576 = vunpack.c.l.b16 %v4752
  %v5577 = vunpack.c.h.b16 %v4752
  %v5578 = vunpack.c.l.b16 %v4753
  %v5579 = vunpack.c.h.b16 %v4753
  %v5580 = vunpack.c.l.b16 %v4754
  %v5581 = vunpack.c.h.b16 %v4754
  %v5582 = vunpack.c.l.b16 %v4755
  %v5583 = vunpack.c.h.b16 %v4755
  %v5584 = vpack.c.b16 %v5554, %v5552
  %v5585 = vpack.c.b16 %v5555, %v5553
  %v5586 = vpack.c.b16 %v5558, %v5556
  %v5587 = vpack.c.b16 %v5559, %v5557
  %v5588 = vpack.c.b16 %v5562, %v5560
  %v5589 = vpack.c.b16 %v5563, %v5561
  %v5590 = vpack.c.b16 %v5566, %v5564
  %v5591 = vpack.c.b16 %v5567, %v5565
  %v5592 = vpack.c.b16 %v5570, %v5568
  %v5593 = vpack.c.b16 %v5571, %v5569
  %v5594 = vpack.c.b16 %v5574, %v5572
  %v5595 = vpack.c.b16 %v5575, %v5573
  %v5596 = vpack.c.b16 %v5578, %v5576
  %v5597 = vpack.c.b16 %v5579, %v5577
  %v5598 = vpack.c.b16 %v5582, %v5580
  %v5599 = vpack.c.b16 %v5583, %v5581
  %5616 = vmatpush.bf16.msra.mxu0 %v5598
  %5617 = vmatpush.bf16.msra.mxu0 %v5596
  %5618 = vmatpush.bf16.msra.mxu0 %v5594
  %5619 = vmatpush.bf16.msra.mxu0 %v5592
  %5620 = vmatpush.bf16.msra.mxu0 %v5590
  %5621 = vmatpush.bf16.msra.mxu0 %v5588
  %5622 = vmatpush.bf16.msra.mxu0 %v5586
  %5623 = vmatpush.bf16.msra.mxu0 %v5584
  %5624 = vmatmul.bf16.gmra.mxu0 %v4634
  %v5625 = vpop.f32.mrf.mxu0
  %v5626 = vadd.f32 0.0, %v5625
  %v5627 = vpop.f32.mrf.mxu0
  %5628 = vdwg.mxu0
  %5629 = vmatpush.bf16.msra.mxu0 %v5599
  %5630 = vmatpush.bf16.msra.mxu0 %v5597
  %5631 = vmatpush.bf16.msra.mxu0 %v5595
  %5632 = vmatpush.bf16.msra.mxu0 %v5593
  %5633 = vmatpush.bf16.msra.mxu0 %v5591
  %5634 = vmatpush.bf16.msra.mxu0 %v5589
  %5635 = vmatpush.bf16.msra.mxu0 %v5587
  %5636 = vmatpush.bf16.msra.mxu0 %v5585
  %5637 = vmatmul.bf16.gmra.mxu0 %v4634
  %v5638 = vpop.f32.mrf.mxu0
  %v5639 = vadd.f32 0.0, %v5638
  %v5640 = vpop.f32.mrf.mxu0
  %5641 = vdwg.mxu0
  %v5658 = vunpack.c.l.b16 %v4756
  %v5659 = vunpack.c.h.b16 %v4756
  %v5660 = vunpack.c.l.b16 %v4757
  %v5661 = vunpack.c.h.b16 %v4757
  %v5662 = vunpack.c.l.b16 %v4758
  %v5663 = vunpack.c.h.b16 %v4758
  %v5664 = vunpack.c.l.b16 %v4759
  %v5665 = vunpack.c.h.b16 %v4759
  %v5666 = vunpack.c.l.b16 %v4760
  %v5667 = vunpack.c.h.b16 %v4760
  %v5668 = vunpack.c.l.b16 %v4761
  %v5669 = vunpack.c.h.b16 %v4761
  %v5670 = vunpack.c.l.b16 %v4762
  %v5671 = vunpack.c.h.b16 %v4762
  %v5672 = vunpack.c.l.b16 %v4763
  %v5673 = vunpack.c.h.b16 %v4763
  %v5674 = vunpack.c.l.b16 %v4764
  %v5675 = vunpack.c.h.b16 %v4764
  %v5676 = vunpack.c.l.b16 %v4765
  %v5677 = vunpack.c.h.b16 %v4765
  %v5678 = vunpack.c.l.b16 %v4766
  %v5679 = vunpack.c.h.b16 %v4766
  %v5680 = vunpack.c.l.b16 %v4767
  %v5681 = vunpack.c.h.b16 %v4767
  %v5682 = vunpack.c.l.b16 %v4768
  %v5683 = vunpack.c.h.b16 %v4768
  %v5684 = vunpack.c.l.b16 %v4769
  %v5685 = vunpack.c.h.b16 %v4769
  %v5686 = vunpack.c.l.b16 %v4770
  %v5687 = vunpack.c.h.b16 %v4770
  %v5688 = vunpack.c.l.b16 %v4771
  %v5689 = vunpack.c.h.b16 %v4771
  %v5690 = vpack.c.b16 %v5660, %v5658
  %v5691 = vpack.c.b16 %v5661, %v5659
  %v5692 = vpack.c.b16 %v5664, %v5662
  %v5693 = vpack.c.b16 %v5665, %v5663
  %v5694 = vpack.c.b16 %v5668, %v5666
  %v5695 = vpack.c.b16 %v5669, %v5667
  %v5696 = vpack.c.b16 %v5672, %v5670
  %v5697 = vpack.c.b16 %v5673, %v5671
  %v5698 = vpack.c.b16 %v5676, %v5674
  %v5699 = vpack.c.b16 %v5677, %v5675
  %v5700 = vpack.c.b16 %v5680, %v5678
  %v5701 = vpack.c.b16 %v5681, %v5679
  %v5702 = vpack.c.b16 %v5684, %v5682
  %v5703 = vpack.c.b16 %v5685, %v5683
  %v5704 = vpack.c.b16 %v5688, %v5686
  %v5705 = vpack.c.b16 %v5689, %v5687
  %5722 = vmatpush.bf16.msra.mxu0 %v5704
  %5723 = vmatpush.bf16.msra.mxu0 %v5702
  %5724 = vmatpush.bf16.msra.mxu0 %v5700
  %5725 = vmatpush.bf16.msra.mxu0 %v5698
  %5726 = vmatpush.bf16.msra.mxu0 %v5696
  %5727 = vmatpush.bf16.msra.mxu0 %v5694
  %5728 = vmatpush.bf16.msra.mxu0 %v5692
  %5729 = vmatpush.bf16.msra.mxu0 %v5690
  %5730 = vmatmul.bf16.gmra.mxu0 %v4635
  %v5731 = vpop.f32.mrf.mxu0
  %v5732 = vadd.f32 0.0, %v5731
  %v5733 = vpop.f32.mrf.mxu0
  %5734 = vdwg.mxu0
  %5735 = vmatpush.bf16.msra.mxu0 %v5705
  %5736 = vmatpush.bf16.msra.mxu0 %v5703
  %5737 = vmatpush.bf16.msra.mxu0 %v5701
  %5738 = vmatpush.bf16.msra.mxu0 %v5699
  %5739 = vmatpush.bf16.msra.mxu0 %v5697
  %5740 = vmatpush.bf16.msra.mxu0 %v5695
  %5741 = vmatpush.bf16.msra.mxu0 %v5693
  %5742 = vmatpush.bf16.msra.mxu0 %v5691
  %5743 = vmatmul.bf16.gmra.mxu0 %v4635
  %v5744 = vpop.f32.mrf.mxu0
  %v5745 = vadd.f32 0.0, %v5744
  %v5746 = vpop.f32.mrf.mxu0
  %5747 = vdwg.mxu0
  %v5764 = vunpack.c.l.b16 %v4772
  %v5765 = vunpack.c.h.b16 %v4772
  %v5766 = vunpack.c.l.b16 %v4773
  %v5767 = vunpack.c.h.b16 %v4773
  %v5768 = vunpack.c.l.b16 %v4774
  %v5769 = vunpack.c.h.b16 %v4774
  %v5770 = vunpack.c.l.b16 %v4775
  %v5771 = vunpack.c.h.b16 %v4775
  %v5772 = vunpack.c.l.b16 %v4776
  %v5773 = vunpack.c.h.b16 %v4776
  %v5774 = vunpack.c.l.b16 %v4777
  %v5775 = vunpack.c.h.b16 %v4777
  %v5776 = vunpack.c.l.b16 %v4778
  %v5777 = vunpack.c.h.b16 %v4778
  %v5778 = vunpack.c.l.b16 %v4779
  %v5779 = vunpack.c.h.b16 %v4779
  %v5780 = vunpack.c.l.b16 %v4780
  %v5781 = vunpack.c.h.b16 %v4780
  %v5782 = vunpack.c.l.b16 %v4781
  %v5783 = vunpack.c.h.b16 %v4781
  %v5784 = vunpack.c.l.b16 %v4782
  %v5785 = vunpack.c.h.b16 %v4782
  %v5786 = vunpack.c.l.b16 %v4783
  %v5787 = vunpack.c.h.b16 %v4783
  %v5788 = vunpack.c.l.b16 %v4784
  %v5789 = vunpack.c.h.b16 %v4784
  %v5790 = vunpack.c.l.b16 %v4785
  %v5791 = vunpack.c.h.b16 %v4785
  %v5792 = vunpack.c.l.b16 %v4786
  %v5793 = vunpack.c.h.b16 %v4786
  %v5794 = vunpack.c.l.b16 %v4787
  %v5795 = vunpack.c.h.b16 %v4787
  %v5796 = vpack.c.b16 %v5766, %v5764
  %v5797 = vpack.c.b16 %v5767, %v5765
  %v5798 = vpack.c.b16 %v5770, %v5768
  %v5799 = vpack.c.b16 %v5771, %v5769
  %v5800 = vpack.c.b16 %v5774, %v5772
  %v5801 = vpack.c.b16 %v5775, %v5773
  %v5802 = vpack.c.b16 %v5778, %v5776
  %v5803 = vpack.c.b16 %v5779, %v5777
  %v5804 = vpack.c.b16 %v5782, %v5780
  %v5805 = vpack.c.b16 %v5783, %v5781
  %v5806 = vpack.c.b16 %v5786, %v5784
  %v5807 = vpack.c.b16 %v5787, %v5785
  %v5808 = vpack.c.b16 %v5790, %v5788
  %v5809 = vpack.c.b16 %v5791, %v5789
  %v5810 = vpack.c.b16 %v5794, %v5792
  %v5811 = vpack.c.b16 %v5795, %v5793
  %5828 = vmatpush.bf16.msra.mxu0 %v5810
  %5829 = vmatpush.bf16.msra.mxu0 %v5808
  %5830 = vmatpush.bf16.msra.mxu0 %v5806
  %5831 = vmatpush.bf16.msra.mxu0 %v5804
  %5832 = vmatpush.bf16.msra.mxu0 %v5802
  %5833 = vmatpush.bf16.msra.mxu0 %v5800
  %5834 = vmatpush.bf16.msra.mxu0 %v5798
  %5835 = vmatpush.bf16.msra.mxu0 %v5796
  %5836 = vmatmul.bf16.gmra.mxu0 %v4636
  %v5837 = vpop.f32.mrf.mxu0
  %v5838 = vadd.f32 0.0, %v5837
  %v5839 = vpop.f32.mrf.mxu0
  %5840 = vdwg.mxu0
  %5841 = vmatpush.bf16.msra.mxu0 %v5811
  %5842 = vmatpush.bf16.msra.mxu0 %v5809
  %5843 = vmatpush.bf16.msra.mxu0 %v5807
  %5844 = vmatpush.bf16.msra.mxu0 %v5805
  %5845 = vmatpush.bf16.msra.mxu0 %v5803
  %5846 = vmatpush.bf16.msra.mxu0 %v5801
  %5847 = vmatpush.bf16.msra.mxu0 %v5799
  %5848 = vmatpush.bf16.msra.mxu0 %v5797
  %5849 = vmatmul.bf16.gmra.mxu0 %v4636
  %v5850 = vpop.f32.mrf.mxu0
  %v5851 = vadd.f32 0.0, %v5850
  %v5852 = vpop.f32.mrf.mxu0
  %5853 = vdwg.mxu0
  %v5870 = vunpack.c.l.b16 %v4788
  %v5871 = vunpack.c.h.b16 %v4788
  %v5872 = vunpack.c.l.b16 %v4789
  %v5873 = vunpack.c.h.b16 %v4789
  %v5874 = vunpack.c.l.b16 %v4790
  %v5875 = vunpack.c.h.b16 %v4790
  %v5876 = vunpack.c.l.b16 %v4791
  %v5877 = vunpack.c.h.b16 %v4791
  %v5878 = vunpack.c.l.b16 %v4792
  %v5879 = vunpack.c.h.b16 %v4792
  %v5880 = vunpack.c.l.b16 %v4793
  %v5881 = vunpack.c.h.b16 %v4793
  %v5882 = vunpack.c.l.b16 %v4794
  %v5883 = vunpack.c.h.b16 %v4794
  %v5884 = vunpack.c.l.b16 %v4795
  %v5885 = vunpack.c.h.b16 %v4795
  %v5886 = vunpack.c.l.b16 %v4796
  %v5887 = vunpack.c.h.b16 %v4796
  %v5888 = vunpack.c.l.b16 %v4797
  %v5889 = vunpack.c.h.b16 %v4797
  %v5890 = vunpack.c.l.b16 %v4798
  %v5891 = vunpack.c.h.b16 %v4798
  %v5892 = vunpack.c.l.b16 %v4799
  %v5893 = vunpack.c.h.b16 %v4799
  %v5894 = vunpack.c.l.b16 %v4800
  %v5895 = vunpack.c.h.b16 %v4800
  %v5896 = vunpack.c.l.b16 %v4801
  %v5897 = vunpack.c.h.b16 %v4801
  %v5898 = vunpack.c.l.b16 %v4802
  %v5899 = vunpack.c.h.b16 %v4802
  %v5900 = vunpack.c.l.b16 %v4803
  %v5901 = vunpack.c.h.b16 %v4803
  %v5902 = vpack.c.b16 %v5872, %v5870
  %v5903 = vpack.c.b16 %v5873, %v5871
  %v5904 = vpack.c.b16 %v5876, %v5874
  %v5905 = vpack.c.b16 %v5877, %v5875
  %v5906 = vpack.c.b16 %v5880, %v5878
  %v5907 = vpack.c.b16 %v5881, %v5879
  %v5908 = vpack.c.b16 %v5884, %v5882
  %v5909 = vpack.c.b16 %v5885, %v5883
  %v5910 = vpack.c.b16 %v5888, %v5886
  %v5911 = vpack.c.b16 %v5889, %v5887
  %v5912 = vpack.c.b16 %v5892, %v5890
  %v5913 = vpack.c.b16 %v5893, %v5891
  %v5914 = vpack.c.b16 %v5896, %v5894
  %v5915 = vpack.c.b16 %v5897, %v5895
  %v5916 = vpack.c.b16 %v5900, %v5898
  %v5917 = vpack.c.b16 %v5901, %v5899
  %5934 = vmatpush.bf16.msra.mxu0 %v5916
  %5935 = vmatpush.bf16.msra.mxu0 %v5914
  %5936 = vmatpush.bf16.msra.mxu0 %v5912
  %5937 = vmatpush.bf16.msra.mxu0 %v5910
  %5938 = vmatpush.bf16.msra.mxu0 %v5908
  %5939 = vmatpush.bf16.msra.mxu0 %v5906
  %5940 = vmatpush.bf16.msra.mxu0 %v5904
  %5941 = vmatpush.bf16.msra.mxu0 %v5902
  %5942 = vmatmul.bf16.gmra.mxu0 %v4637
  %v5943 = vpop.f32.mrf.mxu0
  %v5944 = vadd.f32 0.0, %v5943
  %v5945 = vpop.f32.mrf.mxu0
  %5946 = vdwg.mxu0
  %5947 = vmatpush.bf16.msra.mxu0 %v5917
  %5948 = vmatpush.bf16.msra.mxu0 %v5915
  %5949 = vmatpush.bf16.msra.mxu0 %v5913
  %5950 = vmatpush.bf16.msra.mxu0 %v5911
  %5951 = vmatpush.bf16.msra.mxu0 %v5909
  %5952 = vmatpush.bf16.msra.mxu0 %v5907
  %5953 = vmatpush.bf16.msra.mxu0 %v5905
  %5954 = vmatpush.bf16.msra.mxu0 %v5903
  %5955 = vmatmul.bf16.gmra.mxu0 %v4637
  %v5956 = vpop.f32.mrf.mxu0
  %v5957 = vadd.f32 0.0, %v5956
  %v5958 = vpop.f32.mrf.mxu0
  %5959 = vdwg.mxu0
  %v5976 = vunpack.c.l.b16 %v4804
  %v5977 = vunpack.c.h.b16 %v4804
  %v5978 = vunpack.c.l.b16 %v4805
  %v5979 = vunpack.c.h.b16 %v4805
  %v5980 = vunpack.c.l.b16 %v4806
  %v5981 = vunpack.c.h.b16 %v4806
  %v5982 = vunpack.c.l.b16 %v4807
  %v5983 = vunpack.c.h.b16 %v4807
  %v5984 = vunpack.c.l.b16 %v4808
  %v5985 = vunpack.c.h.b16 %v4808
  %v5986 = vunpack.c.l.b16 %v4809
  %v5987 = vunpack.c.h.b16 %v4809
  %v5988 = vunpack.c.l.b16 %v4810
  %v5989 = vunpack.c.h.b16 %v4810
  %v5990 = vunpack.c.l.b16 %v4811
  %v5991 = vunpack.c.h.b16 %v4811
  %v5992 = vunpack.c.l.b16 %v4812
  %v5993 = vunpack.c.h.b16 %v4812
  %v5994 = vunpack.c.l.b16 %v4813
  %v5995 = vunpack.c.h.b16 %v4813
  %v5996 = vunpack.c.l.b16 %v4814
  %v5997 = vunpack.c.h.b16 %v4814
  %v5998 = vunpack.c.l.b16 %v4815
  %v5999 = vunpack.c.h.b16 %v4815
  %v6000 = vunpack.c.l.b16 %v4816
  %v6001 = vunpack.c.h.b16 %v4816
  %v6002 = vunpack.c.l.b16 %v4817
  %v6003 = vunpack.c.h.b16 %v4817
  %v6004 = vunpack.c.l.b16 %v4818
  %v6005 = vunpack.c.h.b16 %v4818
  %v6006 = vunpack.c.l.b16 %v4819
  %v6007 = vunpack.c.h.b16 %v4819
  %v6008 = vpack.c.b16 %v5978, %v5976
  %v6009 = vpack.c.b16 %v5979, %v5977
  %v6010 = vpack.c.b16 %v5982, %v5980
  %v6011 = vpack.c.b16 %v5983, %v5981
  %v6012 = vpack.c.b16 %v5986, %v5984
  %v6013 = vpack.c.b16 %v5987, %v5985
  %v6014 = vpack.c.b16 %v5990, %v5988
  %v6015 = vpack.c.b16 %v5991, %v5989
  %v6016 = vpack.c.b16 %v5994, %v5992
  %v6017 = vpack.c.b16 %v5995, %v5993
  %v6018 = vpack.c.b16 %v5998, %v5996
  %v6019 = vpack.c.b16 %v5999, %v5997
  %v6020 = vpack.c.b16 %v6002, %v6000
  %v6021 = vpack.c.b16 %v6003, %v6001
  %v6022 = vpack.c.b16 %v6006, %v6004
  %v6023 = vpack.c.b16 %v6007, %v6005
  %6040 = vmatpush.bf16.msra.mxu0 %v6022
  %6041 = vmatpush.bf16.msra.mxu0 %v6020
  %6042 = vmatpush.bf16.msra.mxu0 %v6018
  %6043 = vmatpush.bf16.msra.mxu0 %v6016
  %6044 = vmatpush.bf16.msra.mxu0 %v6014
  %6045 = vmatpush.bf16.msra.mxu0 %v6012
  %6046 = vmatpush.bf16.msra.mxu0 %v6010
  %6047 = vmatpush.bf16.msra.mxu0 %v6008
  %6048 = vmatmul.bf16.gmra.mxu0 %v4638
  %v6049 = vpop.f32.mrf.mxu0
  %v6050 = vadd.f32 0.0, %v6049
  %v6051 = vpop.f32.mrf.mxu0
  %6052 = vdwg.mxu0
  %6053 = vmatpush.bf16.msra.mxu0 %v6023
  %6054 = vmatpush.bf16.msra.mxu0 %v6021
  %6055 = vmatpush.bf16.msra.mxu0 %v6019
  %6056 = vmatpush.bf16.msra.mxu0 %v6017
  %6057 = vmatpush.bf16.msra.mxu0 %v6015
  %6058 = vmatpush.bf16.msra.mxu0 %v6013
  %6059 = vmatpush.bf16.msra.mxu0 %v6011
  %6060 = vmatpush.bf16.msra.mxu0 %v6009
  %6061 = vmatmul.bf16.gmra.mxu0 %v4638
  %v6062 = vpop.f32.mrf.mxu0
  %v6063 = vadd.f32 0.0, %v6062
  %v6064 = vpop.f32.mrf.mxu0
  %6065 = vdwg.mxu0
  %v6082 = vunpack.c.l.b16 %v4820
  %v6083 = vunpack.c.h.b16 %v4820
  %v6084 = vunpack.c.l.b16 %v4821
  %v6085 = vunpack.c.h.b16 %v4821
  %v6086 = vunpack.c.l.b16 %v4822
  %v6087 = vunpack.c.h.b16 %v4822
  %v6088 = vunpack.c.l.b16 %v4823
  %v6089 = vunpack.c.h.b16 %v4823
  %v6090 = vunpack.c.l.b16 %v4824
  %v6091 = vunpack.c.h.b16 %v4824
  %v6092 = vunpack.c.l.b16 %v4825
  %v6093 = vunpack.c.h.b16 %v4825
  %v6094 = vunpack.c.l.b16 %v4826
  %v6095 = vunpack.c.h.b16 %v4826
  %v6096 = vunpack.c.l.b16 %v4827
  %v6097 = vunpack.c.h.b16 %v4827
  %v6098 = vunpack.c.l.b16 %v4828
  %v6099 = vunpack.c.h.b16 %v4828
  %v6100 = vunpack.c.l.b16 %v4829
  %v6101 = vunpack.c.h.b16 %v4829
  %v6102 = vunpack.c.l.b16 %v4830
  %v6103 = vunpack.c.h.b16 %v4830
  %v6104 = vunpack.c.l.b16 %v4831
  %v6105 = vunpack.c.h.b16 %v4831
  %v6106 = vunpack.c.l.b16 %v4832
  %v6107 = vunpack.c.h.b16 %v4832
  %v6108 = vunpack.c.l.b16 %v4833
  %v6109 = vunpack.c.h.b16 %v4833
  %v6110 = vunpack.c.l.b16 %v4834
  %v6111 = vunpack.c.h.b16 %v4834
  %v6112 = vunpack.c.l.b16 %v4835
  %v6113 = vunpack.c.h.b16 %v4835
  %v6114 = vpack.c.b16 %v6084, %v6082
  %v6115 = vpack.c.b16 %v6085, %v6083
  %v6116 = vpack.c.b16 %v6088, %v6086
  %v6117 = vpack.c.b16 %v6089, %v6087
  %v6118 = vpack.c.b16 %v6092, %v6090
  %v6119 = vpack.c.b16 %v6093, %v6091
  %v6120 = vpack.c.b16 %v6096, %v6094
  %v6121 = vpack.c.b16 %v6097, %v6095
  %v6122 = vpack.c.b16 %v6100, %v6098
  %v6123 = vpack.c.b16 %v6101, %v6099
  %v6124 = vpack.c.b16 %v6104, %v6102
  %v6125 = vpack.c.b16 %v6105, %v6103
  %v6126 = vpack.c.b16 %v6108, %v6106
  %v6127 = vpack.c.b16 %v6109, %v6107
  %v6128 = vpack.c.b16 %v6112, %v6110
  %v6129 = vpack.c.b16 %v6113, %v6111
  %6146 = vmatpush.bf16.msra.mxu0 %v6128
  %6147 = vmatpush.bf16.msra.mxu0 %v6126
  %6148 = vmatpush.bf16.msra.mxu0 %v6124
  %6149 = vmatpush.bf16.msra.mxu0 %v6122
  %6150 = vmatpush.bf16.msra.mxu0 %v6120
  %6151 = vmatpush.bf16.msra.mxu0 %v6118
  %6152 = vmatpush.bf16.msra.mxu0 %v6116
  %6153 = vmatpush.bf16.msra.mxu0 %v6114
  %6154 = vmatmul.bf16.gmra.mxu0 %v4639
  %v6155 = vpop.f32.mrf.mxu0
  %v6156 = vadd.f32 0.0, %v6155
  %v6157 = vpop.f32.mrf.mxu0
  %6158 = vdwg.mxu0
  %6159 = vmatpush.bf16.msra.mxu0 %v6129
  %6160 = vmatpush.bf16.msra.mxu0 %v6127
  %6161 = vmatpush.bf16.msra.mxu0 %v6125
  %6162 = vmatpush.bf16.msra.mxu0 %v6123
  %6163 = vmatpush.bf16.msra.mxu0 %v6121
  %6164 = vmatpush.bf16.msra.mxu0 %v6119
  %6165 = vmatpush.bf16.msra.mxu0 %v6117
  %6166 = vmatpush.bf16.msra.mxu0 %v6115
  %6167 = vmatmul.bf16.gmra.mxu0 %v4639
  %v6168 = vpop.f32.mrf.mxu0
  %v6169 = vadd.f32 0.0, %v6168
  %v6170 = vpop.f32.mrf.mxu0
  %6171 = vdwg.mxu0
  %v6188 = vunpack.c.l.b16 %v4836
  %v6189 = vunpack.c.h.b16 %v4836
  %v6190 = vunpack.c.l.b16 %v4837
  %v6191 = vunpack.c.h.b16 %v4837
  %v6192 = vunpack.c.l.b16 %v4838
  %v6193 = vunpack.c.h.b16 %v4838
  %v6194 = vunpack.c.l.b16 %v4839
  %v6195 = vunpack.c.h.b16 %v4839
  %v6196 = vunpack.c.l.b16 %v4840
  %v6197 = vunpack.c.h.b16 %v4840
  %v6198 = vunpack.c.l.b16 %v4841
  %v6199 = vunpack.c.h.b16 %v4841
  %v6200 = vunpack.c.l.b16 %v4842
  %v6201 = vunpack.c.h.b16 %v4842
  %v6202 = vunpack.c.l.b16 %v4843
  %v6203 = vunpack.c.h.b16 %v4843
  %v6204 = vunpack.c.l.b16 %v4844
  %v6205 = vunpack.c.h.b16 %v4844
  %v6206 = vunpack.c.l.b16 %v4845
  %v6207 = vunpack.c.h.b16 %v4845
  %v6208 = vunpack.c.l.b16 %v4846
  %v6209 = vunpack.c.h.b16 %v4846
  %v6210 = vunpack.c.l.b16 %v4847
  %v6211 = vunpack.c.h.b16 %v4847
  %v6212 = vunpack.c.l.b16 %v4848
  %v6213 = vunpack.c.h.b16 %v4848
  %v6214 = vunpack.c.l.b16 %v4849
  %v6215 = vunpack.c.h.b16 %v4849
  %v6216 = vunpack.c.l.b16 %v4850
  %v6217 = vunpack.c.h.b16 %v4850
  %v6218 = vunpack.c.l.b16 %v4851
  %v6219 = vunpack.c.h.b16 %v4851
  %v6220 = vpack.c.b16 %v6190, %v6188
  %v6221 = vpack.c.b16 %v6191, %v6189
  %v6222 = vpack.c.b16 %v6194, %v6192
  %v6223 = vpack.c.b16 %v6195, %v6193
  %v6224 = vpack.c.b16 %v6198, %v6196
  %v6225 = vpack.c.b16 %v6199, %v6197
  %v6226 = vpack.c.b16 %v6202, %v6200
  %v6227 = vpack.c.b16 %v6203, %v6201
  %v6228 = vpack.c.b16 %v6206, %v6204
  %v6229 = vpack.c.b16 %v6207, %v6205
  %v6230 = vpack.c.b16 %v6210, %v6208
  %v6231 = vpack.c.b16 %v6211, %v6209
  %v6232 = vpack.c.b16 %v6214, %v6212
  %v6233 = vpack.c.b16 %v6215, %v6213
  %v6234 = vpack.c.b16 %v6218, %v6216
  %v6235 = vpack.c.b16 %v6219, %v6217
  %6252 = vmatpush.bf16.msra.mxu0 %v6234
  %6253 = vmatpush.bf16.msra.mxu0 %v6232
  %6254 = vmatpush.bf16.msra.mxu0 %v6230
  %6255 = vmatpush.bf16.msra.mxu0 %v6228
  %6256 = vmatpush.bf16.msra.mxu0 %v6226
  %6257 = vmatpush.bf16.msra.mxu0 %v6224
  %6258 = vmatpush.bf16.msra.mxu0 %v6222
  %6259 = vmatpush.bf16.msra.mxu0 %v6220
  %6260 = vmatmul.bf16.gmra.mxu0 %v4640
  %v6261 = vpop.f32.mrf.mxu0
  %v6262 = vadd.f32 0.0, %v6261
  %v6263 = vpop.f32.mrf.mxu0
  %6264 = vdwg.mxu0
  %6265 = vmatpush.bf16.msra.mxu0 %v6235
  %6266 = vmatpush.bf16.msra.mxu0 %v6233
  %6267 = vmatpush.bf16.msra.mxu0 %v6231
  %6268 = vmatpush.bf16.msra.mxu0 %v6229
  %6269 = vmatpush.bf16.msra.mxu0 %v6227
  %6270 = vmatpush.bf16.msra.mxu0 %v6225
  %6271 = vmatpush.bf16.msra.mxu0 %v6223
  %6272 = vmatpush.bf16.msra.mxu0 %v6221
  %6273 = vmatmul.bf16.gmra.mxu0 %v4640
  %v6274 = vpop.f32.mrf.mxu0
  %v6275 = vadd.f32 0.0, %v6274
  %v6276 = vpop.f32.mrf.mxu0
  %6277 = vdwg.mxu0
  %v6294 = vunpack.c.l.b16 %v4852
  %v6295 = vunpack.c.h.b16 %v4852
  %v6296 = vunpack.c.l.b16 %v4853
  %v6297 = vunpack.c.h.b16 %v4853
  %v6298 = vunpack.c.l.b16 %v4854
  %v6299 = vunpack.c.h.b16 %v4854
  %v6300 = vunpack.c.l.b16 %v4855
  %v6301 = vunpack.c.h.b16 %v4855
  %v6302 = vunpack.c.l.b16 %v4856
  %v6303 = vunpack.c.h.b16 %v4856
  %v6304 = vunpack.c.l.b16 %v4857
  %v6305 = vunpack.c.h.b16 %v4857
  %v6306 = vunpack.c.l.b16 %v4858
  %v6307 = vunpack.c.h.b16 %v4858
  %v6308 = vunpack.c.l.b16 %v4859
  %v6309 = vunpack.c.h.b16 %v4859
  %v6310 = vunpack.c.l.b16 %v4860
  %v6311 = vunpack.c.h.b16 %v4860
  %v6312 = vunpack.c.l.b16 %v4861
  %v6313 = vunpack.c.h.b16 %v4861
  %v6314 = vunpack.c.l.b16 %v4862
  %v6315 = vunpack.c.h.b16 %v4862
  %v6316 = vunpack.c.l.b16 %v4863
  %v6317 = vunpack.c.h.b16 %v4863
  %v6318 = vunpack.c.l.b16 %v4864
  %v6319 = vunpack.c.h.b16 %v4864
  %v6320 = vunpack.c.l.b16 %v4865
  %v6321 = vunpack.c.h.b16 %v4865
  %v6322 = vunpack.c.l.b16 %v4866
  %v6323 = vunpack.c.h.b16 %v4866
  %v6324 = vunpack.c.l.b16 %v4867
  %v6325 = vunpack.c.h.b16 %v4867
  %v6326 = vpack.c.b16 %v6296, %v6294
  %v6327 = vpack.c.b16 %v6297, %v6295
  %v6328 = vpack.c.b16 %v6300, %v6298
  %v6329 = vpack.c.b16 %v6301, %v6299
  %v6330 = vpack.c.b16 %v6304, %v6302
  %v6331 = vpack.c.b16 %v6305, %v6303
  %v6332 = vpack.c.b16 %v6308, %v6306
  %v6333 = vpack.c.b16 %v6309, %v6307
  %v6334 = vpack.c.b16 %v6312, %v6310
  %v6335 = vpack.c.b16 %v6313, %v6311
  %v6336 = vpack.c.b16 %v6316, %v6314
  %v6337 = vpack.c.b16 %v6317, %v6315
  %v6338 = vpack.c.b16 %v6320, %v6318
  %v6339 = vpack.c.b16 %v6321, %v6319
  %v6340 = vpack.c.b16 %v6324, %v6322
  %v6341 = vpack.c.b16 %v6325, %v6323
  %6358 = vmatpush.bf16.msra.mxu0 %v6340
  %6359 = vmatpush.bf16.msra.mxu0 %v6338
  %6360 = vmatpush.bf16.msra.mxu0 %v6336
  %6361 = vmatpush.bf16.msra.mxu0 %v6334
  %6362 = vmatpush.bf16.msra.mxu0 %v6332
  %6363 = vmatpush.bf16.msra.mxu0 %v6330
  %6364 = vmatpush.bf16.msra.mxu0 %v6328
  %6365 = vmatpush.bf16.msra.mxu0 %v6326
  %6366 = vmatmul.bf16.gmra.mxu0 %v4641
  %v6367 = vpop.f32.mrf.mxu0
  %v6368 = vadd.f32 0.0, %v6367
  %v6369 = vpop.f32.mrf.mxu0
  %6370 = vdwg.mxu0
  %6371 = vmatpush.bf16.msra.mxu0 %v6341
  %6372 = vmatpush.bf16.msra.mxu0 %v6339
  %6373 = vmatpush.bf16.msra.mxu0 %v6337
  %6374 = vmatpush.bf16.msra.mxu0 %v6335
  %6375 = vmatpush.bf16.msra.mxu0 %v6333
  %6376 = vmatpush.bf16.msra.mxu0 %v6331
  %6377 = vmatpush.bf16.msra.mxu0 %v6329
  %6378 = vmatpush.bf16.msra.mxu0 %v6327
  %6379 = vmatmul.bf16.gmra.mxu0 %v4641
  %v6380 = vpop.f32.mrf.mxu0
  %v6381 = vadd.f32 0.0, %v6380
  %v6382 = vpop.f32.mrf.mxu0
  %6383 = vdwg.mxu0
  %v6400 = vunpack.c.l.b16 %v4868
  %v6401 = vunpack.c.h.b16 %v4868
  %v6402 = vunpack.c.l.b16 %v4869
  %v6403 = vunpack.c.h.b16 %v4869
  %v6404 = vunpack.c.l.b16 %v4870
  %v6405 = vunpack.c.h.b16 %v4870
  %v6406 = vunpack.c.l.b16 %v4871
  %v6407 = vunpack.c.h.b16 %v4871
  %v6408 = vunpack.c.l.b16 %v4872
  %v6409 = vunpack.c.h.b16 %v4872
  %v6410 = vunpack.c.l.b16 %v4873
  %v6411 = vunpack.c.h.b16 %v4873
  %v6412 = vunpack.c.l.b16 %v4874
  %v6413 = vunpack.c.h.b16 %v4874
  %v6414 = vunpack.c.l.b16 %v4875
  %v6415 = vunpack.c.h.b16 %v4875
  %v6416 = vunpack.c.l.b16 %v4876
  %v6417 = vunpack.c.h.b16 %v4876
  %v6418 = vunpack.c.l.b16 %v4877
  %v6419 = vunpack.c.h.b16 %v4877
  %v6420 = vunpack.c.l.b16 %v4878
  %v6421 = vunpack.c.h.b16 %v4878
  %v6422 = vunpack.c.l.b16 %v4879
  %v6423 = vunpack.c.h.b16 %v4879
  %v6424 = vunpack.c.l.b16 %v4880
  %v6425 = vunpack.c.h.b16 %v4880
  %v6426 = vunpack.c.l.b16 %v4881
  %v6427 = vunpack.c.h.b16 %v4881
  %v6428 = vunpack.c.l.b16 %v4882
  %v6429 = vunpack.c.h.b16 %v4882
  %v6430 = vunpack.c.l.b16 %v4883
  %v6431 = vunpack.c.h.b16 %v4883
  %v6432 = vpack.c.b16 %v6402, %v6400
  %v6433 = vpack.c.b16 %v6403, %v6401
  %v6434 = vpack.c.b16 %v6406, %v6404
  %v6435 = vpack.c.b16 %v6407, %v6405
  %v6436 = vpack.c.b16 %v6410, %v6408
  %v6437 = vpack.c.b16 %v6411, %v6409
  %v6438 = vpack.c.b16 %v6414, %v6412
  %v6439 = vpack.c.b16 %v6415, %v6413
  %v6440 = vpack.c.b16 %v6418, %v6416
  %v6441 = vpack.c.b16 %v6419, %v6417
  %v6442 = vpack.c.b16 %v6422, %v6420
  %v6443 = vpack.c.b16 %v6423, %v6421
  %v6444 = vpack.c.b16 %v6426, %v6424
  %v6445 = vpack.c.b16 %v6427, %v6425
  %v6446 = vpack.c.b16 %v6430, %v6428
  %v6447 = vpack.c.b16 %v6431, %v6429
  %6464 = vmatpush.bf16.msra.mxu0 %v6446
  %6465 = vmatpush.bf16.msra.mxu0 %v6444
  %6466 = vmatpush.bf16.msra.mxu0 %v6442
  %6467 = vmatpush.bf16.msra.mxu0 %v6440
  %6468 = vmatpush.bf16.msra.mxu0 %v6438
  %6469 = vmatpush.bf16.msra.mxu0 %v6436
  %6470 = vmatpush.bf16.msra.mxu0 %v6434
  %6471 = vmatpush.bf16.msra.mxu0 %v6432
  %6472 = vmatmul.bf16.gmra.mxu0 %v4642
  %v6473 = vpop.f32.mrf.mxu0
  %v6474 = vadd.f32 0.0, %v6473
  %v6475 = vpop.f32.mrf.mxu0
  %6476 = vdwg.mxu0
  %6477 = vmatpush.bf16.msra.mxu0 %v6447
  %6478 = vmatpush.bf16.msra.mxu0 %v6445
  %6479 = vmatpush.bf16.msra.mxu0 %v6443
  %6480 = vmatpush.bf16.msra.mxu0 %v6441
  %6481 = vmatpush.bf16.msra.mxu0 %v6439
  %6482 = vmatpush.bf16.msra.mxu0 %v6437
  %6483 = vmatpush.bf16.msra.mxu0 %v6435
  %6484 = vmatpush.bf16.msra.mxu0 %v6433
  %6485 = vmatmul.bf16.gmra.mxu0 %v4642
  %v6486 = vpop.f32.mrf.mxu0
  %v6487 = vadd.f32 0.0, %v6486
  %v6488 = vpop.f32.mrf.mxu0
  %6489 = vdwg.mxu0
  %v6506 = vunpack.c.l.b16 %v4884
  %v6507 = vunpack.c.h.b16 %v4884
  %v6508 = vunpack.c.l.b16 %v4885
  %v6509 = vunpack.c.h.b16 %v4885
  %v6510 = vunpack.c.l.b16 %v4886
  %v6511 = vunpack.c.h.b16 %v4886
  %v6512 = vunpack.c.l.b16 %v4887
  %v6513 = vunpack.c.h.b16 %v4887
  %v6514 = vunpack.c.l.b16 %v4888
  %v6515 = vunpack.c.h.b16 %v4888
  %v6516 = vunpack.c.l.b16 %v4889
  %v6517 = vunpack.c.h.b16 %v4889
  %v6518 = vunpack.c.l.b16 %v4890
  %v6519 = vunpack.c.h.b16 %v4890
  %v6520 = vunpack.c.l.b16 %v4891
  %v6521 = vunpack.c.h.b16 %v4891
  %v6522 = vunpack.c.l.b16 %v4892
  %v6523 = vunpack.c.h.b16 %v4892
  %v6524 = vunpack.c.l.b16 %v4893
  %v6525 = vunpack.c.h.b16 %v4893
  %v6526 = vunpack.c.l.b16 %v4894
  %v6527 = vunpack.c.h.b16 %v4894
  %v6528 = vunpack.c.l.b16 %v4895
  %v6529 = vunpack.c.h.b16 %v4895
  %v6530 = vunpack.c.l.b16 %v4896
  %v6531 = vunpack.c.h.b16 %v4896
  %v6532 = vunpack.c.l.b16 %v4897
  %v6533 = vunpack.c.h.b16 %v4897
  %v6534 = vunpack.c.l.b16 %v4898
  %v6535 = vunpack.c.h.b16 %v4898
  %v6536 = vunpack.c.l.b16 %v4899
  %v6537 = vunpack.c.h.b16 %v4899
  %v6538 = vpack.c.b16 %v6508, %v6506
  %v6539 = vpack.c.b16 %v6509, %v6507
  %v6540 = vpack.c.b16 %v6512, %v6510
  %v6541 = vpack.c.b16 %v6513, %v6511
  %v6542 = vpack.c.b16 %v6516, %v6514
  %v6543 = vpack.c.b16 %v6517, %v6515
  %v6544 = vpack.c.b16 %v6520, %v6518
  %v6545 = vpack.c.b16 %v6521, %v6519
  %v6546 = vpack.c.b16 %v6524, %v6522
  %v6547 = vpack.c.b16 %v6525, %v6523
  %v6548 = vpack.c.b16 %v6528, %v6526
  %v6549 = vpack.c.b16 %v6529, %v6527
  %v6550 = vpack.c.b16 %v6532, %v6530
  %v6551 = vpack.c.b16 %v6533, %v6531
  %v6552 = vpack.c.b16 %v6536, %v6534
  %v6553 = vpack.c.b16 %v6537, %v6535
  %6570 = vmatpush.bf16.msra.mxu0 %v6552
  %6571 = vmatpush.bf16.msra.mxu0 %v6550
  %6572 = vmatpush.bf16.msra.mxu0 %v6548
  %6573 = vmatpush.bf16.msra.mxu0 %v6546
  %6574 = vmatpush.bf16.msra.mxu0 %v6544
  %6575 = vmatpush.bf16.msra.mxu0 %v6542
  %6576 = vmatpush.bf16.msra.mxu0 %v6540
  %6577 = vmatpush.bf16.msra.mxu0 %v6538
  %6578 = vmatmul.bf16.gmra.mxu0 %v4643
  %v6579 = vpop.f32.mrf.mxu0
  %v6580 = vadd.f32 0.0, %v6579
  %v6581 = vpop.f32.mrf.mxu0
  %6582 = vdwg.mxu0
  %6583 = vmatpush.bf16.msra.mxu0 %v6553
  %6584 = vmatpush.bf16.msra.mxu0 %v6551
  %6585 = vmatpush.bf16.msra.mxu0 %v6549
  %6586 = vmatpush.bf16.msra.mxu0 %v6547
  %6587 = vmatpush.bf16.msra.mxu0 %v6545
  %6588 = vmatpush.bf16.msra.mxu0 %v6543
  %6589 = vmatpush.bf16.msra.mxu0 %v6541
  %6590 = vmatpush.bf16.msra.mxu0 %v6539
  %6591 = vmatmul.bf16.gmra.mxu0 %v4643
  %v6592 = vpop.f32.mrf.mxu0
  %v6593 = vadd.f32 0.0, %v6592
  %v6594 = vpop.f32.mrf.mxu0
  %6595 = vdwg.mxu0
  %v6596 = vadd.f32 %v4990, %v5096
  %v6597 = vadd.f32 %v5003, %v5109
  %v6598 = vadd.f32 %v5202, %v5308
  %v6599 = vadd.f32 %v5215, %v5321
  %v6600 = vadd.f32 %v5414, %v5520
  %v6601 = vadd.f32 %v5427, %v5533
  %v6602 = vadd.f32 %v5626, %v5732
  %v6603 = vadd.f32 %v5639, %v5745
  %v6604 = vadd.f32 %v5838, %v5944
  %v6605 = vadd.f32 %v5851, %v5957
  %v6606 = vadd.f32 %v6050, %v6156
  %v6607 = vadd.f32 %v6063, %v6169
  %v6608 = vadd.f32 %v6262, %v6368
  %v6609 = vadd.f32 %v6275, %v6381
  %v6610 = vadd.f32 %v6474, %v6580
  %v6611 = vadd.f32 %v6487, %v6593
  %v6612 = vadd.f32 %v6596, %v6598
  %v6613 = vadd.f32 %v6597, %v6599
  %v6614 = vadd.f32 %v6600, %v6602
  %v6615 = vadd.f32 %v6601, %v6603
  %v6616 = vadd.f32 %v6604, %v6606
  %v6617 = vadd.f32 %v6605, %v6607
  %v6618 = vadd.f32 %v6608, %v6610
  %v6619 = vadd.f32 %v6609, %v6611
  %v6620 = vadd.f32 %v6612, %v6614
  %v6621 = vadd.f32 %v6613, %v6615
  %v6622 = vadd.f32 %v6616, %v6618
  %v6623 = vadd.f32 %v6617, %v6619
  %v6624 = vadd.f32 %v6620, %v6622
  %v6625 = vadd.f32 %v6621, %v6623
  %v6626 = vld [vmem:[%s4] sm:$0x3]
  %v6628 = vperm.slane %v6626, 0
  %v6629 = vperm.slane %v6626, 1
  %v6632 = vadd.f32 %v6624, %v6628
  %v6633 = vadd.f32 %v6625, %v6629
  %v6634 = vmax.f32 %v6632, 0.0
  %v6635 = vmax.f32 %v6633, 0.0
  %v6636 = vld [vmem:[%s5] sm:$0xff]
  %v6637 = vld [vmem:[%s5 + $0x8] sm:$0xff]
  %v6638 = vld [vmem:[%s5 + $0x10] sm:$0xff]
  %v6639 = vld [vmem:[%s5 + $0x18] sm:$0xff]
  %v6640 = vld [vmem:[%s5 + $0x20] sm:$0xff]
  %v6641 = vld [vmem:[%s5 + $0x28] sm:$0xff]
  %v6642 = vld [vmem:[%s5 + $0x30] sm:$0xff]
  %v6643 = vld [vmem:[%s5 + $0x38] sm:$0xff]
  %v6644 = vld [vmem:[%s5 + $0x40] sm:$0xff]
  %v6645 = vld [vmem:[%s5 + $0x48] sm:$0xff]
  %v6646 = vld [vmem:[%s5 + $0x50] sm:$0xff]
  %v6647 = vld [vmem:[%s5 + $0x58] sm:$0xff]
  %v6648 = vld [vmem:[%s5 + $0x60] sm:$0xff]
  %v6649 = vld [vmem:[%s5 + $0x68] sm:$0xff]
  %v6650 = vld [vmem:[%s5 + $0x70] sm:$0xff]
  %v6651 = vld [vmem:[%s5 + $0x78] sm:$0xff]
  %v6652 = vld [vmem:[%s5 + $0x80] sm:$0xff]
  %v6653 = vld [vmem:[%s5 + $0x88] sm:$0xff]
  %v6654 = vld [vmem:[%s5 + $0x90] sm:$0xff]
  %v6655 = vld [vmem:[%s5 + $0x98] sm:$0xff]
  %v6656 = vld [vmem:[%s5 + $0xa0] sm:$0xff]
  %v6657 = vld [vmem:[%s5 + $0xa8] sm:$0xff]
  %v6658 = vld [vmem:[%s5 + $0xb0] sm:$0xff]
  %v6659 = vld [vmem:[%s5 + $0xb8] sm:$0xff]
  %v6660 = vld [vmem:[%s5 + $0xc0] sm:$0xff]
  %v6661 = vld [vmem:[%s5 + $0xc8] sm:$0xff]
  %v6662 = vld [vmem:[%s5 + $0xd0] sm:$0xff]
  %v6663 = vld [vmem:[%s5 + $0xd8] sm:$0xff]
  %v6664 = vld [vmem:[%s5 + $0xe0] sm:$0xff]
  %v6665 = vld [vmem:[%s5 + $0xe8] sm:$0xff]
  %v6666 = vld [vmem:[%s5 + $0xf0] sm:$0xff]
  %v6667 = vld [vmem:[%s5 + $0xf8] sm:$0xff]
  %v6668 = vld [vmem:[%s6] sm:$0x1]
  %v6670 = vperm.slane %v6668, 0
  %6672 = vmatpush.msra.mxu0 %v6651
  %6673 = vmatpush.msra.mxu0 %v6650
  %6674 = vmatpush.msra.mxu0 %v6649
  %6675 = vmatpush.msra.mxu0 %v6648
  %6676 = vmatpush.msra.mxu0 %v6647
  %6677 = vmatpush.msra.mxu0 %v6646
  %6678 = vmatpush.msra.mxu0 %v6645
  %6679 = vmatpush.msra.mxu0 %v6644
  %6680 = vmatpush.msra.mxu0 %v6643
  %6681 = vmatpush.msra.mxu0 %v6642
  %6682 = vmatpush.msra.mxu0 %v6641
  %6683 = vmatpush.msra.mxu0 %v6640
  %6684 = vmatpush.msra.mxu0 %v6639
  %6685 = vmatpush.msra.mxu0 %v6638
  %6686 = vmatpush.msra.mxu0 %v6637
  %6687 = vmatpush.msra.mxu0 %v6636
  %6688 = vmatmul.f32.gmra.mxu0 %v6634
  %v6689 = vpop.f32.mrf.mxu0
  %v6690 = vadd.f32 %v6670, %v6689
  %6691 = vdwg.mxu0
  %6692 = vmatpush.msra.mxu0 %v6667
  %6693 = vmatpush.msra.mxu0 %v6666
  %6694 = vmatpush.msra.mxu0 %v6665
  %6695 = vmatpush.msra.mxu0 %v6664
  %6696 = vmatpush.msra.mxu0 %v6663
  %6697 = vmatpush.msra.mxu0 %v6662
  %6698 = vmatpush.msra.mxu0 %v6661
  %6699 = vmatpush.msra.mxu0 %v6660
  %6700 = vmatpush.msra.mxu0 %v6659
  %6701 = vmatpush.msra.mxu0 %v6658
  %6702 = vmatpush.msra.mxu0 %v6657
  %6703 = vmatpush.msra.mxu0 %v6656
  %6704 = vmatpush.msra.mxu0 %v6655
  %6705 = vmatpush.msra.mxu0 %v6654
  %6706 = vmatpush.msra.mxu0 %v6653
  %6707 = vmatpush.msra.mxu0 %v6652
  %6708 = vmatmul.f32.gmra.mxu0 %v6635
  %v6709 = vpop.f32.mrf.mxu0
  %v6710 = vadd.f32 %v6690, %v6709
  %6711 = vdwg.mxu0
  %6712 = vst [vmem:[%s7] sm:$0xff] %v6710
  // Predicated region
  $region30: #{one_cnn_forward.1} parent=0 // pred_check
    _
  $region31: #{one_cnn_forward.1} parent=0 // pred_check_branch
    %6714 = sbr.rel (0) target = $region33
  $region32: #{one_cnn_forward.1} parent=0 // pred_region
    _
  $region33: #{one_cnn_forward.1} parent=0 // pred_fallthru
    _
  // Predicated region
  $region34: #{one_cnn_forward.1} parent=0 // pred_check
    _
  $region35: #{one_cnn_forward.1} parent=0 // pred_check_branch
    %6716 = sbr.rel (0) target = $region37
  $region36: #{one_cnn_forward.1} parent=0 // pred_region
    _
  $region37: #{one_cnn_forward.1} parent=0 // pred_fallthru
    _

</llo_original>
